<compile_context>
chip_gen: v7x
topology: tpu7x:2x2x1
jax: 0.10.0
libtpu: 0.0.40
codegen_flags: <defaults>
</compile_context>

<pallas_src>
import functools

import jax
import jax.numpy as jnp
from jax.experimental import pallas as pl
from jax.experimental.pallas import tpu as pltpu


def _decoder_layer_kernel(
    x_ref, m_ref, tmask_ref, smask_ref,
    sa_w_ref, sa_b_ref, ca_w_ref, ca_b_ref,
    ff_w1_ref, ff_b1_ref, ff_w2_ref, ff_b2_ref,
    ln_g_ref, ln_b_ref,
    out_ref, attn_ref,
    *, n_heads, d_k, eps,
):
    # x_ref: (1, T, D)   m_ref: (1, S, D)
    # tmask_ref: (1, T, T)  smask_ref: (1, 1, S)   (1.0 = keep, 0.0 = mask)
    # sa_w/ca_w: (4, D, D) stacked [Wq, Wk, Wv, Wo] (applied as h @ W)
    # sa_b/ca_b: (4, D)
    # ff_w1: (D, F) ff_b1: (1, F) ff_w2: (F, D) ff_b2: (1, D)
    # ln_g/ln_b: (3, D)  — one LayerNorm per sublayer connection
    x = x_ref[0]                       # (T, D) f32
    m = m_ref[0]                       # (S, D)
    tmask = tmask_ref[0]               # (T, T)
    smask = smask_ref[0]               # (1, S)
    D = x.shape[-1]
    scale = 1.0 / jnp.sqrt(jnp.float32(d_k))

    def layer_norm(h, i):
        g = ln_g_ref[i:i + 1, :]                               # (1, D)
        b = ln_b_ref[i:i + 1, :]
        mu = jnp.mean(h, axis=-1, keepdims=True)
        # matches torch.Tensor.std(-1): unbiased estimator (divide by D-1)
        var = jnp.sum((h - mu) * (h - mu), axis=-1, keepdims=True) / (D - 1)
        return g * (h - mu) / (jnp.sqrt(var) + eps) + b

    def softmax_rows(s):
        s = s - jnp.max(s, axis=-1, keepdims=True)
        e = jnp.exp(s)
        return e / jnp.sum(e, axis=-1, keepdims=True)

    def project(h, w_ref, b_ref, i):
        # lane-dense (rows, D) @ (D, D) matmul on the MXU
        return (jnp.dot(h, w_ref[i], preferred_element_type=jnp.float32)
                + b_ref[i:i + 1, :])

    def mha(q_full, k_full, v_full, wo, bo, mask):
        # q_full: (Tq, D), k_full/v_full: (Tk, D); per-head static loop, output
        # projection accumulated per head (equivalent to concat(heads) @ Wo).
        o = jnp.zeros((q_full.shape[0], D), jnp.float32)
        for h in range(n_heads):
            lo = h * d_k
            q_h = q_full[:, lo:lo + d_k]
            k_h = k_full[:, lo:lo + d_k]
            v_h = v_full[:, lo:lo + d_k]
            s = jax.lax.dot_general(
                q_h, k_h, (((1,), (1,)), ((), ())),
                preferred_element_type=jnp.float32) * scale
            s = jnp.where(mask > 0.0, s, -1e9)
            p = softmax_rows(s)                                # dropout == identity
            ctx = jnp.dot(p, v_h, preferred_element_type=jnp.float32)
            o = o + jnp.dot(ctx, wo[lo:lo + d_k, :],
                            preferred_element_type=jnp.float32)
        return o + bo

    # ---- sublayer 0 : pre-norm self-attention + residual --------------------
    h0 = layer_norm(x, 0)
    q0 = project(h0, sa_w_ref, sa_b_ref, 0)
    k0 = project(h0, sa_w_ref, sa_b_ref, 1)
    v0 = project(h0, sa_w_ref, sa_b_ref, 2)
    sa = mha(q0, k0, v0, sa_w_ref[3], sa_b_ref[3:4, :], tmask)
    x1 = x + sa                                                # dropout == identity

    # cross-attention K / V projections of memory — shared by both src_attn calls
    k_c = project(m, ca_w_ref, ca_b_ref, 1)
    v_c = project(m, ca_w_ref, ca_b_ref, 2)

    # ---- attn_dist : src_attn(x1, m, m, src_mask) probabilities --------------
    # (the module queries with the *un-normalized* x1 here and discards the output)
    q_dist = project(x1, ca_w_ref, ca_b_ref, 0)
    for h in range(n_heads):
        lo = h * d_k
        s = jax.lax.dot_general(
            q_dist[:, lo:lo + d_k], k_c[:, lo:lo + d_k],
            (((1,), (1,)), ((), ())),
            preferred_element_type=jnp.float32) * scale
        s = jnp.where(smask > 0.0, s, -1e9)
        attn_ref[0, h] = softmax_rows(s)

    # ---- sublayer 1 : pre-norm cross-attention + residual --------------------
    h1 = layer_norm(x1, 1)
    q1 = project(h1, ca_w_ref, ca_b_ref, 0)
    ca = mha(q1, k_c, v_c, ca_w_ref[3], ca_b_ref[3:4, :], smask)
    x2 = x1 + ca

    # ---- sublayer 2 : pre-norm position-wise feed-forward + residual ---------
    h2 = layer_norm(x2, 2)
    f = jnp.maximum(
        jnp.dot(h2, ff_w1_ref[...], preferred_element_type=jnp.float32)
        + ff_b1_ref[...], 0.0)
    f = (jnp.dot(f, ff_w2_ref[...], preferred_element_type=jnp.float32)
         + ff_b2_ref[...])
    out_ref[0] = (x2 + f).astype(out_ref.dtype)


def decoder_layer_forward(x, memory, src_mask, tgt_mask, params, *, n_heads):
    """x: (B, T, D), memory: (B, S, D), src_mask: (B, 1, S), tgt_mask: (1, T, T).

    Returns (out (B, T, D), attn_dist (B, H, T, S)).
    """
    B, T, D = x.shape
    S = memory.shape[1]
    assert D % n_heads == 0
    d_k = D // n_heads
    H = n_heads
    Fh = params["ff_w1"].shape[1]

    kernel = functools.partial(_decoder_layer_kernel,
                               n_heads=H, d_k=d_k, eps=1e-6)

    out, attn = pl.pallas_call(
        kernel,
        out_shape=(
            jax.ShapeDtypeStruct((B, T, D), x.dtype),
            jax.ShapeDtypeStruct((B, H, T, S), jnp.float32),
        ),
        grid=(B,),
        in_specs=[
            pl.BlockSpec((1, T, D), lambda n: (n, 0, 0)),         # x
            pl.BlockSpec((1, S, D), lambda n: (n, 0, 0)),         # memory
            pl.BlockSpec((1, T, T), lambda n: (0, 0, 0)),         # tgt_mask (shared)
            pl.BlockSpec((1, 1, S), lambda n: (n, 0, 0)),         # src_mask
            pl.BlockSpec((4, D, D), lambda n: (0, 0, 0)),         # self-attn W
            pl.BlockSpec((4, D), lambda n: (0, 0)),               # self-attn b
            pl.BlockSpec((4, D, D), lambda n: (0, 0, 0)),         # src-attn W
            pl.BlockSpec((4, D), lambda n: (0, 0)),               # src-attn b
            pl.BlockSpec((D, Fh), lambda n: (0, 0)),              # ff_w1
            pl.BlockSpec((1, Fh), lambda n: (0, 0)),              # ff_b1
            pl.BlockSpec((Fh, D), lambda n: (0, 0)),              # ff_w2
            pl.BlockSpec((1, D), lambda n: (0, 0)),               # ff_b2
            pl.BlockSpec((3, D), lambda n: (0, 0)),               # LayerNorm gains
            pl.BlockSpec((3, D), lambda n: (0, 0)),               # LayerNorm biases
        ],
        out_specs=(
            pl.BlockSpec((1, T, D), lambda n: (n, 0, 0)),
            pl.BlockSpec((1, H, T, S), lambda n: (n, 0, 0, 0)),
        ),
        compiler_params=pltpu.CompilerParams(
            dimension_semantics=("parallel",)),
    )(x, memory, tgt_mask, src_mask,
      params["sa_w"], params["sa_b"], params["ca_w"], params["ca_b"],
      params["ff_w1"], params["ff_b1"], params["ff_w2"], params["ff_b2"],
      params["ln_g"], params["ln_b"])
    return out, attn


def init_params(key, d_model, d_ff):
    """Deterministic synthetic parameters mirroring the module's shapes.

    Linear weights are stored as (in_features, out_features) so the kernel
    applies them as h @ W (equivalent to PyTorch's h @ W_pt.T).
    """
    ks = jax.random.split(key, 16)
    s = 0.02

    def lin(k, fi, fo):
        return s * jax.random.normal(k, (fi, fo), jnp.float32)

    sa_w = jnp.stack([lin(ks[i], d_model, d_model) for i in range(4)])
    ca_w = jnp.stack([lin(ks[4 + i], d_model, d_model) for i in range(4)])
    sa_b = 0.01 * jax.random.normal(ks[8], (4, d_model), jnp.float32)
    ca_b = 0.01 * jax.random.normal(ks[9], (4, d_model), jnp.float32)
    ff_w1 = lin(ks[10], d_model, d_ff)
    ff_w2 = lin(ks[11], d_ff, d_model)
    ff_b1 = 0.01 * jax.random.normal(ks[12], (1, d_ff), jnp.float32)
    ff_b2 = 0.01 * jax.random.normal(ks[13], (1, d_model), jnp.float32)
    ln_g = 1.0 + 0.01 * jax.random.normal(ks[14], (3, d_model), jnp.float32)
    ln_b = 0.01 * jax.random.normal(ks[15], (3, d_model), jnp.float32)
    return dict(sa_w=sa_w, sa_b=sa_b, ca_w=ca_w, ca_b=ca_b,
                ff_w1=ff_w1, ff_b1=ff_b1, ff_w2=ff_w2, ff_b2=ff_b2,
                ln_g=ln_g, ln_b=ln_b)


if __name__ == "__main__":
    # DecoderLayer(size=128) with 4-head attention, d_ff=256, dropout (eval -> identity)
    B, T, S, D, H, D_FF = 2, 16, 16, 128, 4, 256

    key = jax.random.PRNGKey(0)
    kx, km, kp = jax.random.split(key, 3)
    x = jax.random.normal(kx, (B, T, D), jnp.float32)          # decoder input
    memory = jax.random.normal(km, (B, S, D), jnp.float32)     # encoder memory
    params = init_params(kp, D, D_FF)

    # causal target mask (shared across batch) and a src key-padding mask
    tgt_mask = jnp.tril(jnp.ones((T, T), jnp.float32))[None]   # (1, T, T)
    src_mask = jnp.ones((B, 1, S), jnp.float32)
    src_mask = src_mask.at[1, 0, S - 4:].set(0.0)              # pad last 4 src tokens of item 1

    out, attn = decoder_layer_forward(x, memory, src_mask, tgt_mask, params,
                                      n_heads=H)
    out = jax.block_until_ready(out)
    attn = jax.block_until_ready(attn)

    assert out.shape == (B, T, D), out.shape
    assert attn.shape == (B, H, T, S), attn.shape
    assert bool(jnp.all(jnp.isfinite(out)))
    assert bool(jnp.all(jnp.isfinite(attn)))
    # attention rows are probability distributions over source positions
    row_sums = jnp.sum(attn, axis=-1)
    assert bool(jnp.all(jnp.abs(row_sums - 1.0) < 1e-3)), row_sums
    # masked source positions receive (numerically) zero attention
    assert bool(jnp.all(attn[1, :, :, S - 4:] < 1e-6))
    print("KERNEL_OK")
</pallas_src>

<mosaic_0001>
module attributes {stable_mosaic.version = 11 : i64} {
  func.func @_decoder_layer_kernel(%arg0: i32, %arg1: memref<1x16x128xf32, #tpu.memory_space<vmem>>, %arg2: memref<1x16x128xf32, #tpu.memory_space<vmem>>, %arg3: memref<1x16x16xf32, #tpu.memory_space<vmem>>, %arg4: memref<1x1x16xf32, #tpu.memory_space<vmem>>, %arg5: memref<4x128x128xf32, #tpu.memory_space<vmem>>, %arg6: memref<4x128xf32, #tpu.memory_space<vmem>>, %arg7: memref<4x128x128xf32, #tpu.memory_space<vmem>>, %arg8: memref<4x128xf32, #tpu.memory_space<vmem>>, %arg9: memref<128x256xf32, #tpu.memory_space<vmem>>, %arg10: memref<1x256xf32, #tpu.memory_space<vmem>>, %arg11: memref<256x128xf32, #tpu.memory_space<vmem>>, %arg12: memref<1x128xf32, #tpu.memory_space<vmem>>, %arg13: memref<3x128xf32, #tpu.memory_space<vmem>>, %arg14: memref<3x128xf32, #tpu.memory_space<vmem>>, %arg15: memref<1x16x128xf32, #tpu.memory_space<vmem>>, %arg16: memref<1x4x16x16xf32, #tpu.memory_space<vmem>>) attributes {dimension_semantics = [#tpu.dimension_semantics<parallel>], iteration_bounds = array<i64: 2>, scalar_prefetch = 0 : i64, scratch_operands = 0 : i64, tpu.core_type = #tpu.core_type<tc>, window_params = [{transform_indices = @transform_0, window_bounds = array<i64: 1, 16, 128>}, {transform_indices = @transform_1, window_bounds = array<i64: 1, 16, 128>}, {pipeline_mode = #tpu.pipeline_mode<synchronous>, transform_indices = @transform_2, window_bounds = array<i64: 1, 16, 16>}, {transform_indices = @transform_3, window_bounds = array<i64: 1, 1, 16>}, {pipeline_mode = #tpu.pipeline_mode<synchronous>, transform_indices = @transform_4, window_bounds = array<i64: 4, 128, 128>}, {pipeline_mode = #tpu.pipeline_mode<synchronous>, transform_indices = @transform_5, window_bounds = array<i64: 4, 128>}, {pipeline_mode = #tpu.pipeline_mode<synchronous>, transform_indices = @transform_6, window_bounds = array<i64: 4, 128, 128>}, {pipeline_mode = #tpu.pipeline_mode<synchronous>, transform_indices = @transform_7, window_bounds = array<i64: 4, 128>}, {pipeline_mode = #tpu.pipeline_mode<synchronous>, transform_indices = @transform_8, window_bounds = array<i64: 128, 256>}, {pipeline_mode = #tpu.pipeline_mode<synchronous>, transform_indices = @transform_9, window_bounds = array<i64: 1, 256>}, {pipeline_mode = #tpu.pipeline_mode<synchronous>, transform_indices = @transform_10, window_bounds = array<i64: 256, 128>}, {pipeline_mode = #tpu.pipeline_mode<synchronous>, transform_indices = @transform_11, window_bounds = array<i64: 1, 128>}, {pipeline_mode = #tpu.pipeline_mode<synchronous>, transform_indices = @transform_12, window_bounds = array<i64: 3, 128>}, {pipeline_mode = #tpu.pipeline_mode<synchronous>, transform_indices = @transform_13, window_bounds = array<i64: 3, 128>}, {transform_indices = @transform_14, window_bounds = array<i64: 1, 16, 128>}, {transform_indices = @transform_15, window_bounds = array<i64: 1, 4, 16, 16>}]} {
    %c0 = arith.constant 0 : index
    %c0_0 = arith.constant 0 : index
    %c0_1 = arith.constant 0 : index
    %0 = vector.load %arg1[%c0, %c0_0, %c0_1] : memref<1x16x128xf32, #tpu.memory_space<vmem>>, vector<1x16x128xf32>
    %1 = vector.shape_cast %0 : vector<1x16x128xf32> to vector<16x128xf32>
    %c0_2 = arith.constant 0 : index
    %c0_3 = arith.constant 0 : index
    %c0_4 = arith.constant 0 : index
    %2 = vector.load %arg2[%c0_2, %c0_3, %c0_4] : memref<1x16x128xf32, #tpu.memory_space<vmem>>, vector<1x16x128xf32>
    %3 = vector.shape_cast %2 : vector<1x16x128xf32> to vector<16x128xf32>
    %c0_5 = arith.constant 0 : index
    %c0_6 = arith.constant 0 : index
    %c0_7 = arith.constant 0 : index
    %4 = vector.load %arg3[%c0_5, %c0_6, %c0_7] : memref<1x16x16xf32, #tpu.memory_space<vmem>>, vector<1x16x16xf32>
    %5 = vector.shape_cast %4 : vector<1x16x16xf32> to vector<16x16xf32>
    %c0_8 = arith.constant 0 : index
    %c0_9 = arith.constant 0 : index
    %c0_10 = arith.constant 0 : index
    %6 = vector.load %arg4[%c0_8, %c0_9, %c0_10] : memref<1x1x16xf32, #tpu.memory_space<vmem>>, vector<1x1x16xf32>
    %7 = vector.shape_cast %6 : vector<1x1x16xf32> to vector<1x16xf32>
    %cst = arith.constant 3.200000e+01 : f32
    %8 = math.sqrt %cst : f32
    %cst_11 = arith.constant 1.000000e+00 : f32
    %9 = arith.divf %cst_11, %8 : f32
    %c0_12 = arith.constant 0 : index
    %c0_13 = arith.constant 0 : index
    %10 = vector.load %arg13[%c0_12, %c0_13] : memref<3x128xf32, #tpu.memory_space<vmem>>, vector<1x128xf32>
    %c0_14 = arith.constant 0 : index
    %c0_15 = arith.constant 0 : index
    %11 = vector.load %arg14[%c0_14, %c0_15] : memref<3x128xf32, #tpu.memory_space<vmem>>, vector<1x128xf32>
    %cst_16 = arith.constant dense<0.000000e+00> : vector<16xf32>
    %12 = vector.multi_reduction <add>, %1, %cst_16 [1] : vector<16x128xf32> to vector<16xf32>
    %13 = vector.shape_cast %12 : vector<16xf32> to vector<16x1xf32>
    %cst_17 = arith.constant 1.280000e+02 : f32
    %14 = vector.broadcast %cst_17 : f32 to vector<16x1xf32>
    %15 = arith.divf %13, %14 : vector<16x1xf32>
    %16 = vector.broadcast %15 : vector<16x1xf32> to vector<16x128xf32>
    %17 = arith.subf %1, %16 : vector<16x128xf32>
    %18 = vector.broadcast %15 : vector<16x1xf32> to vector<16x128xf32>
    %19 = arith.subf %1, %18 : vector<16x128xf32>
    %20 = arith.mulf %17, %19 : vector<16x128xf32>
    %cst_18 = arith.constant dense<0.000000e+00> : vector<16xf32>
    %21 = vector.multi_reduction <add>, %20, %cst_18 [1] : vector<16x128xf32> to vector<16xf32>
    %22 = vector.shape_cast %21 : vector<16xf32> to vector<16x1xf32>
    %cst_19 = arith.constant 1.270000e+02 : f32
    %23 = vector.broadcast %cst_19 : f32 to vector<16x1xf32>
    %24 = arith.divf %22, %23 : vector<16x1xf32>
    %25 = vector.broadcast %15 : vector<16x1xf32> to vector<16x128xf32>
    %26 = arith.subf %1, %25 : vector<16x128xf32>
    %27 = vector.broadcast %10 : vector<1x128xf32> to vector<16x128xf32>
    %28 = arith.mulf %27, %26 : vector<16x128xf32>
    %29 = math.sqrt %24 : vector<16x1xf32>
    %cst_20 = arith.constant 9.99999997E-7 : f32
    %30 = vector.broadcast %cst_20 : f32 to vector<16x1xf32>
    %31 = arith.addf %29, %30 : vector<16x1xf32>
    %32 = vector.broadcast %31 : vector<16x1xf32> to vector<16x128xf32>
    %33 = arith.divf %28, %32 : vector<16x128xf32>
    %34 = vector.broadcast %11 : vector<1x128xf32> to vector<16x128xf32>
    %35 = arith.addf %33, %34 : vector<16x128xf32>
    %c0_21 = arith.constant 0 : index
    %c0_22 = arith.constant 0 : index
    %c0_23 = arith.constant 0 : index
    %36 = vector.load %arg5[%c0_21, %c0_22, %c0_23] : memref<4x128x128xf32, #tpu.memory_space<vmem>>, vector<1x128x128xf32>
    %37 = vector.shape_cast %36 : vector<1x128x128xf32> to vector<128x128xf32>
    %cst_24 = arith.constant dense<0.000000e+00> : vector<16x128xf32>
    %38 = tpu.matmul %35, %37, %cst_24 {dimension_numbers = #tpu.dot_dimension_numbers<[1], [0], [0], [1], [0, 0, 1, 1], [], []>} : vector<16x128xf32>, vector<128x128xf32>, vector<16x128xf32> -> vector<16x128xf32>
    %c0_25 = arith.constant 0 : index
    %c0_26 = arith.constant 0 : index
    %39 = vector.load %arg6[%c0_25, %c0_26] : memref<4x128xf32, #tpu.memory_space<vmem>>, vector<1x128xf32>
    %40 = vector.broadcast %39 : vector<1x128xf32> to vector<16x128xf32>
    %41 = arith.addf %38, %40 : vector<16x128xf32>
    %c1 = arith.constant 1 : index
    %c0_27 = arith.constant 0 : index
    %c0_28 = arith.constant 0 : index
    %42 = vector.load %arg5[%c1, %c0_27, %c0_28] : memref<4x128x128xf32, #tpu.memory_space<vmem>>, vector<1x128x128xf32>
    %43 = vector.shape_cast %42 : vector<1x128x128xf32> to vector<128x128xf32>
    %cst_29 = arith.constant dense<0.000000e+00> : vector<16x128xf32>
    %44 = tpu.matmul %35, %43, %cst_29 {dimension_numbers = #tpu.dot_dimension_numbers<[1], [0], [0], [1], [0, 0, 1, 1], [], []>} : vector<16x128xf32>, vector<128x128xf32>, vector<16x128xf32> -> vector<16x128xf32>
    %c1_30 = arith.constant 1 : index
    %c0_31 = arith.constant 0 : index
    %45 = vector.load %arg6[%c1_30, %c0_31] : memref<4x128xf32, #tpu.memory_space<vmem>>, vector<1x128xf32>
    %46 = vector.broadcast %45 : vector<1x128xf32> to vector<16x128xf32>
    %47 = arith.addf %44, %46 : vector<16x128xf32>
    %c2 = arith.constant 2 : index
    %c0_32 = arith.constant 0 : index
    %c0_33 = arith.constant 0 : index
    %48 = vector.load %arg5[%c2, %c0_32, %c0_33] : memref<4x128x128xf32, #tpu.memory_space<vmem>>, vector<1x128x128xf32>
    %49 = vector.shape_cast %48 : vector<1x128x128xf32> to vector<128x128xf32>
    %cst_34 = arith.constant dense<0.000000e+00> : vector<16x128xf32>
    %50 = tpu.matmul %35, %49, %cst_34 {dimension_numbers = #tpu.dot_dimension_numbers<[1], [0], [0], [1], [0, 0, 1, 1], [], []>} : vector<16x128xf32>, vector<128x128xf32>, vector<16x128xf32> -> vector<16x128xf32>
    %c2_35 = arith.constant 2 : index
    %c0_36 = arith.constant 0 : index
    %51 = vector.load %arg6[%c2_35, %c0_36] : memref<4x128xf32, #tpu.memory_space<vmem>>, vector<1x128xf32>
    %52 = vector.broadcast %51 : vector<1x128xf32> to vector<16x128xf32>
    %53 = arith.addf %50, %52 : vector<16x128xf32>
    %c3 = arith.constant 3 : index
    %c0_37 = arith.constant 0 : index
    %c0_38 = arith.constant 0 : index
    %54 = vector.load %arg5[%c3, %c0_37, %c0_38] : memref<4x128x128xf32, #tpu.memory_space<vmem>>, vector<1x128x128xf32>
    %55 = vector.shape_cast %54 : vector<1x128x128xf32> to vector<128x128xf32>
    %c3_39 = arith.constant 3 : index
    %c0_40 = arith.constant 0 : index
    %56 = vector.load %arg6[%c3_39, %c0_40] : memref<4x128xf32, #tpu.memory_space<vmem>>, vector<1x128xf32>
    %cst_41 = arith.constant 0.000000e+00 : f32
    %57 = vector.broadcast %cst_41 : f32 to vector<16x128xf32>
    %58 = vector.extract_strided_slice %41 {offsets = [0, 0], sizes = [16, 32], strides = [1, 1]} : vector<16x128xf32> to vector<16x32xf32>
    %59 = vector.extract_strided_slice %47 {offsets = [0, 0], sizes = [16, 32], strides = [1, 1]} : vector<16x128xf32> to vector<16x32xf32>
    %60 = vector.extract_strided_slice %53 {offsets = [0, 0], sizes = [16, 32], strides = [1, 1]} : vector<16x128xf32> to vector<16x32xf32>
    %cst_42 = arith.constant dense<0.000000e+00> : vector<16x16xf32>
    %61 = tpu.matmul %58, %59, %cst_42 {dimension_numbers = #tpu.dot_dimension_numbers<[1], [1], [0], [0], [0, 0, 1, 0], [], []>} : vector<16x32xf32>, vector<16x32xf32>, vector<16x16xf32> -> vector<16x16xf32>
    %62 = vector.broadcast %9 : f32 to vector<16x16xf32>
    %63 = arith.mulf %61, %62 : vector<16x16xf32>
    %cst_43 = arith.constant 0.000000e+00 : f32
    %64 = vector.broadcast %cst_43 : f32 to vector<16x16xf32>
    %65 = arith.cmpf ogt, %5, %64 : vector<16x16xf32>
    %cst_44 = arith.constant -1.000000e+09 : f32
    %66 = vector.broadcast %cst_44 : f32 to vector<16x16xf32>
    %67 = arith.select %65, %63, %66 : vector<16x16xi1>, vector<16x16xf32>
    %cst_45 = arith.constant dense<0xFF800000> : vector<16xf32>
    %68 = vector.multi_reduction <maximumf>, %67, %cst_45 [1] : vector<16x16xf32> to vector<16xf32>
    %69 = vector.shape_cast %68 : vector<16xf32> to vector<16x1xf32>
    %70 = vector.broadcast %69 : vector<16x1xf32> to vector<16x16xf32>
    %71 = arith.subf %67, %70 : vector<16x16xf32>
    %72 = math.exp %71 : vector<16x16xf32>
    %cst_46 = arith.constant dense<0.000000e+00> : vector<16xf32>
    %73 = vector.multi_reduction <add>, %72, %cst_46 [1] : vector<16x16xf32> to vector<16xf32>
    %74 = vector.shape_cast %73 : vector<16xf32> to vector<16x1xf32>
    %75 = vector.broadcast %74 : vector<16x1xf32> to vector<16x16xf32>
    %76 = arith.divf %72, %75 : vector<16x16xf32>
    %cst_47 = arith.constant dense<0.000000e+00> : vector<16x32xf32>
    %77 = tpu.matmul %76, %60, %cst_47 {dimension_numbers = #tpu.dot_dimension_numbers<[1], [0], [0], [1], [0, 0, 1, 1], [], []>} : vector<16x16xf32>, vector<16x32xf32>, vector<16x32xf32> -> vector<16x32xf32>
    %78 = vector.extract_strided_slice %55 {offsets = [0, 0], sizes = [32, 128], strides = [1, 1]} : vector<128x128xf32> to vector<32x128xf32>
    %cst_48 = arith.constant dense<0.000000e+00> : vector<16x128xf32>
    %79 = tpu.matmul %77, %78, %cst_48 {dimension_numbers = #tpu.dot_dimension_numbers<[1], [0], [0], [1], [0, 0, 1, 1], [], []>} : vector<16x32xf32>, vector<32x128xf32>, vector<16x128xf32> -> vector<16x128xf32>
    %80 = arith.addf %57, %79 : vector<16x128xf32>
    %81 = vector.extract_strided_slice %41 {offsets = [0, 32], sizes = [16, 32], strides = [1, 1]} : vector<16x128xf32> to vector<16x32xf32>
    %82 = vector.extract_strided_slice %47 {offsets = [0, 32], sizes = [16, 32], strides = [1, 1]} : vector<16x128xf32> to vector<16x32xf32>
    %83 = vector.extract_strided_slice %53 {offsets = [0, 32], sizes = [16, 32], strides = [1, 1]} : vector<16x128xf32> to vector<16x32xf32>
    %cst_49 = arith.constant dense<0.000000e+00> : vector<16x16xf32>
    %84 = tpu.matmul %81, %82, %cst_49 {dimension_numbers = #tpu.dot_dimension_numbers<[1], [1], [0], [0], [0, 0, 1, 0], [], []>} : vector<16x32xf32>, vector<16x32xf32>, vector<16x16xf32> -> vector<16x16xf32>
    %85 = vector.broadcast %9 : f32 to vector<16x16xf32>
    %86 = arith.mulf %84, %85 : vector<16x16xf32>
    %cst_50 = arith.constant 0.000000e+00 : f32
    %87 = vector.broadcast %cst_50 : f32 to vector<16x16xf32>
    %88 = arith.cmpf ogt, %5, %87 : vector<16x16xf32>
    %cst_51 = arith.constant -1.000000e+09 : f32
    %89 = vector.broadcast %cst_51 : f32 to vector<16x16xf32>
    %90 = arith.select %88, %86, %89 : vector<16x16xi1>, vector<16x16xf32>
    %cst_52 = arith.constant dense<0xFF800000> : vector<16xf32>
    %91 = vector.multi_reduction <maximumf>, %90, %cst_52 [1] : vector<16x16xf32> to vector<16xf32>
    %92 = vector.shape_cast %91 : vector<16xf32> to vector<16x1xf32>
    %93 = vector.broadcast %92 : vector<16x1xf32> to vector<16x16xf32>
    %94 = arith.subf %90, %93 : vector<16x16xf32>
    %95 = math.exp %94 : vector<16x16xf32>
    %cst_53 = arith.constant dense<0.000000e+00> : vector<16xf32>
    %96 = vector.multi_reduction <add>, %95, %cst_53 [1] : vector<16x16xf32> to vector<16xf32>
    %97 = vector.shape_cast %96 : vector<16xf32> to vector<16x1xf32>
    %98 = vector.broadcast %97 : vector<16x1xf32> to vector<16x16xf32>
    %99 = arith.divf %95, %98 : vector<16x16xf32>
    %cst_54 = arith.constant dense<0.000000e+00> : vector<16x32xf32>
    %100 = tpu.matmul %99, %83, %cst_54 {dimension_numbers = #tpu.dot_dimension_numbers<[1], [0], [0], [1], [0, 0, 1, 1], [], []>} : vector<16x16xf32>, vector<16x32xf32>, vector<16x32xf32> -> vector<16x32xf32>
    %101 = vector.extract_strided_slice %55 {offsets = [32, 0], sizes = [32, 128], strides = [1, 1]} : vector<128x128xf32> to vector<32x128xf32>
    %cst_55 = arith.constant dense<0.000000e+00> : vector<16x128xf32>
    %102 = tpu.matmul %100, %101, %cst_55 {dimension_numbers = #tpu.dot_dimension_numbers<[1], [0], [0], [1], [0, 0, 1, 1], [], []>} : vector<16x32xf32>, vector<32x128xf32>, vector<16x128xf32> -> vector<16x128xf32>
    %103 = arith.addf %80, %102 : vector<16x128xf32>
    %104 = vector.extract_strided_slice %41 {offsets = [0, 64], sizes = [16, 32], strides = [1, 1]} : vector<16x128xf32> to vector<16x32xf32>
    %105 = vector.extract_strided_slice %47 {offsets = [0, 64], sizes = [16, 32], strides = [1, 1]} : vector<16x128xf32> to vector<16x32xf32>
    %106 = vector.extract_strided_slice %53 {offsets = [0, 64], sizes = [16, 32], strides = [1, 1]} : vector<16x128xf32> to vector<16x32xf32>
    %cst_56 = arith.constant dense<0.000000e+00> : vector<16x16xf32>
    %107 = tpu.matmul %104, %105, %cst_56 {dimension_numbers = #tpu.dot_dimension_numbers<[1], [1], [0], [0], [0, 0, 1, 0], [], []>} : vector<16x32xf32>, vector<16x32xf32>, vector<16x16xf32> -> vector<16x16xf32>
    %108 = vector.broadcast %9 : f32 to vector<16x16xf32>
    %109 = arith.mulf %107, %108 : vector<16x16xf32>
    %cst_57 = arith.constant 0.000000e+00 : f32
    %110 = vector.broadcast %cst_57 : f32 to vector<16x16xf32>
    %111 = arith.cmpf ogt, %5, %110 : vector<16x16xf32>
    %cst_58 = arith.constant -1.000000e+09 : f32
    %112 = vector.broadcast %cst_58 : f32 to vector<16x16xf32>
    %113 = arith.select %111, %109, %112 : vector<16x16xi1>, vector<16x16xf32>
    %cst_59 = arith.constant dense<0xFF800000> : vector<16xf32>
    %114 = vector.multi_reduction <maximumf>, %113, %cst_59 [1] : vector<16x16xf32> to vector<16xf32>
    %115 = vector.shape_cast %114 : vector<16xf32> to vector<16x1xf32>
    %116 = vector.broadcast %115 : vector<16x1xf32> to vector<16x16xf32>
    %117 = arith.subf %113, %116 : vector<16x16xf32>
    %118 = math.exp %117 : vector<16x16xf32>
    %cst_60 = arith.constant dense<0.000000e+00> : vector<16xf32>
    %119 = vector.multi_reduction <add>, %118, %cst_60 [1] : vector<16x16xf32> to vector<16xf32>
    %120 = vector.shape_cast %119 : vector<16xf32> to vector<16x1xf32>
    %121 = vector.broadcast %120 : vector<16x1xf32> to vector<16x16xf32>
    %122 = arith.divf %118, %121 : vector<16x16xf32>
    %cst_61 = arith.constant dense<0.000000e+00> : vector<16x32xf32>
    %123 = tpu.matmul %122, %106, %cst_61 {dimension_numbers = #tpu.dot_dimension_numbers<[1], [0], [0], [1], [0, 0, 1, 1], [], []>} : vector<16x16xf32>, vector<16x32xf32>, vector<16x32xf32> -> vector<16x32xf32>
    %124 = vector.extract_strided_slice %55 {offsets = [64, 0], sizes = [32, 128], strides = [1, 1]} : vector<128x128xf32> to vector<32x128xf32>
    %cst_62 = arith.constant dense<0.000000e+00> : vector<16x128xf32>
    %125 = tpu.matmul %123, %124, %cst_62 {dimension_numbers = #tpu.dot_dimension_numbers<[1], [0], [0], [1], [0, 0, 1, 1], [], []>} : vector<16x32xf32>, vector<32x128xf32>, vector<16x128xf32> -> vector<16x128xf32>
    %126 = arith.addf %103, %125 : vector<16x128xf32>
    %127 = vector.extract_strided_slice %41 {offsets = [0, 96], sizes = [16, 32], strides = [1, 1]} : vector<16x128xf32> to vector<16x32xf32>
    %128 = vector.extract_strided_slice %47 {offsets = [0, 96], sizes = [16, 32], strides = [1, 1]} : vector<16x128xf32> to vector<16x32xf32>
    %129 = vector.extract_strided_slice %53 {offsets = [0, 96], sizes = [16, 32], strides = [1, 1]} : vector<16x128xf32> to vector<16x32xf32>
    %cst_63 = arith.constant dense<0.000000e+00> : vector<16x16xf32>
    %130 = tpu.matmul %127, %128, %cst_63 {dimension_numbers = #tpu.dot_dimension_numbers<[1], [1], [0], [0], [0, 0, 1, 0], [], []>} : vector<16x32xf32>, vector<16x32xf32>, vector<16x16xf32> -> vector<16x16xf32>
    %131 = vector.broadcast %9 : f32 to vector<16x16xf32>
    %132 = arith.mulf %130, %131 : vector<16x16xf32>
    %cst_64 = arith.constant 0.000000e+00 : f32
    %133 = vector.broadcast %cst_64 : f32 to vector<16x16xf32>
    %134 = arith.cmpf ogt, %5, %133 : vector<16x16xf32>
    %cst_65 = arith.constant -1.000000e+09 : f32
    %135 = vector.broadcast %cst_65 : f32 to vector<16x16xf32>
    %136 = arith.select %134, %132, %135 : vector<16x16xi1>, vector<16x16xf32>
    %cst_66 = arith.constant dense<0xFF800000> : vector<16xf32>
    %137 = vector.multi_reduction <maximumf>, %136, %cst_66 [1] : vector<16x16xf32> to vector<16xf32>
    %138 = vector.shape_cast %137 : vector<16xf32> to vector<16x1xf32>
    %139 = vector.broadcast %138 : vector<16x1xf32> to vector<16x16xf32>
    %140 = arith.subf %136, %139 : vector<16x16xf32>
    %141 = math.exp %140 : vector<16x16xf32>
    %cst_67 = arith.constant dense<0.000000e+00> : vector<16xf32>
    %142 = vector.multi_reduction <add>, %141, %cst_67 [1] : vector<16x16xf32> to vector<16xf32>
    %143 = vector.shape_cast %142 : vector<16xf32> to vector<16x1xf32>
    %144 = vector.broadcast %143 : vector<16x1xf32> to vector<16x16xf32>
    %145 = arith.divf %141, %144 : vector<16x16xf32>
    %cst_68 = arith.constant dense<0.000000e+00> : vector<16x32xf32>
    %146 = tpu.matmul %145, %129, %cst_68 {dimension_numbers = #tpu.dot_dimension_numbers<[1], [0], [0], [1], [0, 0, 1, 1], [], []>} : vector<16x16xf32>, vector<16x32xf32>, vector<16x32xf32> -> vector<16x32xf32>
    %147 = vector.extract_strided_slice %55 {offsets = [96, 0], sizes = [32, 128], strides = [1, 1]} : vector<128x128xf32> to vector<32x128xf32>
    %cst_69 = arith.constant dense<0.000000e+00> : vector<16x128xf32>
    %148 = tpu.matmul %146, %147, %cst_69 {dimension_numbers = #tpu.dot_dimension_numbers<[1], [0], [0], [1], [0, 0, 1, 1], [], []>} : vector<16x32xf32>, vector<32x128xf32>, vector<16x128xf32> -> vector<16x128xf32>
    %149 = arith.addf %126, %148 : vector<16x128xf32>
    %150 = vector.broadcast %56 : vector<1x128xf32> to vector<16x128xf32>
    %151 = arith.addf %149, %150 : vector<16x128xf32>
    %152 = arith.addf %1, %151 : vector<16x128xf32>
    %c1_70 = arith.constant 1 : index
    %c0_71 = arith.constant 0 : index
    %c0_72 = arith.constant 0 : index
    %153 = vector.load %arg7[%c1_70, %c0_71, %c0_72] : memref<4x128x128xf32, #tpu.memory_space<vmem>>, vector<1x128x128xf32>
    %154 = vector.shape_cast %153 : vector<1x128x128xf32> to vector<128x128xf32>
    %cst_73 = arith.constant dense<0.000000e+00> : vector<16x128xf32>
    %155 = tpu.matmul %3, %154, %cst_73 {dimension_numbers = #tpu.dot_dimension_numbers<[1], [0], [0], [1], [0, 0, 1, 1], [], []>} : vector<16x128xf32>, vector<128x128xf32>, vector<16x128xf32> -> vector<16x128xf32>
    %c1_74 = arith.constant 1 : index
    %c0_75 = arith.constant 0 : index
    %156 = vector.load %arg8[%c1_74, %c0_75] : memref<4x128xf32, #tpu.memory_space<vmem>>, vector<1x128xf32>
    %157 = vector.broadcast %156 : vector<1x128xf32> to vector<16x128xf32>
    %158 = arith.addf %155, %157 : vector<16x128xf32>
    %c2_76 = arith.constant 2 : index
    %c0_77 = arith.constant 0 : index
    %c0_78 = arith.constant 0 : index
    %159 = vector.load %arg7[%c2_76, %c0_77, %c0_78] : memref<4x128x128xf32, #tpu.memory_space<vmem>>, vector<1x128x128xf32>
    %160 = vector.shape_cast %159 : vector<1x128x128xf32> to vector<128x128xf32>
    %cst_79 = arith.constant dense<0.000000e+00> : vector<16x128xf32>
    %161 = tpu.matmul %3, %160, %cst_79 {dimension_numbers = #tpu.dot_dimension_numbers<[1], [0], [0], [1], [0, 0, 1, 1], [], []>} : vector<16x128xf32>, vector<128x128xf32>, vector<16x128xf32> -> vector<16x128xf32>
    %c2_80 = arith.constant 2 : index
    %c0_81 = arith.constant 0 : index
    %162 = vector.load %arg8[%c2_80, %c0_81] : memref<4x128xf32, #tpu.memory_space<vmem>>, vector<1x128xf32>
    %163 = vector.broadcast %162 : vector<1x128xf32> to vector<16x128xf32>
    %164 = arith.addf %161, %163 : vector<16x128xf32>
    %c0_82 = arith.constant 0 : index
    %c0_83 = arith.constant 0 : index
    %c0_84 = arith.constant 0 : index
    %165 = vector.load %arg7[%c0_82, %c0_83, %c0_84] : memref<4x128x128xf32, #tpu.memory_space<vmem>>, vector<1x128x128xf32>
    %166 = vector.shape_cast %165 : vector<1x128x128xf32> to vector<128x128xf32>
    %cst_85 = arith.constant dense<0.000000e+00> : vector<16x128xf32>
    %167 = tpu.matmul %152, %166, %cst_85 {dimension_numbers = #tpu.dot_dimension_numbers<[1], [0], [0], [1], [0, 0, 1, 1], [], []>} : vector<16x128xf32>, vector<128x128xf32>, vector<16x128xf32> -> vector<16x128xf32>
    %c0_86 = arith.constant 0 : index
    %c0_87 = arith.constant 0 : index
    %168 = vector.load %arg8[%c0_86, %c0_87] : memref<4x128xf32, #tpu.memory_space<vmem>>, vector<1x128xf32>
    %169 = vector.broadcast %168 : vector<1x128xf32> to vector<16x128xf32>
    %170 = arith.addf %167, %169 : vector<16x128xf32>
    %171 = vector.extract_strided_slice %170 {offsets = [0, 0], sizes = [16, 32], strides = [1, 1]} : vector<16x128xf32> to vector<16x32xf32>
    %172 = vector.extract_strided_slice %158 {offsets = [0, 0], sizes = [16, 32], strides = [1, 1]} : vector<16x128xf32> to vector<16x32xf32>
    %cst_88 = arith.constant dense<0.000000e+00> : vector<16x16xf32>
    %173 = tpu.matmul %171, %172, %cst_88 {dimension_numbers = #tpu.dot_dimension_numbers<[1], [1], [0], [0], [0, 0, 1, 0], [], []>} : vector<16x32xf32>, vector<16x32xf32>, vector<16x16xf32> -> vector<16x16xf32>
    %174 = vector.broadcast %9 : f32 to vector<16x16xf32>
    %175 = arith.mulf %173, %174 : vector<16x16xf32>
    %cst_89 = arith.constant 0.000000e+00 : f32
    %176 = vector.broadcast %cst_89 : f32 to vector<1x16xf32>
    %177 = arith.cmpf ogt, %7, %176 : vector<1x16xf32>
    %cst_90 = arith.constant -1.000000e+09 : f32
    %178 = vector.shape_cast %177 : vector<1x16xi1> to vector<1x16xi1>
    %179 = vector.broadcast %178 : vector<1x16xi1> to vector<16x16xi1>
    %180 = vector.broadcast %cst_90 : f32 to vector<16x16xf32>
    %181 = arith.select %179, %175, %180 : vector<16x16xi1>, vector<16x16xf32>
    %cst_91 = arith.constant dense<0xFF800000> : vector<16xf32>
    %182 = vector.multi_reduction <maximumf>, %181, %cst_91 [1] : vector<16x16xf32> to vector<16xf32>
    %183 = vector.shape_cast %182 : vector<16xf32> to vector<16x1xf32>
    %184 = vector.broadcast %183 : vector<16x1xf32> to vector<16x16xf32>
    %185 = arith.subf %181, %184 : vector<16x16xf32>
    %186 = math.exp %185 : vector<16x16xf32>
    %cst_92 = arith.constant dense<0.000000e+00> : vector<16xf32>
    %187 = vector.multi_reduction <add>, %186, %cst_92 [1] : vector<16x16xf32> to vector<16xf32>
    %188 = vector.shape_cast %187 : vector<16xf32> to vector<16x1xf32>
    %189 = vector.broadcast %188 : vector<16x1xf32> to vector<16x16xf32>
    %190 = arith.divf %186, %189 : vector<16x16xf32>
    %c0_93 = arith.constant 0 : index
    %c0_94 = arith.constant 0 : index
    %c0_95 = arith.constant 0 : index
    %c0_96 = arith.constant 0 : index
    %191 = vector.load %arg16[%c0_93, %c0_94, %c0_95, %c0_96] : memref<1x4x16x16xf32, #tpu.memory_space<vmem>>, vector<1x1x16x16xf32>
    %192 = vector.shape_cast %191 : vector<1x1x16x16xf32> to vector<16x16xf32>
    %193 = vector.shape_cast %190 : vector<16x16xf32> to vector<1x1x16x16xf32>
    tpu.vector_store %arg16[%c0_93, %c0_94, %c0_95, %c0_96], %193 {strides = array<i32>} : memref<1x4x16x16xf32, #tpu.memory_space<vmem>>, vector<1x1x16x16xf32>,
    %194 = vector.extract_strided_slice %170 {offsets = [0, 32], sizes = [16, 32], strides = [1, 1]} : vector<16x128xf32> to vector<16x32xf32>
    %195 = vector.extract_strided_slice %158 {offsets = [0, 32], sizes = [16, 32], strides = [1, 1]} : vector<16x128xf32> to vector<16x32xf32>
    %cst_97 = arith.constant dense<0.000000e+00> : vector<16x16xf32>
    %196 = tpu.matmul %194, %195, %cst_97 {dimension_numbers = #tpu.dot_dimension_numbers<[1], [1], [0], [0], [0, 0, 1, 0], [], []>} : vector<16x32xf32>, vector<16x32xf32>, vector<16x16xf32> -> vector<16x16xf32>
    %197 = vector.broadcast %9 : f32 to vector<16x16xf32>
    %198 = arith.mulf %196, %197 : vector<16x16xf32>
    %cst_98 = arith.constant 0.000000e+00 : f32
    %199 = vector.broadcast %cst_98 : f32 to vector<1x16xf32>
    %200 = arith.cmpf ogt, %7, %199 : vector<1x16xf32>
    %cst_99 = arith.constant -1.000000e+09 : f32
    %201 = vector.shape_cast %200 : vector<1x16xi1> to vector<1x16xi1>
    %202 = vector.broadcast %201 : vector<1x16xi1> to vector<16x16xi1>
    %203 = vector.broadcast %cst_99 : f32 to vector<16x16xf32>
    %204 = arith.select %202, %198, %203 : vector<16x16xi1>, vector<16x16xf32>
    %cst_100 = arith.constant dense<0xFF800000> : vector<16xf32>
    %205 = vector.multi_reduction <maximumf>, %204, %cst_100 [1] : vector<16x16xf32> to vector<16xf32>
    %206 = vector.shape_cast %205 : vector<16xf32> to vector<16x1xf32>
    %207 = vector.broadcast %206 : vector<16x1xf32> to vector<16x16xf32>
    %208 = arith.subf %204, %207 : vector<16x16xf32>
    %209 = math.exp %208 : vector<16x16xf32>
    %cst_101 = arith.constant dense<0.000000e+00> : vector<16xf32>
    %210 = vector.multi_reduction <add>, %209, %cst_101 [1] : vector<16x16xf32> to vector<16xf32>
    %211 = vector.shape_cast %210 : vector<16xf32> to vector<16x1xf32>
    %212 = vector.broadcast %211 : vector<16x1xf32> to vector<16x16xf32>
    %213 = arith.divf %209, %212 : vector<16x16xf32>
    %c0_102 = arith.constant 0 : index
    %c1_103 = arith.constant 1 : index
    %c0_104 = arith.constant 0 : index
    %c0_105 = arith.constant 0 : index
    %214 = vector.load %arg16[%c0_102, %c1_103, %c0_104, %c0_105] : memref<1x4x16x16xf32, #tpu.memory_space<vmem>>, vector<1x1x16x16xf32>
    %215 = vector.shape_cast %214 : vector<1x1x16x16xf32> to vector<16x16xf32>
    %216 = vector.shape_cast %213 : vector<16x16xf32> to vector<1x1x16x16xf32>
    tpu.vector_store %arg16[%c0_102, %c1_103, %c0_104, %c0_105], %216 {strides = array<i32>} : memref<1x4x16x16xf32, #tpu.memory_space<vmem>>, vector<1x1x16x16xf32>,
    %217 = vector.extract_strided_slice %170 {offsets = [0, 64], sizes = [16, 32], strides = [1, 1]} : vector<16x128xf32> to vector<16x32xf32>
    %218 = vector.extract_strided_slice %158 {offsets = [0, 64], sizes = [16, 32], strides = [1, 1]} : vector<16x128xf32> to vector<16x32xf32>
    %cst_106 = arith.constant dense<0.000000e+00> : vector<16x16xf32>
    %219 = tpu.matmul %217, %218, %cst_106 {dimension_numbers = #tpu.dot_dimension_numbers<[1], [1], [0], [0], [0, 0, 1, 0], [], []>} : vector<16x32xf32>, vector<16x32xf32>, vector<16x16xf32> -> vector<16x16xf32>
    %220 = vector.broadcast %9 : f32 to vector<16x16xf32>
    %221 = arith.mulf %219, %220 : vector<16x16xf32>
    %cst_107 = arith.constant 0.000000e+00 : f32
    %222 = vector.broadcast %cst_107 : f32 to vector<1x16xf32>
    %223 = arith.cmpf ogt, %7, %222 : vector<1x16xf32>
    %cst_108 = arith.constant -1.000000e+09 : f32
    %224 = vector.shape_cast %223 : vector<1x16xi1> to vector<1x16xi1>
    %225 = vector.broadcast %224 : vector<1x16xi1> to vector<16x16xi1>
    %226 = vector.broadcast %cst_108 : f32 to vector<16x16xf32>
    %227 = arith.select %225, %221, %226 : vector<16x16xi1>, vector<16x16xf32>
    %cst_109 = arith.constant dense<0xFF800000> : vector<16xf32>
    %228 = vector.multi_reduction <maximumf>, %227, %cst_109 [1] : vector<16x16xf32> to vector<16xf32>
    %229 = vector.shape_cast %228 : vector<16xf32> to vector<16x1xf32>
    %230 = vector.broadcast %229 : vector<16x1xf32> to vector<16x16xf32>
    %231 = arith.subf %227, %230 : vector<16x16xf32>
    %232 = math.exp %231 : vector<16x16xf32>
    %cst_110 = arith.constant dense<0.000000e+00> : vector<16xf32>
    %233 = vector.multi_reduction <add>, %232, %cst_110 [1] : vector<16x16xf32> to vector<16xf32>
    %234 = vector.shape_cast %233 : vector<16xf32> to vector<16x1xf32>
    %235 = vector.broadcast %234 : vector<16x1xf32> to vector<16x16xf32>
    %236 = arith.divf %232, %235 : vector<16x16xf32>
    %c0_111 = arith.constant 0 : index
    %c2_112 = arith.constant 2 : index
    %c0_113 = arith.constant 0 : index
    %c0_114 = arith.constant 0 : index
    %237 = vector.load %arg16[%c0_111, %c2_112, %c0_113, %c0_114] : memref<1x4x16x16xf32, #tpu.memory_space<vmem>>, vector<1x1x16x16xf32>
    %238 = vector.shape_cast %237 : vector<1x1x16x16xf32> to vector<16x16xf32>
    %239 = vector.shape_cast %236 : vector<16x16xf32> to vector<1x1x16x16xf32>
    tpu.vector_store %arg16[%c0_111, %c2_112, %c0_113, %c0_114], %239 {strides = array<i32>} : memref<1x4x16x16xf32, #tpu.memory_space<vmem>>, vector<1x1x16x16xf32>,
    %240 = vector.extract_strided_slice %170 {offsets = [0, 96], sizes = [16, 32], strides = [1, 1]} : vector<16x128xf32> to vector<16x32xf32>
    %241 = vector.extract_strided_slice %158 {offsets = [0, 96], sizes = [16, 32], strides = [1, 1]} : vector<16x128xf32> to vector<16x32xf32>
    %cst_115 = arith.constant dense<0.000000e+00> : vector<16x16xf32>
    %242 = tpu.matmul %240, %241, %cst_115 {dimension_numbers = #tpu.dot_dimension_numbers<[1], [1], [0], [0], [0, 0, 1, 0], [], []>} : vector<16x32xf32>, vector<16x32xf32>, vector<16x16xf32> -> vector<16x16xf32>
    %243 = vector.broadcast %9 : f32 to vector<16x16xf32>
    %244 = arith.mulf %242, %243 : vector<16x16xf32>
    %cst_116 = arith.constant 0.000000e+00 : f32
    %245 = vector.broadcast %cst_116 : f32 to vector<1x16xf32>
    %246 = arith.cmpf ogt, %7, %245 : vector<1x16xf32>
    %cst_117 = arith.constant -1.000000e+09 : f32
    %247 = vector.shape_cast %246 : vector<1x16xi1> to vector<1x16xi1>
    %248 = vector.broadcast %247 : vector<1x16xi1> to vector<16x16xi1>
    %249 = vector.broadcast %cst_117 : f32 to vector<16x16xf32>
    %250 = arith.select %248, %244, %249 : vector<16x16xi1>, vector<16x16xf32>
    %cst_118 = arith.constant dense<0xFF800000> : vector<16xf32>
    %251 = vector.multi_reduction <maximumf>, %250, %cst_118 [1] : vector<16x16xf32> to vector<16xf32>
    %252 = vector.shape_cast %251 : vector<16xf32> to vector<16x1xf32>
    %253 = vector.broadcast %252 : vector<16x1xf32> to vector<16x16xf32>
    %254 = arith.subf %250, %253 : vector<16x16xf32>
    %255 = math.exp %254 : vector<16x16xf32>
    %cst_119 = arith.constant dense<0.000000e+00> : vector<16xf32>
    %256 = vector.multi_reduction <add>, %255, %cst_119 [1] : vector<16x16xf32> to vector<16xf32>
    %257 = vector.shape_cast %256 : vector<16xf32> to vector<16x1xf32>
    %258 = vector.broadcast %257 : vector<16x1xf32> to vector<16x16xf32>
    %259 = arith.divf %255, %258 : vector<16x16xf32>
    %c0_120 = arith.constant 0 : index
    %c3_121 = arith.constant 3 : index
    %c0_122 = arith.constant 0 : index
    %c0_123 = arith.constant 0 : index
    %260 = vector.load %arg16[%c0_120, %c3_121, %c0_122, %c0_123] : memref<1x4x16x16xf32, #tpu.memory_space<vmem>>, vector<1x1x16x16xf32>
    %261 = vector.shape_cast %260 : vector<1x1x16x16xf32> to vector<16x16xf32>
    %262 = vector.shape_cast %259 : vector<16x16xf32> to vector<1x1x16x16xf32>
    tpu.vector_store %arg16[%c0_120, %c3_121, %c0_122, %c0_123], %262 {strides = array<i32>} : memref<1x4x16x16xf32, #tpu.memory_space<vmem>>, vector<1x1x16x16xf32>,
    %c1_124 = arith.constant 1 : index
    %c0_125 = arith.constant 0 : index
    %263 = vector.load %arg13[%c1_124, %c0_125] : memref<3x128xf32, #tpu.memory_space<vmem>>, vector<1x128xf32>
    %c1_126 = arith.constant 1 : index
    %c0_127 = arith.constant 0 : index
    %264 = vector.load %arg14[%c1_126, %c0_127] : memref<3x128xf32, #tpu.memory_space<vmem>>, vector<1x128xf32>
    %cst_128 = arith.constant dense<0.000000e+00> : vector<16xf32>
    %265 = vector.multi_reduction <add>, %152, %cst_128 [1] : vector<16x128xf32> to vector<16xf32>
    %266 = vector.shape_cast %265 : vector<16xf32> to vector<16x1xf32>
    %cst_129 = arith.constant 1.280000e+02 : f32
    %267 = vector.broadcast %cst_129 : f32 to vector<16x1xf32>
    %268 = arith.divf %266, %267 : vector<16x1xf32>
    %269 = vector.broadcast %268 : vector<16x1xf32> to vector<16x128xf32>
    %270 = arith.subf %152, %269 : vector<16x128xf32>
    %271 = vector.broadcast %268 : vector<16x1xf32> to vector<16x128xf32>
    %272 = arith.subf %152, %271 : vector<16x128xf32>
    %273 = arith.mulf %270, %272 : vector<16x128xf32>
    %cst_130 = arith.constant dense<0.000000e+00> : vector<16xf32>
    %274 = vector.multi_reduction <add>, %273, %cst_130 [1] : vector<16x128xf32> to vector<16xf32>
    %275 = vector.shape_cast %274 : vector<16xf32> to vector<16x1xf32>
    %cst_131 = arith.constant 1.270000e+02 : f32
    %276 = vector.broadcast %cst_131 : f32 to vector<16x1xf32>
    %277 = arith.divf %275, %276 : vector<16x1xf32>
    %278 = vector.broadcast %268 : vector<16x1xf32> to vector<16x128xf32>
    %279 = arith.subf %152, %278 : vector<16x128xf32>
    %280 = vector.broadcast %263 : vector<1x128xf32> to vector<16x128xf32>
    %281 = arith.mulf %280, %279 : vector<16x128xf32>
    %282 = math.sqrt %277 : vector<16x1xf32>
    %cst_132 = arith.constant 9.99999997E-7 : f32
    %283 = vector.broadcast %cst_132 : f32 to vector<16x1xf32>
    %284 = arith.addf %282, %283 : vector<16x1xf32>
    %285 = vector.broadcast %284 : vector<16x1xf32> to vector<16x128xf32>
    %286 = arith.divf %281, %285 : vector<16x128xf32>
    %287 = vector.broadcast %264 : vector<1x128xf32> to vector<16x128xf32>
    %288 = arith.addf %286, %287 : vector<16x128xf32>
    %c0_133 = arith.constant 0 : index
    %c0_134 = arith.constant 0 : index
    %c0_135 = arith.constant 0 : index
    %289 = vector.load %arg7[%c0_133, %c0_134, %c0_135] : memref<4x128x128xf32, #tpu.memory_space<vmem>>, vector<1x128x128xf32>
    %290 = vector.shape_cast %289 : vector<1x128x128xf32> to vector<128x128xf32>
    %cst_136 = arith.constant dense<0.000000e+00> : vector<16x128xf32>
    %291 = tpu.matmul %288, %290, %cst_136 {dimension_numbers = #tpu.dot_dimension_numbers<[1], [0], [0], [1], [0, 0, 1, 1], [], []>} : vector<16x128xf32>, vector<128x128xf32>, vector<16x128xf32> -> vector<16x128xf32>
    %c0_137 = arith.constant 0 : index
    %c0_138 = arith.constant 0 : index
    %292 = vector.load %arg8[%c0_137, %c0_138] : memref<4x128xf32, #tpu.memory_space<vmem>>, vector<1x128xf32>
    %293 = vector.broadcast %292 : vector<1x128xf32> to vector<16x128xf32>
    %294 = arith.addf %291, %293 : vector<16x128xf32>
    %c3_139 = arith.constant 3 : index
    %c0_140 = arith.constant 0 : index
    %c0_141 = arith.constant 0 : index
    %295 = vector.load %arg7[%c3_139, %c0_140, %c0_141] : memref<4x128x128xf32, #tpu.memory_space<vmem>>, vector<1x128x128xf32>
    %296 = vector.shape_cast %295 : vector<1x128x128xf32> to vector<128x128xf32>
    %c3_142 = arith.constant 3 : index
    %c0_143 = arith.constant 0 : index
    %297 = vector.load %arg8[%c3_142, %c0_143] : memref<4x128xf32, #tpu.memory_space<vmem>>, vector<1x128xf32>
    %cst_144 = arith.constant 0.000000e+00 : f32
    %298 = vector.broadcast %cst_144 : f32 to vector<16x128xf32>
    %299 = vector.extract_strided_slice %294 {offsets = [0, 0], sizes = [16, 32], strides = [1, 1]} : vector<16x128xf32> to vector<16x32xf32>
    %300 = vector.extract_strided_slice %158 {offsets = [0, 0], sizes = [16, 32], strides = [1, 1]} : vector<16x128xf32> to vector<16x32xf32>
    %301 = vector.extract_strided_slice %164 {offsets = [0, 0], sizes = [16, 32], strides = [1, 1]} : vector<16x128xf32> to vector<16x32xf32>
    %cst_145 = arith.constant dense<0.000000e+00> : vector<16x16xf32>
    %302 = tpu.matmul %299, %300, %cst_145 {dimension_numbers = #tpu.dot_dimension_numbers<[1], [1], [0], [0], [0, 0, 1, 0], [], []>} : vector<16x32xf32>, vector<16x32xf32>, vector<16x16xf32> -> vector<16x16xf32>
    %303 = vector.broadcast %9 : f32 to vector<16x16xf32>
    %304 = arith.mulf %302, %303 : vector<16x16xf32>
    %cst_146 = arith.constant 0.000000e+00 : f32
    %305 = vector.broadcast %cst_146 : f32 to vector<1x16xf32>
    %306 = arith.cmpf ogt, %7, %305 : vector<1x16xf32>
    %cst_147 = arith.constant -1.000000e+09 : f32
    %307 = vector.shape_cast %306 : vector<1x16xi1> to vector<1x16xi1>
    %308 = vector.broadcast %307 : vector<1x16xi1> to vector<16x16xi1>
    %309 = vector.broadcast %cst_147 : f32 to vector<16x16xf32>
    %310 = arith.select %308, %304, %309 : vector<16x16xi1>, vector<16x16xf32>
    %cst_148 = arith.constant dense<0xFF800000> : vector<16xf32>
    %311 = vector.multi_reduction <maximumf>, %310, %cst_148 [1] : vector<16x16xf32> to vector<16xf32>
    %312 = vector.shape_cast %311 : vector<16xf32> to vector<16x1xf32>
    %313 = vector.broadcast %312 : vector<16x1xf32> to vector<16x16xf32>
    %314 = arith.subf %310, %313 : vector<16x16xf32>
    %315 = math.exp %314 : vector<16x16xf32>
    %cst_149 = arith.constant dense<0.000000e+00> : vector<16xf32>
    %316 = vector.multi_reduction <add>, %315, %cst_149 [1] : vector<16x16xf32> to vector<16xf32>
    %317 = vector.shape_cast %316 : vector<16xf32> to vector<16x1xf32>
    %318 = vector.broadcast %317 : vector<16x1xf32> to vector<16x16xf32>
    %319 = arith.divf %315, %318 : vector<16x16xf32>
    %cst_150 = arith.constant dense<0.000000e+00> : vector<16x32xf32>
    %320 = tpu.matmul %319, %301, %cst_150 {dimension_numbers = #tpu.dot_dimension_numbers<[1], [0], [0], [1], [0, 0, 1, 1], [], []>} : vector<16x16xf32>, vector<16x32xf32>, vector<16x32xf32> -> vector<16x32xf32>
    %321 = vector.extract_strided_slice %296 {offsets = [0, 0], sizes = [32, 128], strides = [1, 1]} : vector<128x128xf32> to vector<32x128xf32>
    %cst_151 = arith.constant dense<0.000000e+00> : vector<16x128xf32>
    %322 = tpu.matmul %320, %321, %cst_151 {dimension_numbers = #tpu.dot_dimension_numbers<[1], [0], [0], [1], [0, 0, 1, 1], [], []>} : vector<16x32xf32>, vector<32x128xf32>, vector<16x128xf32> -> vector<16x128xf32>
    %323 = arith.addf %298, %322 : vector<16x128xf32>
    %324 = vector.extract_strided_slice %294 {offsets = [0, 32], sizes = [16, 32], strides = [1, 1]} : vector<16x128xf32> to vector<16x32xf32>
    %325 = vector.extract_strided_slice %158 {offsets = [0, 32], sizes = [16, 32], strides = [1, 1]} : vector<16x128xf32> to vector<16x32xf32>
    %326 = vector.extract_strided_slice %164 {offsets = [0, 32], sizes = [16, 32], strides = [1, 1]} : vector<16x128xf32> to vector<16x32xf32>
    %cst_152 = arith.constant dense<0.000000e+00> : vector<16x16xf32>
    %327 = tpu.matmul %324, %325, %cst_152 {dimension_numbers = #tpu.dot_dimension_numbers<[1], [1], [0], [0], [0, 0, 1, 0], [], []>} : vector<16x32xf32>, vector<16x32xf32>, vector<16x16xf32> -> vector<16x16xf32>
    %328 = vector.broadcast %9 : f32 to vector<16x16xf32>
    %329 = arith.mulf %327, %328 : vector<16x16xf32>
    %cst_153 = arith.constant 0.000000e+00 : f32
    %330 = vector.broadcast %cst_153 : f32 to vector<1x16xf32>
    %331 = arith.cmpf ogt, %7, %330 : vector<1x16xf32>
    %cst_154 = arith.constant -1.000000e+09 : f32
    %332 = vector.shape_cast %331 : vector<1x16xi1> to vector<1x16xi1>
    %333 = vector.broadcast %332 : vector<1x16xi1> to vector<16x16xi1>
    %334 = vector.broadcast %cst_154 : f32 to vector<16x16xf32>
    %335 = arith.select %333, %329, %334 : vector<16x16xi1>, vector<16x16xf32>
    %cst_155 = arith.constant dense<0xFF800000> : vector<16xf32>
    %336 = vector.multi_reduction <maximumf>, %335, %cst_155 [1] : vector<16x16xf32> to vector<16xf32>
    %337 = vector.shape_cast %336 : vector<16xf32> to vector<16x1xf32>
    %338 = vector.broadcast %337 : vector<16x1xf32> to vector<16x16xf32>
    %339 = arith.subf %335, %338 : vector<16x16xf32>
    %340 = math.exp %339 : vector<16x16xf32>
    %cst_156 = arith.constant dense<0.000000e+00> : vector<16xf32>
    %341 = vector.multi_reduction <add>, %340, %cst_156 [1] : vector<16x16xf32> to vector<16xf32>
    %342 = vector.shape_cast %341 : vector<16xf32> to vector<16x1xf32>
    %343 = vector.broadcast %342 : vector<16x1xf32> to vector<16x16xf32>
    %344 = arith.divf %340, %343 : vector<16x16xf32>
    %cst_157 = arith.constant dense<0.000000e+00> : vector<16x32xf32>
    %345 = tpu.matmul %344, %326, %cst_157 {dimension_numbers = #tpu.dot_dimension_numbers<[1], [0], [0], [1], [0, 0, 1, 1], [], []>} : vector<16x16xf32>, vector<16x32xf32>, vector<16x32xf32> -> vector<16x32xf32>
    %346 = vector.extract_strided_slice %296 {offsets = [32, 0], sizes = [32, 128], strides = [1, 1]} : vector<128x128xf32> to vector<32x128xf32>
    %cst_158 = arith.constant dense<0.000000e+00> : vector<16x128xf32>
    %347 = tpu.matmul %345, %346, %cst_158 {dimension_numbers = #tpu.dot_dimension_numbers<[1], [0], [0], [1], [0, 0, 1, 1], [], []>} : vector<16x32xf32>, vector<32x128xf32>, vector<16x128xf32> -> vector<16x128xf32>
    %348 = arith.addf %323, %347 : vector<16x128xf32>
    %349 = vector.extract_strided_slice %294 {offsets = [0, 64], sizes = [16, 32], strides = [1, 1]} : vector<16x128xf32> to vector<16x32xf32>
    %350 = vector.extract_strided_slice %158 {offsets = [0, 64], sizes = [16, 32], strides = [1, 1]} : vector<16x128xf32> to vector<16x32xf32>
    %351 = vector.extract_strided_slice %164 {offsets = [0, 64], sizes = [16, 32], strides = [1, 1]} : vector<16x128xf32> to vector<16x32xf32>
    %cst_159 = arith.constant dense<0.000000e+00> : vector<16x16xf32>
    %352 = tpu.matmul %349, %350, %cst_159 {dimension_numbers = #tpu.dot_dimension_numbers<[1], [1], [0], [0], [0, 0, 1, 0], [], []>} : vector<16x32xf32>, vector<16x32xf32>, vector<16x16xf32> -> vector<16x16xf32>
    %353 = vector.broadcast %9 : f32 to vector<16x16xf32>
    %354 = arith.mulf %352, %353 : vector<16x16xf32>
    %cst_160 = arith.constant 0.000000e+00 : f32
    %355 = vector.broadcast %cst_160 : f32 to vector<1x16xf32>
    %356 = arith.cmpf ogt, %7, %355 : vector<1x16xf32>
    %cst_161 = arith.constant -1.000000e+09 : f32
    %357 = vector.shape_cast %356 : vector<1x16xi1> to vector<1x16xi1>
    %358 = vector.broadcast %357 : vector<1x16xi1> to vector<16x16xi1>
    %359 = vector.broadcast %cst_161 : f32 to vector<16x16xf32>
    %360 = arith.select %358, %354, %359 : vector<16x16xi1>, vector<16x16xf32>
    %cst_162 = arith.constant dense<0xFF800000> : vector<16xf32>
    %361 = vector.multi_reduction <maximumf>, %360, %cst_162 [1] : vector<16x16xf32> to vector<16xf32>
    %362 = vector.shape_cast %361 : vector<16xf32> to vector<16x1xf32>
    %363 = vector.broadcast %362 : vector<16x1xf32> to vector<16x16xf32>
    %364 = arith.subf %360, %363 : vector<16x16xf32>
    %365 = math.exp %364 : vector<16x16xf32>
    %cst_163 = arith.constant dense<0.000000e+00> : vector<16xf32>
    %366 = vector.multi_reduction <add>, %365, %cst_163 [1] : vector<16x16xf32> to vector<16xf32>
    %367 = vector.shape_cast %366 : vector<16xf32> to vector<16x1xf32>
    %368 = vector.broadcast %367 : vector<16x1xf32> to vector<16x16xf32>
    %369 = arith.divf %365, %368 : vector<16x16xf32>
    %cst_164 = arith.constant dense<0.000000e+00> : vector<16x32xf32>
    %370 = tpu.matmul %369, %351, %cst_164 {dimension_numbers = #tpu.dot_dimension_numbers<[1], [0], [0], [1], [0, 0, 1, 1], [], []>} : vector<16x16xf32>, vector<16x32xf32>, vector<16x32xf32> -> vector<16x32xf32>
    %371 = vector.extract_strided_slice %296 {offsets = [64, 0], sizes = [32, 128], strides = [1, 1]} : vector<128x128xf32> to vector<32x128xf32>
    %cst_165 = arith.constant dense<0.000000e+00> : vector<16x128xf32>
    %372 = tpu.matmul %370, %371, %cst_165 {dimension_numbers = #tpu.dot_dimension_numbers<[1], [0], [0], [1], [0, 0, 1, 1], [], []>} : vector<16x32xf32>, vector<32x128xf32>, vector<16x128xf32> -> vector<16x128xf32>
    %373 = arith.addf %348, %372 : vector<16x128xf32>
    %374 = vector.extract_strided_slice %294 {offsets = [0, 96], sizes = [16, 32], strides = [1, 1]} : vector<16x128xf32> to vector<16x32xf32>
    %375 = vector.extract_strided_slice %158 {offsets = [0, 96], sizes = [16, 32], strides = [1, 1]} : vector<16x128xf32> to vector<16x32xf32>
    %376 = vector.extract_strided_slice %164 {offsets = [0, 96], sizes = [16, 32], strides = [1, 1]} : vector<16x128xf32> to vector<16x32xf32>
    %cst_166 = arith.constant dense<0.000000e+00> : vector<16x16xf32>
    %377 = tpu.matmul %374, %375, %cst_166 {dimension_numbers = #tpu.dot_dimension_numbers<[1], [1], [0], [0], [0, 0, 1, 0], [], []>} : vector<16x32xf32>, vector<16x32xf32>, vector<16x16xf32> -> vector<16x16xf32>
    %378 = vector.broadcast %9 : f32 to vector<16x16xf32>
    %379 = arith.mulf %377, %378 : vector<16x16xf32>
    %cst_167 = arith.constant 0.000000e+00 : f32
    %380 = vector.broadcast %cst_167 : f32 to vector<1x16xf32>
    %381 = arith.cmpf ogt, %7, %380 : vector<1x16xf32>
    %cst_168 = arith.constant -1.000000e+09 : f32
    %382 = vector.shape_cast %381 : vector<1x16xi1> to vector<1x16xi1>
    %383 = vector.broadcast %382 : vector<1x16xi1> to vector<16x16xi1>
    %384 = vector.broadcast %cst_168 : f32 to vector<16x16xf32>
    %385 = arith.select %383, %379, %384 : vector<16x16xi1>, vector<16x16xf32>
    %cst_169 = arith.constant dense<0xFF800000> : vector<16xf32>
    %386 = vector.multi_reduction <maximumf>, %385, %cst_169 [1] : vector<16x16xf32> to vector<16xf32>
    %387 = vector.shape_cast %386 : vector<16xf32> to vector<16x1xf32>
    %388 = vector.broadcast %387 : vector<16x1xf32> to vector<16x16xf32>
    %389 = arith.subf %385, %388 : vector<16x16xf32>
    %390 = math.exp %389 : vector<16x16xf32>
    %cst_170 = arith.constant dense<0.000000e+00> : vector<16xf32>
    %391 = vector.multi_reduction <add>, %390, %cst_170 [1] : vector<16x16xf32> to vector<16xf32>
    %392 = vector.shape_cast %391 : vector<16xf32> to vector<16x1xf32>
    %393 = vector.broadcast %392 : vector<16x1xf32> to vector<16x16xf32>
    %394 = arith.divf %390, %393 : vector<16x16xf32>
    %cst_171 = arith.constant dense<0.000000e+00> : vector<16x32xf32>
    %395 = tpu.matmul %394, %376, %cst_171 {dimension_numbers = #tpu.dot_dimension_numbers<[1], [0], [0], [1], [0, 0, 1, 1], [], []>} : vector<16x16xf32>, vector<16x32xf32>, vector<16x32xf32> -> vector<16x32xf32>
    %396 = vector.extract_strided_slice %296 {offsets = [96, 0], sizes = [32, 128], strides = [1, 1]} : vector<128x128xf32> to vector<32x128xf32>
    %cst_172 = arith.constant dense<0.000000e+00> : vector<16x128xf32>
    %397 = tpu.matmul %395, %396, %cst_172 {dimension_numbers = #tpu.dot_dimension_numbers<[1], [0], [0], [1], [0, 0, 1, 1], [], []>} : vector<16x32xf32>, vector<32x128xf32>, vector<16x128xf32> -> vector<16x128xf32>
    %398 = arith.addf %373, %397 : vector<16x128xf32>
    %399 = vector.broadcast %297 : vector<1x128xf32> to vector<16x128xf32>
    %400 = arith.addf %398, %399 : vector<16x128xf32>
    %401 = arith.addf %152, %400 : vector<16x128xf32>
    %c2_173 = arith.constant 2 : index
    %c0_174 = arith.constant 0 : index
    %402 = vector.load %arg13[%c2_173, %c0_174] : memref<3x128xf32, #tpu.memory_space<vmem>>, vector<1x128xf32>
    %c2_175 = arith.constant 2 : index
    %c0_176 = arith.constant 0 : index
    %403 = vector.load %arg14[%c2_175, %c0_176] : memref<3x128xf32, #tpu.memory_space<vmem>>, vector<1x128xf32>
    %cst_177 = arith.constant dense<0.000000e+00> : vector<16xf32>
    %404 = vector.multi_reduction <add>, %401, %cst_177 [1] : vector<16x128xf32> to vector<16xf32>
    %405 = vector.shape_cast %404 : vector<16xf32> to vector<16x1xf32>
    %cst_178 = arith.constant 1.280000e+02 : f32
    %406 = vector.broadcast %cst_178 : f32 to vector<16x1xf32>
    %407 = arith.divf %405, %406 : vector<16x1xf32>
    %408 = vector.broadcast %407 : vector<16x1xf32> to vector<16x128xf32>
    %409 = arith.subf %401, %408 : vector<16x128xf32>
    %410 = vector.broadcast %407 : vector<16x1xf32> to vector<16x128xf32>
    %411 = arith.subf %401, %410 : vector<16x128xf32>
    %412 = arith.mulf %409, %411 : vector<16x128xf32>
    %cst_179 = arith.constant dense<0.000000e+00> : vector<16xf32>
    %413 = vector.multi_reduction <add>, %412, %cst_179 [1] : vector<16x128xf32> to vector<16xf32>
    %414 = vector.shape_cast %413 : vector<16xf32> to vector<16x1xf32>
    %cst_180 = arith.constant 1.270000e+02 : f32
    %415 = vector.broadcast %cst_180 : f32 to vector<16x1xf32>
    %416 = arith.divf %414, %415 : vector<16x1xf32>
    %417 = vector.broadcast %407 : vector<16x1xf32> to vector<16x128xf32>
    %418 = arith.subf %401, %417 : vector<16x128xf32>
    %419 = vector.broadcast %402 : vector<1x128xf32> to vector<16x128xf32>
    %420 = arith.mulf %419, %418 : vector<16x128xf32>
    %421 = math.sqrt %416 : vector<16x1xf32>
    %cst_181 = arith.constant 9.99999997E-7 : f32
    %422 = vector.broadcast %cst_181 : f32 to vector<16x1xf32>
    %423 = arith.addf %421, %422 : vector<16x1xf32>
    %424 = vector.broadcast %423 : vector<16x1xf32> to vector<16x128xf32>
    %425 = arith.divf %420, %424 : vector<16x128xf32>
    %426 = vector.broadcast %403 : vector<1x128xf32> to vector<16x128xf32>
    %427 = arith.addf %425, %426 : vector<16x128xf32>
    %c0_182 = arith.constant 0 : index
    %c0_183 = arith.constant 0 : index
    %428 = vector.load %arg9[%c0_182, %c0_183] : memref<128x256xf32, #tpu.memory_space<vmem>>, vector<128x256xf32>
    %cst_184 = arith.constant dense<0.000000e+00> : vector<16x256xf32>
    %429 = tpu.matmul %427, %428, %cst_184 {dimension_numbers = #tpu.dot_dimension_numbers<[1], [0], [0], [1], [0, 0, 1, 1], [], []>} : vector<16x128xf32>, vector<128x256xf32>, vector<16x256xf32> -> vector<16x256xf32>
    %c0_185 = arith.constant 0 : index
    %c0_186 = arith.constant 0 : index
    %430 = vector.load %arg10[%c0_185, %c0_186] : memref<1x256xf32, #tpu.memory_space<vmem>>, vector<1x256xf32>
    %431 = vector.broadcast %430 : vector<1x256xf32> to vector<16x256xf32>
    %432 = arith.addf %429, %431 : vector<16x256xf32>
    %cst_187 = arith.constant 0.000000e+00 : f32
    %433 = vector.broadcast %cst_187 : f32 to vector<16x256xf32>
    %434 = arith.maximumf %432, %433 : vector<16x256xf32>
    %c0_188 = arith.constant 0 : index
    %c0_189 = arith.constant 0 : index
    %435 = vector.load %arg11[%c0_188, %c0_189] : memref<256x128xf32, #tpu.memory_space<vmem>>, vector<256x128xf32>
    %cst_190 = arith.constant dense<0.000000e+00> : vector<16x128xf32>
    %436 = tpu.matmul %434, %435, %cst_190 {dimension_numbers = #tpu.dot_dimension_numbers<[1], [0], [0], [1], [0, 0, 1, 1], [], []>} : vector<16x256xf32>, vector<256x128xf32>, vector<16x128xf32> -> vector<16x128xf32>
    %c0_191 = arith.constant 0 : index
    %c0_192 = arith.constant 0 : index
    %437 = vector.load %arg12[%c0_191, %c0_192] : memref<1x128xf32, #tpu.memory_space<vmem>>, vector<1x128xf32>
    %438 = vector.broadcast %437 : vector<1x128xf32> to vector<16x128xf32>
    %439 = arith.addf %436, %438 : vector<16x128xf32>
    %440 = arith.addf %401, %439 : vector<16x128xf32>
    %c0_193 = arith.constant 0 : index
    %c0_194 = arith.constant 0 : index
    %c0_195 = arith.constant 0 : index
    %441 = vector.load %arg15[%c0_193, %c0_194, %c0_195] : memref<1x16x128xf32, #tpu.memory_space<vmem>>, vector<1x16x128xf32>
    %442 = vector.shape_cast %441 : vector<1x16x128xf32> to vector<16x128xf32>
    %443 = vector.shape_cast %440 : vector<16x128xf32> to vector<1x16x128xf32>
    tpu.vector_store %arg15[%c0_193, %c0_194, %c0_195], %443 {strides = array<i32>} : memref<1x16x128xf32, #tpu.memory_space<vmem>>, vector<1x16x128xf32>,
    return
  }
  func.func @transform_0(%arg0: i32) -> (i32, i32, i32) {
    %c0_i32 = arith.constant 0 : i32
    %c0_i32_0 = arith.constant 0 : i32
    %c0_i32_1 = arith.constant 0 : i32
    return %arg0, %c0_i32, %c0_i32_0 : i32, i32, i32
  }
  func.func @transform_1(%arg0: i32) -> (i32, i32, i32) {
    %c0_i32 = arith.constant 0 : i32
    %c0_i32_0 = arith.constant 0 : i32
    %c0_i32_1 = arith.constant 0 : i32
    return %arg0, %c0_i32, %c0_i32_0 : i32, i32, i32
  }
  func.func @transform_2(%arg0: i32) -> (i32, i32, i32) {
    %c0_i32 = arith.constant 0 : i32
    %c0_i32_0 = arith.constant 0 : i32
    %c0_i32_1 = arith.constant 0 : i32
    %c0_i32_2 = arith.constant 0 : i32
    return %c0_i32, %c0_i32_0, %c0_i32_1 : i32, i32, i32
  }
  func.func @transform_3(%arg0: i32) -> (i32, i32, i32) {
    %c0_i32 = arith.constant 0 : i32
    %c0_i32_0 = arith.constant 0 : i32
    %c0_i32_1 = arith.constant 0 : i32
    return %arg0, %c0_i32, %c0_i32_0 : i32, i32, i32
  }
  func.func @transform_4(%arg0: i32) -> (i32, i32, i32) {
    %c0_i32 = arith.constant 0 : i32
    %c0_i32_0 = arith.constant 0 : i32
    %c0_i32_1 = arith.constant 0 : i32
    %c0_i32_2 = arith.constant 0 : i32
    return %c0_i32, %c0_i32_0, %c0_i32_1 : i32, i32, i32
  }
  func.func @transform_5(%arg0: i32) -> (i32, i32) {
    %c0_i32 = arith.constant 0 : i32
    %c0_i32_0 = arith.constant 0 : i32
    %c0_i32_1 = arith.constant 0 : i32
    return %c0_i32, %c0_i32_0 : i32, i32
  }
  func.func @transform_6(%arg0: i32) -> (i32, i32, i32) {
    %c0_i32 = arith.constant 0 : i32
    %c0_i32_0 = arith.constant 0 : i32
    %c0_i32_1 = arith.constant 0 : i32
    %c0_i32_2 = arith.constant 0 : i32
    return %c0_i32, %c0_i32_0, %c0_i32_1 : i32, i32, i32
  }
  func.func @transform_7(%arg0: i32) -> (i32, i32) {
    %c0_i32 = arith.constant 0 : i32
    %c0_i32_0 = arith.constant 0 : i32
    %c0_i32_1 = arith.constant 0 : i32
    return %c0_i32, %c0_i32_0 : i32, i32
  }
  func.func @transform_8(%arg0: i32) -> (i32, i32) {
    %c0_i32 = arith.constant 0 : i32
    %c0_i32_0 = arith.constant 0 : i32
    %c0_i32_1 = arith.constant 0 : i32
    return %c0_i32, %c0_i32_0 : i32, i32
  }
  func.func @transform_9(%arg0: i32) -> (i32, i32) {
    %c0_i32 = arith.constant 0 : i32
    %c0_i32_0 = arith.constant 0 : i32
    %c0_i32_1 = arith.constant 0 : i32
    return %c0_i32, %c0_i32_0 : i32, i32
  }
  func.func @transform_10(%arg0: i32) -> (i32, i32) {
    %c0_i32 = arith.constant 0 : i32
    %c0_i32_0 = arith.constant 0 : i32
    %c0_i32_1 = arith.constant 0 : i32
    return %c0_i32, %c0_i32_0 : i32, i32
  }
  func.func @transform_11(%arg0: i32) -> (i32, i32) {
    %c0_i32 = arith.constant 0 : i32
    %c0_i32_0 = arith.constant 0 : i32
    %c0_i32_1 = arith.constant 0 : i32
    return %c0_i32, %c0_i32_0 : i32, i32
  }
  func.func @transform_12(%arg0: i32) -> (i32, i32) {
    %c0_i32 = arith.constant 0 : i32
    %c0_i32_0 = arith.constant 0 : i32
    %c0_i32_1 = arith.constant 0 : i32
    return %c0_i32, %c0_i32_0 : i32, i32
  }
  func.func @transform_13(%arg0: i32) -> (i32, i32) {
    %c0_i32 = arith.constant 0 : i32
    %c0_i32_0 = arith.constant 0 : i32
    %c0_i32_1 = arith.constant 0 : i32
    return %c0_i32, %c0_i32_0 : i32, i32
  }
  func.func @transform_14(%arg0: i32) -> (i32, i32, i32) {
    %c0_i32 = arith.constant 0 : i32
    %c0_i32_0 = arith.constant 0 : i32
    %c0_i32_1 = arith.constant 0 : i32
    return %arg0, %c0_i32, %c0_i32_0 : i32, i32, i32
  }
  func.func @transform_15(%arg0: i32) -> (i32, i32, i32, i32) {
    %c0_i32 = arith.constant 0 : i32
    %c0_i32_0 = arith.constant 0 : i32
    %c0_i32_1 = arith.constant 0 : i32
    %c0_i32_2 = arith.constant 0 : i32
    return %arg0, %c0_i32, %c0_i32_0, %c0_i32_1 : i32, i32, i32, i32
  }
}

</mosaic_0001>

<llo_original>
// kernel: tpu_custom_call.1
$region0: #{tpu_custom_call.1}
  #allocation0 [shape = 'u32[]', space=smem, size = 0x4, offset = 0x4, fixed_abs, tag = 'smem constant byte address 0x4 - core index']
  #allocation1 [shape = 'u32[144,128]{1,0:T(1,128)}', space=vmem, size = 0x12000, scoped, tag = 'internal scratch']
  %s0 = inlined_call_operand.hbm [shape: f32[2,16,128], index: 0, kind: input, shape index: {}]
  %s1 = inlined_call_operand.hbm [shape: f32[2,16,128], index: 1, kind: input, shape index: {}]
  %s2 = inlined_call_operand.hbm [shape: f32[1,16,16], index: 2, kind: input, shape index: {}]
  %s3 = inlined_call_operand.vmem [shape: f32[2,1,16], index: 3, kind: input, shape index: {}]
  %s4 = inlined_call_operand.hbm [shape: f32[4,128,128], index: 4, kind: input, shape index: {}]
  %s5 = inlined_call_operand.vmem [shape: f32[4,128], index: 5, kind: input, shape index: {}]
  %s6 = inlined_call_operand.hbm [shape: f32[4,128,128], index: 6, kind: input, shape index: {}]
  %s7 = inlined_call_operand.vmem [shape: f32[4,128], index: 7, kind: input, shape index: {}]
  %s8 = inlined_call_operand.hbm [shape: f32[128,256], index: 8, kind: input, shape index: {}]
  %s9 = inlined_call_operand.vmem [shape: f32[1,256], index: 9, kind: input, shape index: {}]
  %s10 = inlined_call_operand.hbm [shape: f32[256,128], index: 10, kind: input, shape index: {}]
  %s11 = inlined_call_operand.vmem [shape: f32[1,128], index: 11, kind: input, shape index: {}]
  %s12 = inlined_call_operand.vmem [shape: f32[3,128], index: 12, kind: input, shape index: {}]
  %s13 = inlined_call_operand.vmem [shape: f32[3,128], index: 13, kind: input, shape index: {}]
  %s14 = inlined_call_operand.hbm [shape: f32[2,16,128], index: 14, kind: output, shape index: {0}]
  %s15 = inlined_call_operand.hbm [shape: f32[2,4,16,16], index: 15, kind: output, shape index: {1}]
  %16 = xla_tuple %s14, %s15
  %s17 = sld [smem:[#allocation0]]
  $region125: #{tpu_custom_call.1} parent=0
    _
  %s19 = ssub.s32 1, %s17
  %s20 = scalar_select 0, %s19, %s17
  $region1: #{tpu_custom_call.1} parent=0
    #allocation2 [shape = 'u8[16384]{0}', space=vmem, size = 0x4000, scoped, tag = 'input window, operand 0']
    #allocation3 [shape = 's32[2]{0}', space=sflag, size = 0x8, scoped, tag = 'scoped memory for tpu_custom_call.1']
    #allocation4 [shape = 's32[2]{0}', space=sflag, size = 0x8, scoped, tag = 'scoped memory for tpu_custom_call.1']
    #allocation5 [shape = 'u8[16384]{0}', space=vmem, size = 0x4000, scoped, tag = 'input window, operand 1']
    #allocation6 [shape = 's32[2]{0}', space=sflag, size = 0x8, scoped, tag = 'scoped memory for tpu_custom_call.1']
    #allocation7 [shape = 'u8[8192]{0}', space=vmem, size = 0x2000, scoped, tag = 'input window, operand 2, single buffered']
    #allocation8 [shape = 'u8[262144]{0}', space=vmem, size = 0x40000, scoped, tag = 'input window, operand 4, single buffered']
    #allocation9 [shape = 's32[1]{0}', space=sflag, size = 0x4, scoped, tag = 'scoped memory for tpu_custom_call.1']
    #allocation10 [shape = 'u8[262144]{0}', space=vmem, size = 0x40000, scoped, tag = 'input window, operand 6, single buffered']
    #allocation11 [shape = 'u8[131072]{0}', space=vmem, size = 0x20000, scoped, tag = 'input window, operand 8, single buffered']
    #allocation12 [shape = 's32[1]{0}', space=sflag, size = 0x4, scoped, tag = 'scoped memory for tpu_custom_call.1']
    #allocation13 [shape = 'u8[131072]{0}', space=vmem, size = 0x20000, scoped, tag = 'input window, operand 10, single buffered']
    #allocation14 [shape = 'u8[16384]{0}', space=vmem, size = 0x4000, scoped, tag = 'output window, operand 0']
    #allocation15 [shape = 'u8[65536]{0}', space=vmem, size = 0x10000, scoped, tag = 'output window, operand 1']
    #allocation16 [shape = 's32[2]{0}', space=sflag, size = 0x8, scoped, tag = 'scoped memory for tpu_custom_call.1']
    %21 = vsyncpa [#allocation3], 0
    %s22 = scalar_lea.sflag [#allocation3], 1
    %23 = vsyncpa %s22, 0
    %24 = vsyncpa [#allocation6], 0
    %s25 = scalar_lea.sflag [#allocation6], 1
    %26 = vsyncpa %s25, 0
    %27 = vsyncpa [#allocation9], 0
    %28 = vsyncpa [#allocation12], 0
    %29 = vsyncpa [#allocation4], 0
    %s30 = scalar_lea.sflag [#allocation4], 1
    %31 = vsyncpa %s30, 0
    %32 = vsyncpa [#allocation16], 0
    %s33 = scalar_lea.sflag [#allocation16], 1
    %34 = vsyncpa %s33, 0
    loop: start=0, step=1, limit=4
    $region2: #{tpu_custom_call.1} parent=1 // loop_pre_header
      _
    $region3: #{tpu_custom_call.1} parent=1 // loop_header
      %s36 = sphi 0, %s40
      %p37 = scmp.ge.s32.totalorder %s36, 4
      %s46 = sphi 0, %s48
      %s49 = sphi 0, %s46
      %s50 = sphi 0, %s49
      %s66 = sphi 0, %s50
      %s72 = sphi 0, %s74
      %s75 = sphi 0, %s72
      %s76 = sphi 0, %s75
      %s92 = sphi 0, %s76
      %s96 = sphi 0, %s96
      %s98 = sphi 0, %s96
      %s99 = sphi 0, %s98
      %s113 = sphi 0, %s99
      %s119 = sphi 0, %s121
      %s122 = sphi 0, %s119
      %s123 = sphi 0, %s122
      %s139 = sphi 0, %s123
      %s143 = sphi 0, %s143
      %s145 = sphi 0, %s143
      %s146 = sphi 0, %s145
      %s160 = sphi 0, %s146
      %s164 = sphi 0, %s164
      %s166 = sphi 0, %s164
      %s167 = sphi 0, %s166
      %s181 = sphi 0, %s167
      %s185 = sphi 0, %s185
      %s187 = sphi 0, %s185
      %s188 = sphi 0, %s187
      %s202 = sphi 0, %s188
      %s206 = sphi 0, %s206
      %s208 = sphi 0, %s206
      %s209 = sphi 0, %s208
      %s223 = sphi 0, %s209
      %s227 = sphi 0, %s227
      %s229 = sphi 0, %s227
      %s230 = sphi 0, %s229
      %s244 = sphi 0, %s230
      %s248 = sphi 0, %s248
      %s250 = sphi 0, %s248
      %s251 = sphi 0, %s250
      %s265 = sphi 0, %s251
      %s269 = sphi 0, %s269
      %s271 = sphi 0, %s269
      %s272 = sphi 0, %s271
      %s286 = sphi 0, %s272
      %s290 = sphi 0, %s290
      %s292 = sphi 0, %s290
      %s293 = sphi 0, %s292
      %s307 = sphi 0, %s293
      %s311 = sphi 0, %s311
      %s313 = sphi 0, %s311
      %s314 = sphi 0, %s313
      %s328 = sphi 0, %s314
      %s332 = sphi 0, %s332
      %s334 = sphi 0, %s332
      %s335 = sphi 0, %s334
      %s349 = sphi 0, %s335
      %s355 = sphi 0, %s357
      %s358 = sphi 0, %s355
      %s359 = sphi 0, %s358
      %s375 = sphi 0, %s359
      %s381 = sphi 0, %s383
      %s384 = sphi 0, %s381
      %s385 = sphi 0, %s384
      %s401 = sphi 0, %s385
    $region4: #{tpu_custom_call.1} parent=1 // loop_header_branch
      %39 = sbr.rel (%p37) target = $region8
    $region5: #{tpu_custom_call.1} parent=1 // loop_body
      %s41 = ssub.s32 %s36, 1
      %s42 = ssub.s32 %s36, 2
      %s43 = sadd.s32 %s36, 1
      %s44 = ssub.s32 %s36, %s43
      %p45 = scmp.eq.s32.totalorder %s44, 0
      %s47 = sadd.s32 %s46, 1
      %s48 = scalar_select %p45, %s46, %s47
      %p51 = pneg %p45
      %p52 = scmp.eq.s32.totalorder %s36, 1
      %p53 = por %p51, %p52
      %p54 = scmp.ne.s32.totalorder %s46, %s49
      %p55 = scmp.eq.s32.totalorder %s36, 0
      %p56 = por %p54, %p55
      %p57 = scmp.ne.s32.totalorder %s46, %s49
      %p58 = scmp.eq.s32.totalorder %s41, 1
      %p59 = por %p57, %p58
      %p60 = scmp.ne.s32.totalorder %s49, %s50
      %p61 = scmp.eq.s32.totalorder %s41, 0
      %p62 = por %p60, %p61
      %p63 = scmp.ne.s32.totalorder %s49, %s50
      %p64 = scmp.eq.s32.totalorder %s42, 1
      %p65 = por %p63, %p64
      %p67 = scmp.ne.s32.totalorder %s50, %s66
      %p68 = scmp.eq.s32.totalorder %s42, 0
      %p69 = por %p67, %p68
      %s70 = ssub.s32 %s36, %s43
      %p71 = scmp.eq.s32.totalorder %s70, 0
      %s73 = sadd.s32 %s72, 1
      %s74 = scalar_select %p71, %s72, %s73
      %p77 = pneg %p71
      %p78 = scmp.eq.s32.totalorder %s36, 1
      %p79 = por %p77, %p78
      %p80 = scmp.ne.s32.totalorder %s72, %s75
      %p81 = scmp.eq.s32.totalorder %s36, 0
      %p82 = por %p80, %p81
      %p83 = scmp.ne.s32.totalorder %s72, %s75
      %p84 = scmp.eq.s32.totalorder %s41, 1
      %p85 = por %p83, %p84
      %p86 = scmp.ne.s32.totalorder %s75, %s76
      %p87 = scmp.eq.s32.totalorder %s41, 0
      %p88 = por %p86, %p87
      %p89 = scmp.ne.s32.totalorder %s75, %s76
      %p90 = scmp.eq.s32.totalorder %s42, 1
      %p91 = por %p89, %p90
      %p93 = scmp.ne.s32.totalorder %s76, %s92
      %p94 = scmp.eq.s32.totalorder %s42, 0
      %p95 = por %p93, %p94
      %s97 = sadd.s32 %s96, 1
      %p100 = scmp.eq.s32.totalorder %s36, 1
      %p101 = scmp.ne.s32.totalorder %s96, %s98
      %p102 = scmp.eq.s32.totalorder %s36, 0
      %p103 = por %p101, %p102
      %p104 = scmp.ne.s32.totalorder %s96, %s98
      %p105 = scmp.eq.s32.totalorder %s41, 1
      %p106 = por %p104, %p105
      %p107 = scmp.ne.s32.totalorder %s98, %s99
      %p108 = scmp.eq.s32.totalorder %s41, 0
      %p109 = por %p107, %p108
      %p110 = scmp.ne.s32.totalorder %s98, %s99
      %p111 = scmp.eq.s32.totalorder %s42, 1
      %p112 = por %p110, %p111
      %p114 = scmp.ne.s32.totalorder %s99, %s113
      %p115 = scmp.eq.s32.totalorder %s42, 0
      %p116 = por %p114, %p115
      %s117 = ssub.s32 %s36, %s43
      %p118 = scmp.eq.s32.totalorder %s117, 0
      %s120 = sadd.s32 %s119, 1
      %s121 = scalar_select %p118, %s119, %s120
      %p124 = pneg %p118
      %p125 = scmp.eq.s32.totalorder %s36, 1
      %p126 = por %p124, %p125
      %p127 = scmp.ne.s32.totalorder %s119, %s122
      %p128 = scmp.eq.s32.totalorder %s36, 0
      %p129 = por %p127, %p128
      %p130 = scmp.ne.s32.totalorder %s119, %s122
      %p131 = scmp.eq.s32.totalorder %s41, 1
      %p132 = por %p130, %p131
      %p133 = scmp.ne.s32.totalorder %s122, %s123
      %p134 = scmp.eq.s32.totalorder %s41, 0
      %p135 = por %p133, %p134
      %p136 = scmp.ne.s32.totalorder %s122, %s123
      %p137 = scmp.eq.s32.totalorder %s42, 1
      %p138 = por %p136, %p137
      %p140 = scmp.ne.s32.totalorder %s123, %s139
      %p141 = scmp.eq.s32.totalorder %s42, 0
      %p142 = por %p140, %p141
      %s144 = sadd.s32 %s143, 1
      %p147 = scmp.eq.s32.totalorder %s36, 1
      %p148 = scmp.ne.s32.totalorder %s143, %s145
      %p149 = scmp.eq.s32.totalorder %s36, 0
      %p150 = por %p148, %p149
      %p151 = scmp.ne.s32.totalorder %s143, %s145
      %p152 = scmp.eq.s32.totalorder %s41, 1
      %p153 = por %p151, %p152
      %p154 = scmp.ne.s32.totalorder %s145, %s146
      %p155 = scmp.eq.s32.totalorder %s41, 0
      %p156 = por %p154, %p155
      %p157 = scmp.ne.s32.totalorder %s145, %s146
      %p158 = scmp.eq.s32.totalorder %s42, 1
      %p159 = por %p157, %p158
      %p161 = scmp.ne.s32.totalorder %s146, %s160
      %p162 = scmp.eq.s32.totalorder %s42, 0
      %p163 = por %p161, %p162
      %s165 = sadd.s32 %s164, 1
      %p168 = scmp.eq.s32.totalorder %s36, 1
      %p169 = scmp.ne.s32.totalorder %s164, %s166
      %p170 = scmp.eq.s32.totalorder %s36, 0
      %p171 = por %p169, %p170
      %p172 = scmp.ne.s32.totalorder %s164, %s166
      %p173 = scmp.eq.s32.totalorder %s41, 1
      %p174 = por %p172, %p173
      %p175 = scmp.ne.s32.totalorder %s166, %s167
      %p176 = scmp.eq.s32.totalorder %s41, 0
      %p177 = por %p175, %p176
      %p178 = scmp.ne.s32.totalorder %s166, %s167
      %p179 = scmp.eq.s32.totalorder %s42, 1
      %p180 = por %p178, %p179
      %p182 = scmp.ne.s32.totalorder %s167, %s181
      %p183 = scmp.eq.s32.totalorder %s42, 0
      %p184 = por %p182, %p183
      %s186 = sadd.s32 %s185, 1
      %p189 = scmp.eq.s32.totalorder %s36, 1
      %p190 = scmp.ne.s32.totalorder %s185, %s187
      %p191 = scmp.eq.s32.totalorder %s36, 0
      %p192 = por %p190, %p191
      %p193 = scmp.ne.s32.totalorder %s185, %s187
      %p194 = scmp.eq.s32.totalorder %s41, 1
      %p195 = por %p193, %p194
      %p196 = scmp.ne.s32.totalorder %s187, %s188
      %p197 = scmp.eq.s32.totalorder %s41, 0
      %p198 = por %p196, %p197
      %p199 = scmp.ne.s32.totalorder %s187, %s188
      %p200 = scmp.eq.s32.totalorder %s42, 1
      %p201 = por %p199, %p200
      %p203 = scmp.ne.s32.totalorder %s188, %s202
      %p204 = scmp.eq.s32.totalorder %s42, 0
      %p205 = por %p203, %p204
      %s207 = sadd.s32 %s206, 1
      %p210 = scmp.eq.s32.totalorder %s36, 1
      %p211 = scmp.ne.s32.totalorder %s206, %s208
      %p212 = scmp.eq.s32.totalorder %s36, 0
      %p213 = por %p211, %p212
      %p214 = scmp.ne.s32.totalorder %s206, %s208
      %p215 = scmp.eq.s32.totalorder %s41, 1
      %p216 = por %p214, %p215
      %p217 = scmp.ne.s32.totalorder %s208, %s209
      %p218 = scmp.eq.s32.totalorder %s41, 0
      %p219 = por %p217, %p218
      %p220 = scmp.ne.s32.totalorder %s208, %s209
      %p221 = scmp.eq.s32.totalorder %s42, 1
      %p222 = por %p220, %p221
      %p224 = scmp.ne.s32.totalorder %s209, %s223
      %p225 = scmp.eq.s32.totalorder %s42, 0
      %p226 = por %p224, %p225
      %s228 = sadd.s32 %s227, 1
      %p231 = scmp.eq.s32.totalorder %s36, 1
      %p232 = scmp.ne.s32.totalorder %s227, %s229
      %p233 = scmp.eq.s32.totalorder %s36, 0
      %p234 = por %p232, %p233
      %p235 = scmp.ne.s32.totalorder %s227, %s229
      %p236 = scmp.eq.s32.totalorder %s41, 1
      %p237 = por %p235, %p236
      %p238 = scmp.ne.s32.totalorder %s229, %s230
      %p239 = scmp.eq.s32.totalorder %s41, 0
      %p240 = por %p238, %p239
      %p241 = scmp.ne.s32.totalorder %s229, %s230
      %p242 = scmp.eq.s32.totalorder %s42, 1
      %p243 = por %p241, %p242
      %p245 = scmp.ne.s32.totalorder %s230, %s244
      %p246 = scmp.eq.s32.totalorder %s42, 0
      %p247 = por %p245, %p246
      %s249 = sadd.s32 %s248, 1
      %p252 = scmp.eq.s32.totalorder %s36, 1
      %p253 = scmp.ne.s32.totalorder %s248, %s250
      %p254 = scmp.eq.s32.totalorder %s36, 0
      %p255 = por %p253, %p254
      %p256 = scmp.ne.s32.totalorder %s248, %s250
      %p257 = scmp.eq.s32.totalorder %s41, 1
      %p258 = por %p256, %p257
      %p259 = scmp.ne.s32.totalorder %s250, %s251
      %p260 = scmp.eq.s32.totalorder %s41, 0
      %p261 = por %p259, %p260
      %p262 = scmp.ne.s32.totalorder %s250, %s251
      %p263 = scmp.eq.s32.totalorder %s42, 1
      %p264 = por %p262, %p263
      %p266 = scmp.ne.s32.totalorder %s251, %s265
      %p267 = scmp.eq.s32.totalorder %s42, 0
      %p268 = por %p266, %p267
      %s270 = sadd.s32 %s269, 1
      %p273 = scmp.eq.s32.totalorder %s36, 1
      %p274 = scmp.ne.s32.totalorder %s269, %s271
      %p275 = scmp.eq.s32.totalorder %s36, 0
      %p276 = por %p274, %p275
      %p277 = scmp.ne.s32.totalorder %s269, %s271
      %p278 = scmp.eq.s32.totalorder %s41, 1
      %p279 = por %p277, %p278
      %p280 = scmp.ne.s32.totalorder %s271, %s272
      %p281 = scmp.eq.s32.totalorder %s41, 0
      %p282 = por %p280, %p281
      %p283 = scmp.ne.s32.totalorder %s271, %s272
      %p284 = scmp.eq.s32.totalorder %s42, 1
      %p285 = por %p283, %p284
      %p287 = scmp.ne.s32.totalorder %s272, %s286
      %p288 = scmp.eq.s32.totalorder %s42, 0
      %p289 = por %p287, %p288
      %s291 = sadd.s32 %s290, 1
      %p294 = scmp.eq.s32.totalorder %s36, 1
      %p295 = scmp.ne.s32.totalorder %s290, %s292
      %p296 = scmp.eq.s32.totalorder %s36, 0
      %p297 = por %p295, %p296
      %p298 = scmp.ne.s32.totalorder %s290, %s292
      %p299 = scmp.eq.s32.totalorder %s41, 1
      %p300 = por %p298, %p299
      %p301 = scmp.ne.s32.totalorder %s292, %s293
      %p302 = scmp.eq.s32.totalorder %s41, 0
      %p303 = por %p301, %p302
      %p304 = scmp.ne.s32.totalorder %s292, %s293
      %p305 = scmp.eq.s32.totalorder %s42, 1
      %p306 = por %p304, %p305
      %p308 = scmp.ne.s32.totalorder %s293, %s307
      %p309 = scmp.eq.s32.totalorder %s42, 0
      %p310 = por %p308, %p309
      %s312 = sadd.s32 %s311, 1
      %p315 = scmp.eq.s32.totalorder %s36, 1
      %p316 = scmp.ne.s32.totalorder %s311, %s313
      %p317 = scmp.eq.s32.totalorder %s36, 0
      %p318 = por %p316, %p317
      %p319 = scmp.ne.s32.totalorder %s311, %s313
      %p320 = scmp.eq.s32.totalorder %s41, 1
      %p321 = por %p319, %p320
      %p322 = scmp.ne.s32.totalorder %s313, %s314
      %p323 = scmp.eq.s32.totalorder %s41, 0
      %p324 = por %p322, %p323
      %p325 = scmp.ne.s32.totalorder %s313, %s314
      %p326 = scmp.eq.s32.totalorder %s42, 1
      %p327 = por %p325, %p326
      %p329 = scmp.ne.s32.totalorder %s314, %s328
      %p330 = scmp.eq.s32.totalorder %s42, 0
      %p331 = por %p329, %p330
      %s333 = sadd.s32 %s332, 1
      %p336 = scmp.eq.s32.totalorder %s36, 1
      %p337 = scmp.ne.s32.totalorder %s332, %s334
      %p338 = scmp.eq.s32.totalorder %s36, 0
      %p339 = por %p337, %p338
      %p340 = scmp.ne.s32.totalorder %s332, %s334
      %p341 = scmp.eq.s32.totalorder %s41, 1
      %p342 = por %p340, %p341
      %p343 = scmp.ne.s32.totalorder %s334, %s335
      %p344 = scmp.eq.s32.totalorder %s41, 0
      %p345 = por %p343, %p344
      %p346 = scmp.ne.s32.totalorder %s334, %s335
      %p347 = scmp.eq.s32.totalorder %s42, 1
      %p348 = por %p346, %p347
      %p350 = scmp.ne.s32.totalorder %s335, %s349
      %p351 = scmp.eq.s32.totalorder %s42, 0
      %p352 = por %p350, %p351
      %s353 = ssub.s32 %s36, %s43
      %p354 = scmp.eq.s32.totalorder %s353, 0
      %s356 = sadd.s32 %s355, 1
      %s357 = scalar_select %p354, %s355, %s356
      %p360 = pneg %p354
      %p361 = scmp.eq.s32.totalorder %s36, 1
      %p362 = por %p360, %p361
      %p363 = scmp.ne.s32.totalorder %s355, %s358
      %p364 = scmp.eq.s32.totalorder %s36, 0
      %p365 = por %p363, %p364
      %p366 = scmp.ne.s32.totalorder %s355, %s358
      %p367 = scmp.eq.s32.totalorder %s41, 1
      %p368 = por %p366, %p367
      %p369 = scmp.ne.s32.totalorder %s358, %s359
      %p370 = scmp.eq.s32.totalorder %s41, 0
      %p371 = por %p369, %p370
      %p372 = scmp.ne.s32.totalorder %s358, %s359
      %p373 = scmp.eq.s32.totalorder %s42, 1
      %p374 = por %p372, %p373
      %p376 = scmp.ne.s32.totalorder %s359, %s375
      %p377 = scmp.eq.s32.totalorder %s42, 0
      %p378 = por %p376, %p377
      %s379 = ssub.s32 %s36, %s43
      %p380 = scmp.eq.s32.totalorder %s379, 0
      %s382 = sadd.s32 %s381, 1
      %s383 = scalar_select %p380, %s381, %s382
      %p386 = pneg %p380
      %p387 = scmp.eq.s32.totalorder %s36, 1
      %p388 = por %p386, %p387
      %p389 = scmp.ne.s32.totalorder %s381, %s384
      %p390 = scmp.eq.s32.totalorder %s36, 0
      %p391 = por %p389, %p390
      %p392 = scmp.ne.s32.totalorder %s381, %s384
      %p393 = scmp.eq.s32.totalorder %s41, 1
      %p394 = por %p392, %p393
      %p395 = scmp.ne.s32.totalorder %s384, %s385
      %p396 = scmp.eq.s32.totalorder %s41, 0
      %p397 = por %p395, %p396
      %p398 = scmp.ne.s32.totalorder %s384, %s385
      %p399 = scmp.eq.s32.totalorder %s42, 1
      %p400 = por %p398, %p399
      %p402 = scmp.ne.s32.totalorder %s385, %s401
      %p403 = scmp.eq.s32.totalorder %s42, 0
      %p404 = por %p402, %p403
      %p405 = scmp.le.s32.totalorder 1, %s36
      %p406 = scmp.lt.s32.totalorder %s36, 3
      %p407 = pnand %p405, %p406
      %p408 = pneg %p407
      // Predicated region
      $region9: #{tpu_custom_call.1} parent=5 // pred_check
        _
      $region10: #{tpu_custom_call.1} parent=5 // pred_check_branch
        %410 = sbr.rel (%p407) target = $region12
      $region11: #{tpu_custom_call.1} parent=5 // pred_region
        %s411 = ssub.s32 %s36, 1
        // Predicated region
        $region13: #{tpu_custom_call.1} parent=11 // pred_check
          %p412 = pneg %p109
        $region14: #{tpu_custom_call.1} parent=11 // pred_check_branch
          %414 = sbr.rel (%p412) target = $region16
        $region15: #{tpu_custom_call.1} parent=11 // pred_region
          %s416 = ssub.s32 256, 256
          %417 = vsyncadd [#allocation6], %s416
          %s418 = sshll.u32 [#allocation7], 4
          %s419 = int_to_ptr.vmem [resolvable:$true] %s418
          %424 = dma.hbm_to_vmem [thread:$0]  %s2, 256, %s419, [#allocation6], 128, 128, 8
        $region16: #{tpu_custom_call.1} parent=11 // pred_fallthru
          _
        // Predicated region
        $region17: #{tpu_custom_call.1} parent=11 // pred_check
          %p425 = pneg %p156
        $region18: #{tpu_custom_call.1} parent=11 // pred_check_branch
          %427 = sbr.rel (%p425) target = $region20
        $region19: #{tpu_custom_call.1} parent=11 // pred_region
          %s429 = ssub.s32 8192, 8192
          %430 = vsyncadd [#allocation9], %s429
          %s431 = sshll.u32 [#allocation8], 4
          %s432 = int_to_ptr.vmem [resolvable:$true] %s431
          %437 = dma.hbm_to_vmem [thread:$0]  %s4, 8192, %s432, [#allocation9], 128, 128, 8
        $region20: #{tpu_custom_call.1} parent=11 // pred_fallthru
          _
        // Predicated region
        $region21: #{tpu_custom_call.1} parent=11 // pred_check
          %p438 = pneg %p177
        $region22: #{tpu_custom_call.1} parent=11 // pred_check_branch
          %440 = sbr.rel (%p438) target = $region24
        $region23: #{tpu_custom_call.1} parent=11 // pred_region
          _
        $region24: #{tpu_custom_call.1} parent=11 // pred_fallthru
          _
        // Predicated region
        $region25: #{tpu_custom_call.1} parent=11 // pred_check
          %p441 = pneg %p198
        $region26: #{tpu_custom_call.1} parent=11 // pred_check_branch
          %443 = sbr.rel (%p441) target = $region28
        $region27: #{tpu_custom_call.1} parent=11 // pred_region
          %s445 = ssub.s32 8192, 8192
          %446 = vsyncadd [#allocation9], %s445
          %s447 = sshll.u32 [#allocation10], 4
          %s448 = int_to_ptr.vmem [resolvable:$true] %s447
          %453 = dma.hbm_to_vmem [thread:$0]  %s6, 8192, %s448, [#allocation9], 128, 128, 8
        $region28: #{tpu_custom_call.1} parent=11 // pred_fallthru
          _
        // Predicated region
        $region29: #{tpu_custom_call.1} parent=11 // pred_check
          %p454 = pneg %p219
        $region30: #{tpu_custom_call.1} parent=11 // pred_check_branch
          %456 = sbr.rel (%p454) target = $region32
        $region31: #{tpu_custom_call.1} parent=11 // pred_region
          _
        $region32: #{tpu_custom_call.1} parent=11 // pred_fallthru
          _
        // Predicated region
        $region33: #{tpu_custom_call.1} parent=11 // pred_check
          %p457 = pneg %p240
        $region34: #{tpu_custom_call.1} parent=11 // pred_check_branch
          %459 = sbr.rel (%p457) target = $region36
        $region35: #{tpu_custom_call.1} parent=11 // pred_region
          %s461 = ssub.s32 4096, 4096
          %462 = vsyncadd [#allocation12], %s461
          %s463 = sshll.u32 [#allocation11], 4
          %s464 = int_to_ptr.vmem [resolvable:$true] %s463
          %469 = dma.hbm_to_vmem [thread:$0]  %s8, 4096, %s464, [#allocation12], 256, 256, 16
        $region36: #{tpu_custom_call.1} parent=11 // pred_fallthru
          _
        // Predicated region
        $region37: #{tpu_custom_call.1} parent=11 // pred_check
          %p470 = pneg %p261
        $region38: #{tpu_custom_call.1} parent=11 // pred_check_branch
          %472 = sbr.rel (%p470) target = $region40
        $region39: #{tpu_custom_call.1} parent=11 // pred_region
          _
        $region40: #{tpu_custom_call.1} parent=11 // pred_fallthru
          _
        // Predicated region
        $region41: #{tpu_custom_call.1} parent=11 // pred_check
          %p473 = pneg %p282
        $region42: #{tpu_custom_call.1} parent=11 // pred_check_branch
          %475 = sbr.rel (%p473) target = $region44
        $region43: #{tpu_custom_call.1} parent=11 // pred_region
          %s477 = ssub.s32 4096, 4096
          %478 = vsyncadd [#allocation12], %s477
          %s479 = sshll.u32 [#allocation13], 4
          %s480 = int_to_ptr.vmem [resolvable:$true] %s479
          %485 = dma.hbm_to_vmem [thread:$0]  %s10, 4096, %s480, [#allocation12], 128, 128, 8
        $region44: #{tpu_custom_call.1} parent=11 // pred_fallthru
          _
        // Predicated region
        $region45: #{tpu_custom_call.1} parent=11 // pred_check
          %p486 = pneg %p303
        $region46: #{tpu_custom_call.1} parent=11 // pred_check_branch
          %488 = sbr.rel (%p486) target = $region48
        $region47: #{tpu_custom_call.1} parent=11 // pred_region
          _
        $region48: #{tpu_custom_call.1} parent=11 // pred_fallthru
          _
        // Predicated region
        $region49: #{tpu_custom_call.1} parent=11 // pred_check
          %p489 = pneg %p324
        $region50: #{tpu_custom_call.1} parent=11 // pred_check_branch
          %491 = sbr.rel (%p489) target = $region52
        $region51: #{tpu_custom_call.1} parent=11 // pred_region
          _
        $region52: #{tpu_custom_call.1} parent=11 // pred_fallthru
          _
        // Predicated region
        $region53: #{tpu_custom_call.1} parent=11 // pred_check
          %p492 = pneg %p345
        $region54: #{tpu_custom_call.1} parent=11 // pred_check_branch
          %494 = sbr.rel (%p492) target = $region56
        $region55: #{tpu_custom_call.1} parent=11 // pred_region
          _
        $region56: #{tpu_custom_call.1} parent=11 // pred_fallthru
          _
      $region12: #{tpu_custom_call.1} parent=5 // pred_fallthru
        _
      %p495 = scmp.lt.s32.totalorder %s36, 2
      // Predicated region
      $region57: #{tpu_custom_call.1} parent=5 // pred_check
        %p496 = pneg %p495
      $region58: #{tpu_custom_call.1} parent=5 // pred_check_branch
        %498 = sbr.rel (%p496) target = $region60
      $region59: #{tpu_custom_call.1} parent=5 // pred_region
        // Predicated region
        $region61: #{tpu_custom_call.1} parent=59 // pred_check
          %p499 = pneg %p56
        $region62: #{tpu_custom_call.1} parent=59 // pred_check_branch
          %501 = sbr.rel (%p499) target = $region64
        $region63: #{tpu_custom_call.1} parent=59 // pred_region
          %s502 = sand.u32 %s46, 1
          %s503 = scalar_lea.sflag [#allocation3], %s502
          %s504 = sand.u32 %s46, 1
          %s505 = smul.addr %s504, 16
          %s506 = scalar_lea.vmem [#allocation2], %s505
          %s508 = ssub.s32 256, 256
          %509 = vsyncadd %s503, %s508
          %s510 = smul.addr %s36, 2
          %s511 = smul.addr %s510, 128
          %s512 = scalar_lea.hbm %s0, %s511
          %s513 = sshll.u32 %s506, 4
          %s514 = int_to_ptr.vmem [resolvable:$true] %s513
          %519 = dma.hbm_to_vmem [thread:$0]  %s512, 256, %s514, %s503, 128, 128, 8
        $region64: #{tpu_custom_call.1} parent=59 // pred_fallthru
          _
        // Predicated region
        $region65: #{tpu_custom_call.1} parent=59 // pred_check
          %p520 = pneg %p82
        $region66: #{tpu_custom_call.1} parent=59 // pred_check_branch
          %522 = sbr.rel (%p520) target = $region68
        $region67: #{tpu_custom_call.1} parent=59 // pred_region
          %s523 = sand.u32 %s36, 1
          %s524 = scalar_lea.sflag [#allocation6], %s523
          %s525 = sand.u32 %s72, 1
          %s526 = smul.addr %s525, 16
          %s527 = scalar_lea.vmem [#allocation5], %s526
          %s529 = ssub.s32 256, 256
          %530 = vsyncadd %s524, %s529
          %s531 = smul.addr %s36, 2
          %s532 = smul.addr %s531, 128
          %s533 = scalar_lea.hbm %s1, %s532
          %s534 = sshll.u32 %s527, 4
          %s535 = int_to_ptr.vmem [resolvable:$true] %s534
          %540 = dma.hbm_to_vmem [thread:$0]  %s533, 256, %s535, %s524, 128, 128, 8
        $region68: #{tpu_custom_call.1} parent=59 // pred_fallthru
          _
        // Predicated region
        $region69: #{tpu_custom_call.1} parent=59 // pred_check
          %p541 = pneg %p129
        $region70: #{tpu_custom_call.1} parent=59 // pred_check_branch
          %543 = sbr.rel (%p541) target = $region72
        $region71: #{tpu_custom_call.1} parent=59 // pred_region
          %p544 = scmp.lt.s32.totalorder %s36, 1
          %s545 = scalar_select %p544, %s36, 1
          %s546 = scalar_lea.vmem %s3, %s545
        $region72: #{tpu_custom_call.1} parent=59 // pred_fallthru
          _
      $region60: #{tpu_custom_call.1} parent=5 // pred_fallthru
        _
      %p547 = scmp.le.s32.totalorder 1, %s36
      %p548 = scmp.lt.s32.totalorder %s36, 3
      %p549 = pnand %p547, %p548
      %p550 = pneg %p549
      // Predicated region
      $region73: #{tpu_custom_call.1} parent=5 // pred_check
        _
      $region74: #{tpu_custom_call.1} parent=5 // pred_check_branch
        %552 = sbr.rel (%p549) target = $region76
      $region75: #{tpu_custom_call.1} parent=5 // pred_region
        %s553 = ssub.s32 %s36, 1
        %s554 = sand.u32 %s49, 1
        %s555 = scalar_lea.sflag [#allocation3], %s554
        %s556 = sand.u32 %s49, 1
        %s557 = smul.addr %s556, 16
        %s558 = scalar_lea.vmem [#allocation2], %s557
        // Predicated region
        $region77: #{tpu_custom_call.1} parent=75 // pred_check
          %p559 = pneg %p62
        $region78: #{tpu_custom_call.1} parent=75 // pred_check_branch
          %561 = sbr.rel (%p559) target = $region80
        $region79: #{tpu_custom_call.1} parent=75 // pred_region
          %562 = dma.done %s555, 256
        $region80: #{tpu_custom_call.1} parent=75 // pred_fallthru
          _
        %s563 = sand.u32 %s41, 1
        %s564 = scalar_lea.sflag [#allocation6], %s563
        %s565 = sand.u32 %s75, 1
        %s566 = smul.addr %s565, 16
        %s567 = scalar_lea.vmem [#allocation5], %s566
        // Predicated region
        $region81: #{tpu_custom_call.1} parent=75 // pred_check
          %p568 = pneg %p88
        $region82: #{tpu_custom_call.1} parent=75 // pred_check_branch
          %570 = sbr.rel (%p568) target = $region84
        $region83: #{tpu_custom_call.1} parent=75 // pred_region
          %571 = dma.done %s564, 256
        $region84: #{tpu_custom_call.1} parent=75 // pred_fallthru
          _
        // Predicated region
        $region85: #{tpu_custom_call.1} parent=75 // pred_check
          %p572 = pneg %p109
        $region86: #{tpu_custom_call.1} parent=75 // pred_check_branch
          %574 = sbr.rel (%p572) target = $region88
        $region87: #{tpu_custom_call.1} parent=75 // pred_region
          %575 = dma.done [#allocation6], 256
        $region88: #{tpu_custom_call.1} parent=75 // pred_fallthru
          _
        // Predicated region
        $region89: #{tpu_custom_call.1} parent=75 // pred_check
          %p576 = pneg %p156
        $region90: #{tpu_custom_call.1} parent=75 // pred_check_branch
          %578 = sbr.rel (%p576) target = $region92
        $region91: #{tpu_custom_call.1} parent=75 // pred_region
          %579 = dma.done [#allocation9], 8192
        $region92: #{tpu_custom_call.1} parent=75 // pred_fallthru
          _
        // Predicated region
        $region93: #{tpu_custom_call.1} parent=75 // pred_check
          %p580 = pneg %p198
        $region94: #{tpu_custom_call.1} parent=75 // pred_check_branch
          %582 = sbr.rel (%p580) target = $region96
        $region95: #{tpu_custom_call.1} parent=75 // pred_region
          %583 = dma.done [#allocation9], 8192
        $region96: #{tpu_custom_call.1} parent=75 // pred_fallthru
          _
        // Predicated region
        $region97: #{tpu_custom_call.1} parent=75 // pred_check
          %p584 = pneg %p240
        $region98: #{tpu_custom_call.1} parent=75 // pred_check_branch
          %586 = sbr.rel (%p584) target = $region100
        $region99: #{tpu_custom_call.1} parent=75 // pred_region
          %587 = dma.done [#allocation12], 4096
        $region100: #{tpu_custom_call.1} parent=75 // pred_fallthru
          _
        // Predicated region
        $region101: #{tpu_custom_call.1} parent=75 // pred_check
          %p588 = pneg %p282
        $region102: #{tpu_custom_call.1} parent=75 // pred_check_branch
          %590 = sbr.rel (%p588) target = $region104
        $region103: #{tpu_custom_call.1} parent=75 // pred_region
          %591 = dma.done [#allocation12], 4096
        $region104: #{tpu_custom_call.1} parent=75 // pred_fallthru
          _
        %s592 = sand.u32 %s49, 1
        %s593 = scalar_lea.sflag [#allocation3], %s592
        %s594 = sand.u32 %s49, 1
        %s595 = smul.addr %s594, 16
        %s596 = scalar_lea.vmem [#allocation2], %s595
        %p597 = pneg %p62
        %p598 = pneg %p59
        %s599 = sand.u32 %s41, 1
        %s600 = scalar_lea.sflag [#allocation6], %s599
        %s601 = sand.u32 %s75, 1
        %s602 = smul.addr %s601, 16
        %s603 = scalar_lea.vmem [#allocation5], %s602
        %p604 = pneg %p88
        %p605 = pneg %p85
        %p606 = pneg %p109
        %p607 = pneg %p106
        %p608 = scmp.lt.s32.totalorder %s41, 1
        %s609 = scalar_select %p608, %s41, 1
        %s610 = scalar_lea.vmem %s3, %s609
        %p611 = pneg %p135
        %p612 = pneg %p132
        %p613 = pneg %p156
        %p614 = pneg %p153
        %p615 = pneg %p177
        %p616 = pneg %p174
        %p617 = pneg %p198
        %p618 = pneg %p195
        %p619 = pneg %p219
        %p620 = pneg %p216
        %p621 = pneg %p240
        %p622 = pneg %p237
        %p623 = pneg %p261
        %p624 = pneg %p258
        %p625 = pneg %p282
        %p626 = pneg %p279
        %p627 = pneg %p303
        %p628 = pneg %p300
        %p629 = pneg %p324
        %p630 = pneg %p321
        %p631 = pneg %p345
        %p632 = pneg %p342
        %p633 = pneg %p371
        %p634 = pneg %p368
        %s635 = sand.u32 %s358, 1
        %s636 = scalar_lea.sflag [#allocation4], %s635
        %s637 = sand.u32 %s358, 1
        %s638 = smul.addr %s637, 16
        %s639 = scalar_lea.vmem [#allocation14], %s638
        %p640 = pneg %p397
        %p641 = pneg %p394
        %s642 = sand.u32 %s384, 1
        %s643 = scalar_lea.sflag [#allocation16], %s642
        %s644 = sand.u32 %s384, 1
        %s645 = smul.addr %s644, 64
        %s646 = scalar_lea.vmem [#allocation15], %s645
        %p647 = scmp.lt.s32.totalorder %s41, 1
        %s648 = scalar_select %p647, %s41, 1
        %s649 = scalar_lea.vmem %s3, %s648
        %v650 = vld [vmem:[%s558] sm:$0xff]
        %v651 = vld [vmem:[%s558 + $0x8] sm:$0xff]
        %v652 = vld [vmem:[%s567] sm:$0xff]
        %v653 = vld [vmem:[%s567 + $0x8] sm:$0xff]
        %v654 = vld [vmem:[#allocation7] sm:$0xff]
        %v655 = vld [vmem:[#allocation7 + $0x8] sm:$0xff]
        %v656 = vld [vmem:[%s649] sm:$0x1]
        %v657 = vld [vmem:[%s12] sm:$0x1]
        %v658 = vld [vmem:[%s13] sm:$0x1]
        %659 = vadd.xlane.f32.xlu0 %v650
        %v660 = vpop.xlane.xlu0 %659
        %661 = vadd.xlane.f32.xlu0 %v651
        %v662 = vpop.xlane.xlu0 %661
        %v663 = vrcp.pop 128.0
        %v664 = vmul.f32 %v660, %v663
        %v665 = vmul.f32 %v662, %v663
        %v666 = vsub.f32 %v650, %v664
        %v667 = vsub.f32 %v651, %v665
        %v668 = vmul.f32 %v666, %v666
        %v669 = vmul.f32 %v667, %v667
        %670 = vadd.xlane.f32.xlu0 %v668
        %v671 = vpop.xlane.xlu0 %670
        %672 = vadd.xlane.f32.xlu0 %v669
        %v673 = vpop.xlane.xlu0 %672
        %v674 = vrcp.pop 127.0
        %v675 = vmul.f32 %v671, %v674
        %v676 = vmul.f32 %v673, %v674
        %v677 = vlaneseq
        %v678 = vshrl.u32 %v677, 7
        %v679 = vsub.s32 0, %v678
        %v680 = vrot.slane %v657, %v679
        %v681 = vmul.f32 %v680, %v666
        %v682 = vmul.f32 %v680, %v667
        %v683 = vrsqrt.pop %v675
        %v684 = vmul.f32 %v675, %v683
        %vm685 = vcmp.eq.f32.partialorder %v675, inf
        %v686 = vsel %vm685, %v675, %v684
        %vm687 = vcmp.eq.f32.partialorder %v675, 0.0
        %v688 = vand.u32 %v675, 2147483648
        %v689 = vsel %vm687, %v688, %v686
        %v690 = vrsqrt.pop %v676
        %v691 = vmul.f32 %v676, %v690
        %vm692 = vcmp.eq.f32.partialorder %v676, inf
        %v693 = vsel %vm692, %v676, %v691
        %vm694 = vcmp.eq.f32.partialorder %v676, 0.0
        %v695 = vand.u32 %v676, 2147483648
        %v696 = vsel %vm694, %v695, %v693
        %v697 = vadd.f32 %v689, 1e-06
        %v698 = vadd.f32 %v696, 1e-06
        %v699 = vrcp.pop %v697
        %v700 = vmul.f32 %v681, %v699
        %v701 = vrcp.pop %v698
        %v702 = vmul.f32 %v682, %v701
        %v703 = vlaneseq
        %v704 = vshrl.u32 %v703, 7
        %v705 = vsub.s32 0, %v704
        %v706 = vrot.slane %v658, %v705
        %v707 = vadd.f32 %v700, %v706
        %v708 = vadd.f32 %v702, %v706
        %v709 = vld [vmem:[#allocation8] sm:$0xff]
        %v710 = vld [vmem:[#allocation8 + $0x8] sm:$0xff]
        %v711 = vld [vmem:[#allocation8 + $0x10] sm:$0xff]
        %v712 = vld [vmem:[#allocation8 + $0x18] sm:$0xff]
        %v713 = vld [vmem:[#allocation8 + $0x20] sm:$0xff]
        %v714 = vld [vmem:[#allocation8 + $0x28] sm:$0xff]
        %v715 = vld [vmem:[#allocation8 + $0x30] sm:$0xff]
        %v716 = vld [vmem:[#allocation8 + $0x38] sm:$0xff]
        %v717 = vld [vmem:[#allocation8 + $0x40] sm:$0xff]
        %v718 = vld [vmem:[#allocation8 + $0x48] sm:$0xff]
        %v719 = vld [vmem:[#allocation8 + $0x50] sm:$0xff]
        %v720 = vld [vmem:[#allocation8 + $0x58] sm:$0xff]
        %v721 = vld [vmem:[#allocation8 + $0x60] sm:$0xff]
        %v722 = vld [vmem:[#allocation8 + $0x68] sm:$0xff]
        %v723 = vld [vmem:[#allocation8 + $0x70] sm:$0xff]
        %v724 = vld [vmem:[#allocation8 + $0x78] sm:$0xff]
        %v725 = vld [vmem:[%s5] sm:$0x1]
        %v726 = vlaneseq
        %v727 = vshrl.u32 %v726, 7
        %v728 = vsub.s32 0, %v727
        %v729 = vrot.slane %v725, %v728
        %730 = vmatprep.subr.mxu0 0.0
        %731 = vmatpush1.msra.mxu0 %v709
        %732 = vmatprep.subr.mxu0 0.0
        %733 = vmatpush1.msra.mxu0 %v710
        %734 = vmatprep.subr.mxu0 0.0
        %735 = vmatpush1.msra.mxu0 %v711
        %736 = vmatprep.subr.mxu0 0.0
        %737 = vmatpush1.msra.mxu0 %v712
        %738 = vmatprep.subr.mxu0 0.0
        %739 = vmatpush1.msra.mxu0 %v713
        %740 = vmatprep.subr.mxu0 0.0
        %741 = vmatpush1.msra.mxu0 %v714
        %742 = vmatprep.subr.mxu0 0.0
        %743 = vmatpush1.msra.mxu0 %v715
        %744 = vmatprep.subr.mxu0 0.0
        %745 = vmatpush1.msra.mxu0 %v716
        %746 = vmatprep.subr.mxu0 0.0
        %747 = vmatpush1.msra.mxu0 %v717
        %748 = vmatprep.subr.mxu0 0.0
        %749 = vmatpush1.msra.mxu0 %v718
        %750 = vmatprep.subr.mxu0 0.0
        %751 = vmatpush1.msra.mxu0 %v719
        %752 = vmatprep.subr.mxu0 0.0
        %753 = vmatpush1.msra.mxu0 %v720
        %754 = vmatprep.subr.mxu0 0.0
        %755 = vmatpush1.msra.mxu0 %v721
        %756 = vmatprep.subr.mxu0 0.0
        %757 = vmatpush1.msra.mxu0 %v722
        %758 = vmatprep.subr.mxu0 0.0
        %759 = vmatpush1.msra.mxu0 %v723
        %760 = vmatprep.subr.mxu0 0.0
        %761 = vmatpush1.msra.mxu0 %v724
        %762 = vmatprep.subr.mxu0 0.0
        %763 = vmatpush1.msra.mxu0 0.0
        %764 = vmatprep.subr.mxu0 0.0
        %765 = vmatpush1.msra.mxu0 0.0
        %766 = vmatprep.subr.mxu0 0.0
        %767 = vmatpush1.msra.mxu0 0.0
        %768 = vmatprep.subr.mxu0 0.0
        %769 = vmatpush1.msra.mxu0 0.0
        %770 = vmatprep.subr.mxu0 0.0
        %771 = vmatpush1.msra.mxu0 0.0
        %772 = vmatprep.subr.mxu0 0.0
        %773 = vmatpush1.msra.mxu0 0.0
        %774 = vmatprep.subr.mxu0 0.0
        %775 = vmatpush1.msra.mxu0 0.0
        %776 = vmatprep.subr.mxu0 0.0
        %777 = vmatpush1.msra.mxu0 0.0
        %778 = vmatprep.subr.mxu0 0.0
        %779 = vmatpush1.msra.mxu0 0.0
        %780 = vmatprep.subr.mxu0 0.0
        %781 = vmatpush1.msra.mxu0 0.0
        %782 = vmatprep.subr.mxu0 0.0
        %783 = vmatpush1.msra.mxu0 0.0
        %784 = vmatprep.subr.mxu0 0.0
        %785 = vmatpush1.msra.mxu0 0.0
        %786 = vmatprep.subr.mxu0 0.0
        %787 = vmatpush1.msra.mxu0 0.0
        %788 = vmatprep.subr.mxu0 0.0
        %789 = vmatpush1.msra.mxu0 0.0
        %790 = vmatprep.subr.mxu0 0.0
        %791 = vmatpush1.msra.mxu0 0.0
        %792 = vmatprep.subr.mxu0 0.0
        %793 = vmatpush1.msra.mxu0 0.0
        %794 = vmatprep.mubr.f32.mxu0 0.0
        %795 = vmatmul.mubr.f32.gmra.mrb[0].mxu0 %v707
        %v796 = vpop.f32.mrb[0].mxu0
        %v797 = vadd.f32 %v729, %v796
        %v798 = vpop.f32.mrb[0].mxu0
        %799 = vmatprep.mubr.f32.mxu0 0.0
        %800 = vmatmul.mubr.f32.gmra.mrb[0].mxu0 %v708
        %v801 = vpop.f32.mrb[0].mxu0
        %v802 = vadd.f32 %v729, %v801
        %v803 = vpop.f32.mrb[0].mxu0
        %804 = vdwg.mxu0
        %s805 = scalar_lea.vmem [#allocation8], 128
        %v806 = vld [vmem:[%s805] sm:$0xff]
        %v807 = vld [vmem:[%s805 + $0x8] sm:$0xff]
        %v808 = vld [vmem:[%s805 + $0x10] sm:$0xff]
        %v809 = vld [vmem:[%s805 + $0x18] sm:$0xff]
        %v810 = vld [vmem:[%s805 + $0x20] sm:$0xff]
        %v811 = vld [vmem:[%s805 + $0x28] sm:$0xff]
        %v812 = vld [vmem:[%s805 + $0x30] sm:$0xff]
        %v813 = vld [vmem:[%s805 + $0x38] sm:$0xff]
        %v814 = vld [vmem:[%s805 + $0x40] sm:$0xff]
        %v815 = vld [vmem:[%s805 + $0x48] sm:$0xff]
        %v816 = vld [vmem:[%s805 + $0x50] sm:$0xff]
        %v817 = vld [vmem:[%s805 + $0x58] sm:$0xff]
        %v818 = vld [vmem:[%s805 + $0x60] sm:$0xff]
        %v819 = vld [vmem:[%s805 + $0x68] sm:$0xff]
        %v820 = vld [vmem:[%s805 + $0x70] sm:$0xff]
        %v821 = vld [vmem:[%s805 + $0x78] sm:$0xff]
        %v822 = vld [vmem:[%s5 + $0x1] sm:$0x1]
        %v823 = vlaneseq
        %v824 = vshrl.u32 %v823, 7
        %v825 = vsub.s32 0, %v824
        %v826 = vrot.slane %v822, %v825
        %827 = vmatprep.subr.mxu0 0.0
        %828 = vmatpush1.msra.mxu0 %v806
        %829 = vmatprep.subr.mxu0 0.0
        %830 = vmatpush1.msra.mxu0 %v807
        %831 = vmatprep.subr.mxu0 0.0
        %832 = vmatpush1.msra.mxu0 %v808
        %833 = vmatprep.subr.mxu0 0.0
        %834 = vmatpush1.msra.mxu0 %v809
        %835 = vmatprep.subr.mxu0 0.0
        %836 = vmatpush1.msra.mxu0 %v810
        %837 = vmatprep.subr.mxu0 0.0
        %838 = vmatpush1.msra.mxu0 %v811
        %839 = vmatprep.subr.mxu0 0.0
        %840 = vmatpush1.msra.mxu0 %v812
        %841 = vmatprep.subr.mxu0 0.0
        %842 = vmatpush1.msra.mxu0 %v813
        %843 = vmatprep.subr.mxu0 0.0
        %844 = vmatpush1.msra.mxu0 %v814
        %845 = vmatprep.subr.mxu0 0.0
        %846 = vmatpush1.msra.mxu0 %v815
        %847 = vmatprep.subr.mxu0 0.0
        %848 = vmatpush1.msra.mxu0 %v816
        %849 = vmatprep.subr.mxu0 0.0
        %850 = vmatpush1.msra.mxu0 %v817
        %851 = vmatprep.subr.mxu0 0.0
        %852 = vmatpush1.msra.mxu0 %v818
        %853 = vmatprep.subr.mxu0 0.0
        %854 = vmatpush1.msra.mxu0 %v819
        %855 = vmatprep.subr.mxu0 0.0
        %856 = vmatpush1.msra.mxu0 %v820
        %857 = vmatprep.subr.mxu0 0.0
        %858 = vmatpush1.msra.mxu0 %v821
        %859 = vmatprep.subr.mxu0 0.0
        %860 = vmatpush1.msra.mxu0 0.0
        %861 = vmatprep.subr.mxu0 0.0
        %862 = vmatpush1.msra.mxu0 0.0
        %863 = vmatprep.subr.mxu0 0.0
        %864 = vmatpush1.msra.mxu0 0.0
        %865 = vmatprep.subr.mxu0 0.0
        %866 = vmatpush1.msra.mxu0 0.0
        %867 = vmatprep.subr.mxu0 0.0
        %868 = vmatpush1.msra.mxu0 0.0
        %869 = vmatprep.subr.mxu0 0.0
        %870 = vmatpush1.msra.mxu0 0.0
        %871 = vmatprep.subr.mxu0 0.0
        %872 = vmatpush1.msra.mxu0 0.0
        %873 = vmatprep.subr.mxu0 0.0
        %874 = vmatpush1.msra.mxu0 0.0
        %875 = vmatprep.subr.mxu0 0.0
        %876 = vmatpush1.msra.mxu0 0.0
        %877 = vmatprep.subr.mxu0 0.0
        %878 = vmatpush1.msra.mxu0 0.0
        %879 = vmatprep.subr.mxu0 0.0
        %880 = vmatpush1.msra.mxu0 0.0
        %881 = vmatprep.subr.mxu0 0.0
        %882 = vmatpush1.msra.mxu0 0.0
        %883 = vmatprep.subr.mxu0 0.0
        %884 = vmatpush1.msra.mxu0 0.0
        %885 = vmatprep.subr.mxu0 0.0
        %886 = vmatpush1.msra.mxu0 0.0
        %887 = vmatprep.subr.mxu0 0.0
        %888 = vmatpush1.msra.mxu0 0.0
        %889 = vmatprep.subr.mxu0 0.0
        %890 = vmatpush1.msra.mxu0 0.0
        %891 = vmatprep.mubr.f32.mxu0 0.0
        %892 = vmatmul.mubr.f32.gmra.mrb[0].mxu0 %v707
        %v893 = vpop.f32.mrb[0].mxu0
        %v894 = vadd.f32 %v826, %v893
        %v895 = vpop.f32.mrb[0].mxu0
        %896 = vmatprep.mubr.f32.mxu0 0.0
        %897 = vmatmul.mubr.f32.gmra.mrb[0].mxu0 %v708
        %v898 = vpop.f32.mrb[0].mxu0
        %v899 = vadd.f32 %v826, %v898
        %v900 = vpop.f32.mrb[0].mxu0
        %901 = vdwg.mxu0
        %s902 = scalar_lea.vmem [#allocation8], 256
        %v903 = vld [vmem:[%s902] sm:$0xff]
        %v904 = vld [vmem:[%s902 + $0x8] sm:$0xff]
        %v905 = vld [vmem:[%s902 + $0x10] sm:$0xff]
        %v906 = vld [vmem:[%s902 + $0x18] sm:$0xff]
        %v907 = vld [vmem:[%s902 + $0x20] sm:$0xff]
        %v908 = vld [vmem:[%s902 + $0x28] sm:$0xff]
        %v909 = vld [vmem:[%s902 + $0x30] sm:$0xff]
        %v910 = vld [vmem:[%s902 + $0x38] sm:$0xff]
        %v911 = vld [vmem:[%s902 + $0x40] sm:$0xff]
        %v912 = vld [vmem:[%s902 + $0x48] sm:$0xff]
        %v913 = vld [vmem:[%s902 + $0x50] sm:$0xff]
        %v914 = vld [vmem:[%s902 + $0x58] sm:$0xff]
        %v915 = vld [vmem:[%s902 + $0x60] sm:$0xff]
        %v916 = vld [vmem:[%s902 + $0x68] sm:$0xff]
        %v917 = vld [vmem:[%s902 + $0x70] sm:$0xff]
        %v918 = vld [vmem:[%s902 + $0x78] sm:$0xff]
        %v919 = vld [vmem:[%s5 + $0x2] sm:$0x1]
        %v920 = vlaneseq
        %v921 = vshrl.u32 %v920, 7
        %v922 = vsub.s32 0, %v921
        %v923 = vrot.slane %v919, %v922
        %924 = vmatprep.subr.mxu0 0.0
        %925 = vmatpush1.msra.mxu0 %v903
        %926 = vmatprep.subr.mxu0 0.0
        %927 = vmatpush1.msra.mxu0 %v904
        %928 = vmatprep.subr.mxu0 0.0
        %929 = vmatpush1.msra.mxu0 %v905
        %930 = vmatprep.subr.mxu0 0.0
        %931 = vmatpush1.msra.mxu0 %v906
        %932 = vmatprep.subr.mxu0 0.0
        %933 = vmatpush1.msra.mxu0 %v907
        %934 = vmatprep.subr.mxu0 0.0
        %935 = vmatpush1.msra.mxu0 %v908
        %936 = vmatprep.subr.mxu0 0.0
        %937 = vmatpush1.msra.mxu0 %v909
        %938 = vmatprep.subr.mxu0 0.0
        %939 = vmatpush1.msra.mxu0 %v910
        %940 = vmatprep.subr.mxu0 0.0
        %941 = vmatpush1.msra.mxu0 %v911
        %942 = vmatprep.subr.mxu0 0.0
        %943 = vmatpush1.msra.mxu0 %v912
        %944 = vmatprep.subr.mxu0 0.0
        %945 = vmatpush1.msra.mxu0 %v913
        %946 = vmatprep.subr.mxu0 0.0
        %947 = vmatpush1.msra.mxu0 %v914
        %948 = vmatprep.subr.mxu0 0.0
        %949 = vmatpush1.msra.mxu0 %v915
        %950 = vmatprep.subr.mxu0 0.0
        %951 = vmatpush1.msra.mxu0 %v916
        %952 = vmatprep.subr.mxu0 0.0
        %953 = vmatpush1.msra.mxu0 %v917
        %954 = vmatprep.subr.mxu0 0.0
        %955 = vmatpush1.msra.mxu0 %v918
        %956 = vmatprep.subr.mxu0 0.0
        %957 = vmatpush1.msra.mxu0 0.0
        %958 = vmatprep.subr.mxu0 0.0
        %959 = vmatpush1.msra.mxu0 0.0
        %960 = vmatprep.subr.mxu0 0.0
        %961 = vmatpush1.msra.mxu0 0.0
        %962 = vmatprep.subr.mxu0 0.0
        %963 = vmatpush1.msra.mxu0 0.0
        %964 = vmatprep.subr.mxu0 0.0
        %965 = vmatpush1.msra.mxu0 0.0
        %966 = vmatprep.subr.mxu0 0.0
        %967 = vmatpush1.msra.mxu0 0.0
        %968 = vmatprep.subr.mxu0 0.0
        %969 = vmatpush1.msra.mxu0 0.0
        %970 = vmatprep.subr.mxu0 0.0
        %971 = vmatpush1.msra.mxu0 0.0
        %972 = vmatprep.subr.mxu0 0.0
        %973 = vmatpush1.msra.mxu0 0.0
        %974 = vmatprep.subr.mxu0 0.0
        %975 = vmatpush1.msra.mxu0 0.0
        %976 = vmatprep.subr.mxu0 0.0
        %977 = vmatpush1.msra.mxu0 0.0
        %978 = vmatprep.subr.mxu0 0.0
        %979 = vmatpush1.msra.mxu0 0.0
        %980 = vmatprep.subr.mxu0 0.0
        %981 = vmatpush1.msra.mxu0 0.0
        %982 = vmatprep.subr.mxu0 0.0
        %983 = vmatpush1.msra.mxu0 0.0
        %984 = vmatprep.subr.mxu0 0.0
        %985 = vmatpush1.msra.mxu0 0.0
        %986 = vmatprep.subr.mxu0 0.0
        %987 = vmatpush1.msra.mxu0 0.0
        %988 = vmatprep.mubr.f32.mxu0 0.0
        %989 = vmatmul.mubr.f32.gmra.mrb[0].mxu0 %v707
        %v990 = vpop.f32.mrb[0].mxu0
        %v991 = vadd.f32 %v923, %v990
        %v992 = vpop.f32.mrb[0].mxu0
        %993 = vmatprep.mubr.f32.mxu0 0.0
        %994 = vmatmul.mubr.f32.gmra.mrb[0].mxu0 %v708
        %v995 = vpop.f32.mrb[0].mxu0
        %v996 = vadd.f32 %v923, %v995
        %v997 = vpop.f32.mrb[0].mxu0
        %998 = vdwg.mxu0
        %s999 = scalar_lea.vmem [#allocation8], 384
        %v1000 = vld [vmem:[%s999] sm:$0xff]
        %v1001 = vld [vmem:[%s999 + $0x8] sm:$0xff]
        %v1002 = vld [vmem:[%s999 + $0x10] sm:$0xff]
        %v1003 = vld [vmem:[%s999 + $0x18] sm:$0xff]
        %v1004 = vld [vmem:[%s999 + $0x20] sm:$0xff]
        %v1005 = vld [vmem:[%s999 + $0x28] sm:$0xff]
        %v1006 = vld [vmem:[%s999 + $0x30] sm:$0xff]
        %v1007 = vld [vmem:[%s999 + $0x38] sm:$0xff]
        %v1008 = vld [vmem:[%s999 + $0x40] sm:$0xff]
        %v1009 = vld [vmem:[%s999 + $0x48] sm:$0xff]
        %v1010 = vld [vmem:[%s999 + $0x50] sm:$0xff]
        %v1011 = vld [vmem:[%s999 + $0x58] sm:$0xff]
        %v1012 = vld [vmem:[%s999 + $0x60] sm:$0xff]
        %v1013 = vld [vmem:[%s999 + $0x68] sm:$0xff]
        %v1014 = vld [vmem:[%s999 + $0x70] sm:$0xff]
        %v1015 = vld [vmem:[%s999 + $0x78] sm:$0xff]
        %v1016 = vld [vmem:[%s5 + $0x3] sm:$0x1]
        %vm1017 = vcmask 261120
        %v1019 = vsel %vm1017, %v797, 0
        %v1022 = vsel %vm1017, %v802, 0
        %v1025 = vsel %vm1017, %v894, 0
        %v1028 = vsel %vm1017, %v899, 0
        %1030 = vmatprep.subr.mxu0 0.0
        %1031 = vmatpush1.xpose.msra.mxu0 %v1025
        %1032 = vmatprep.subr.mxu0 0.0
        %1033 = vmatpush1.xpose.msra.mxu0 %v1028
        %1034 = vmatprep.subr.mxu0 0.0
        %1035 = vmatpush1.xpose.msra.mxu0 0.0
        %1036 = vmatprep.subr.mxu0 0.0
        %1037 = vmatpush1.xpose.msra.mxu0 0.0
        %1038 = vmatprep.subr.mxu0 0.0
        %1039 = vmatpush1.xpose.msra.mxu0 0.0
        %1040 = vmatprep.subr.mxu0 0.0
        %1041 = vmatpush1.xpose.msra.mxu0 0.0
        %1042 = vmatprep.subr.mxu0 0.0
        %1043 = vmatpush1.xpose.msra.mxu0 0.0
        %1044 = vmatprep.subr.mxu0 0.0
        %1045 = vmatpush1.xpose.msra.mxu0 0.0
        %1046 = vmatprep.subr.mxu0 0.0
        %1047 = vmatpush1.xpose.msra.mxu0 0.0
        %1048 = vmatprep.subr.mxu0 0.0
        %1049 = vmatpush1.xpose.msra.mxu0 0.0
        %1050 = vmatprep.subr.mxu0 0.0
        %1051 = vmatpush1.xpose.msra.mxu0 0.0
        %1052 = vmatprep.subr.mxu0 0.0
        %1053 = vmatpush1.xpose.msra.mxu0 0.0
        %1054 = vmatprep.subr.mxu0 0.0
        %1055 = vmatpush1.xpose.msra.mxu0 0.0
        %1056 = vmatprep.subr.mxu0 0.0
        %1057 = vmatpush1.xpose.msra.mxu0 0.0
        %1058 = vmatprep.subr.mxu0 0.0
        %1059 = vmatpush1.xpose.msra.mxu0 0.0
        %1060 = vmatprep.subr.mxu0 0.0
        %1061 = vmatpush1.xpose.msra.mxu0 0.0
        %1062 = vmatprep.subr.mxu0 0.0
        %1063 = vmatpush1.xpose.msra.mxu0 0.0
        %1064 = vmatprep.subr.mxu0 0.0
        %1065 = vmatpush1.xpose.msra.mxu0 0.0
        %1066 = vmatprep.subr.mxu0 0.0
        %1067 = vmatpush1.xpose.msra.mxu0 0.0
        %1068 = vmatprep.subr.mxu0 0.0
        %1069 = vmatpush1.xpose.msra.mxu0 0.0
        %1070 = vmatprep.subr.mxu0 0.0
        %1071 = vmatpush1.xpose.msra.mxu0 0.0
        %1072 = vmatprep.subr.mxu0 0.0
        %1073 = vmatpush1.xpose.msra.mxu0 0.0
        %1074 = vmatprep.subr.mxu0 0.0
        %1075 = vmatpush1.xpose.msra.mxu0 0.0
        %1076 = vmatprep.subr.mxu0 0.0
        %1077 = vmatpush1.xpose.msra.mxu0 0.0
        %1078 = vmatprep.subr.mxu0 0.0
        %1079 = vmatpush1.xpose.msra.mxu0 0.0
        %1080 = vmatprep.subr.mxu0 0.0
        %1081 = vmatpush1.xpose.msra.mxu0 0.0
        %1082 = vmatprep.subr.mxu0 0.0
        %1083 = vmatpush1.xpose.msra.mxu0 0.0
        %1084 = vmatprep.subr.mxu0 0.0
        %1085 = vmatpush1.xpose.msra.mxu0 0.0
        %1086 = vmatprep.subr.mxu0 0.0
        %1087 = vmatpush1.xpose.msra.mxu0 0.0
        %1088 = vmatprep.subr.mxu0 0.0
        %1089 = vmatpush1.xpose.msra.mxu0 0.0
        %1090 = vmatprep.subr.mxu0 0.0
        %1091 = vmatpush1.xpose.msra.mxu0 0.0
        %1092 = vmatprep.subr.mxu0 0.0
        %1093 = vmatpush1.xpose.msra.mxu0 0.0
        %1094 = vmatprep.mubr.f32.mxu0 0.0
        %1095 = vmatmul.mubr.f32.gmra.mrb[0].mxu0 %v1019
        %v1096 = vpop.f32.mrb[0].mxu0
        %v1097 = vadd.f32 0.0, %v1096
        %v1098 = vpop.f32.mrb[0].mxu0
        %1099 = vmatprep.mubr.f32.mxu0 0.0
        %1100 = vmatmul.mubr.f32.gmra.mrb[0].mxu0 %v1022
        %v1101 = vpop.f32.mrb[0].mxu0
        %v1102 = vadd.f32 0.0, %v1101
        %v1103 = vpop.f32.mrb[0].mxu0
        %1104 = vdwg.mxu0
        %v1105 = vmul.f32 %v1097, 0.17677669
        %v1106 = vmul.f32 %v1102, 0.17677669
        %vm1107 = vcmp.gt.f32.partialorder %v654, 0.0
        %vm1108 = vcmp.gt.f32.partialorder %v655, 0.0
        %v1109 = vsel %vm1107, %v1105, -1e+09
        %v1110 = vsel %vm1108, %v1106, -1e+09
        %vm1111 = vcmask 130048
        %v1112 = vsel %vm1111, %v1109, -inf
        %1113 = vmax.xlane.f32.xlu0 %v1112
        %v1114 = vpop.xlane.xlu0 %1113
        %v1115 = vsel %vm1111, %v1110, -inf
        %1116 = vmax.xlane.f32.xlu0 %v1115
        %v1117 = vpop.xlane.xlu0 %1116
        %v1118 = vsub.f32 %v1109, %v1114
        %v1119 = vsub.f32 %v1110, %v1117
        %v1120 = vmul.f32 %v1118, 1.442695
        %v1121 = vpow.pop %v1120
        %v1122 = vmul.f32 %v1119, 1.442695
        %v1123 = vpow.pop %v1122
        %v1124 = vsel %vm1111, %v1121, 0.0
        %1125 = vadd.xlane.f32.xlu0 %v1124
        %v1126 = vpop.xlane.xlu0 %1125
        %v1127 = vsel %vm1111, %v1123, 0.0
        %1128 = vadd.xlane.f32.xlu0 %v1127
        %v1129 = vpop.xlane.xlu0 %1128
        %v1130 = vrcp.pop %v1126
        %v1131 = vmul.f32 %v1121, %v1130
        %v1132 = vrcp.pop %v1129
        %v1133 = vmul.f32 %v1123, %v1132
        %v1135 = vsel %vm1111, %v1131, 0
        %v1138 = vsel %vm1111, %v1133, 0
        %1140 = vmatprep.subr.mxu0 0.0
        %1141 = vmatpush1.msra.mxu0 %v991
        %1142 = vmatprep.subr.mxu0 0.0
        %1143 = vmatpush1.msra.mxu0 %v996
        %1144 = vmatprep.subr.mxu0 0.0
        %1145 = vmatpush1.msra.mxu0 0.0
        %1146 = vmatprep.subr.mxu0 0.0
        %1147 = vmatpush1.msra.mxu0 0.0
        %1148 = vmatprep.subr.mxu0 0.0
        %1149 = vmatpush1.msra.mxu0 0.0
        %1150 = vmatprep.subr.mxu0 0.0
        %1151 = vmatpush1.msra.mxu0 0.0
        %1152 = vmatprep.subr.mxu0 0.0
        %1153 = vmatpush1.msra.mxu0 0.0
        %1154 = vmatprep.subr.mxu0 0.0
        %1155 = vmatpush1.msra.mxu0 0.0
        %1156 = vmatprep.subr.mxu0 0.0
        %1157 = vmatpush1.msra.mxu0 0.0
        %1158 = vmatprep.subr.mxu0 0.0
        %1159 = vmatpush1.msra.mxu0 0.0
        %1160 = vmatprep.subr.mxu0 0.0
        %1161 = vmatpush1.msra.mxu0 0.0
        %1162 = vmatprep.subr.mxu0 0.0
        %1163 = vmatpush1.msra.mxu0 0.0
        %1164 = vmatprep.subr.mxu0 0.0
        %1165 = vmatpush1.msra.mxu0 0.0
        %1166 = vmatprep.subr.mxu0 0.0
        %1167 = vmatpush1.msra.mxu0 0.0
        %1168 = vmatprep.subr.mxu0 0.0
        %1169 = vmatpush1.msra.mxu0 0.0
        %1170 = vmatprep.subr.mxu0 0.0
        %1171 = vmatpush1.msra.mxu0 0.0
        %1172 = vmatprep.subr.mxu0 0.0
        %1173 = vmatpush1.msra.mxu0 0.0
        %1174 = vmatprep.subr.mxu0 0.0
        %1175 = vmatpush1.msra.mxu0 0.0
        %1176 = vmatprep.subr.mxu0 0.0
        %1177 = vmatpush1.msra.mxu0 0.0
        %1178 = vmatprep.subr.mxu0 0.0
        %1179 = vmatpush1.msra.mxu0 0.0
        %1180 = vmatprep.subr.mxu0 0.0
        %1181 = vmatpush1.msra.mxu0 0.0
        %1182 = vmatprep.subr.mxu0 0.0
        %1183 = vmatpush1.msra.mxu0 0.0
        %1184 = vmatprep.subr.mxu0 0.0
        %1185 = vmatpush1.msra.mxu0 0.0
        %1186 = vmatprep.subr.mxu0 0.0
        %1187 = vmatpush1.msra.mxu0 0.0
        %1188 = vmatprep.subr.mxu0 0.0
        %1189 = vmatpush1.msra.mxu0 0.0
        %1190 = vmatprep.subr.mxu0 0.0
        %1191 = vmatpush1.msra.mxu0 0.0
        %1192 = vmatprep.subr.mxu0 0.0
        %1193 = vmatpush1.msra.mxu0 0.0
        %1194 = vmatprep.subr.mxu0 0.0
        %1195 = vmatpush1.msra.mxu0 0.0
        %1196 = vmatprep.subr.mxu0 0.0
        %1197 = vmatpush1.msra.mxu0 0.0
        %1198 = vmatprep.subr.mxu0 0.0
        %1199 = vmatpush1.msra.mxu0 0.0
        %1200 = vmatprep.subr.mxu0 0.0
        %1201 = vmatpush1.msra.mxu0 0.0
        %1202 = vmatprep.subr.mxu0 0.0
        %1203 = vmatpush1.msra.mxu0 0.0
        %1204 = vmatprep.mubr.f32.mxu0 0.0
        %1205 = vmatmul.mubr.f32.gmra.mrb[0].mxu0 %v1135
        %v1206 = vpop.f32.mrb[0].mxu0
        %v1207 = vadd.f32 0.0, %v1206
        %v1208 = vpop.f32.mrb[0].mxu0
        %1209 = vmatprep.mubr.f32.mxu0 0.0
        %1210 = vmatmul.mubr.f32.gmra.mrb[0].mxu0 %v1138
        %v1211 = vpop.f32.mrb[0].mxu0
        %v1212 = vadd.f32 0.0, %v1211
        %v1213 = vpop.f32.mrb[0].mxu0
        %1214 = vdwg.mxu0
        %1215 = vrot.lane.b32.xlu0 %v797, 96
        %v1216 = vpop.permute.xlu0 %1215
        %1217 = vrot.lane.b32.xlu0 %v802, 96
        %v1218 = vpop.permute.xlu0 %1217
        %1219 = vrot.lane.b32.xlu0 %v894, 96
        %v1220 = vpop.permute.xlu0 %1219
        %1221 = vrot.lane.b32.xlu0 %v899, 96
        %v1222 = vpop.permute.xlu0 %1221
        %v1223 = vsel %vm1017, %v1216, 0
        %v1225 = vsel %vm1017, %v1218, 0
        %v1227 = vsel %vm1017, %v1220, 0
        %v1229 = vsel %vm1017, %v1222, 0
        %1231 = vmatprep.subr.mxu0 0.0
        %1232 = vmatpush1.xpose.msra.mxu0 %v1227
        %1233 = vmatprep.subr.mxu0 0.0
        %1234 = vmatpush1.xpose.msra.mxu0 %v1229
        %1235 = vmatprep.subr.mxu0 0.0
        %1236 = vmatpush1.xpose.msra.mxu0 0.0
        %1237 = vmatprep.subr.mxu0 0.0
        %1238 = vmatpush1.xpose.msra.mxu0 0.0
        %1239 = vmatprep.subr.mxu0 0.0
        %1240 = vmatpush1.xpose.msra.mxu0 0.0
        %1241 = vmatprep.subr.mxu0 0.0
        %1242 = vmatpush1.xpose.msra.mxu0 0.0
        %1243 = vmatprep.subr.mxu0 0.0
        %1244 = vmatpush1.xpose.msra.mxu0 0.0
        %1245 = vmatprep.subr.mxu0 0.0
        %1246 = vmatpush1.xpose.msra.mxu0 0.0
        %1247 = vmatprep.subr.mxu0 0.0
        %1248 = vmatpush1.xpose.msra.mxu0 0.0
        %1249 = vmatprep.subr.mxu0 0.0
        %1250 = vmatpush1.xpose.msra.mxu0 0.0
        %1251 = vmatprep.subr.mxu0 0.0
        %1252 = vmatpush1.xpose.msra.mxu0 0.0
        %1253 = vmatprep.subr.mxu0 0.0
        %1254 = vmatpush1.xpose.msra.mxu0 0.0
        %1255 = vmatprep.subr.mxu0 0.0
        %1256 = vmatpush1.xpose.msra.mxu0 0.0
        %1257 = vmatprep.subr.mxu0 0.0
        %1258 = vmatpush1.xpose.msra.mxu0 0.0
        %1259 = vmatprep.subr.mxu0 0.0
        %1260 = vmatpush1.xpose.msra.mxu0 0.0
        %1261 = vmatprep.subr.mxu0 0.0
        %1262 = vmatpush1.xpose.msra.mxu0 0.0
        %1263 = vmatprep.subr.mxu0 0.0
        %1264 = vmatpush1.xpose.msra.mxu0 0.0
        %1265 = vmatprep.subr.mxu0 0.0
        %1266 = vmatpush1.xpose.msra.mxu0 0.0
        %1267 = vmatprep.subr.mxu0 0.0
        %1268 = vmatpush1.xpose.msra.mxu0 0.0
        %1269 = vmatprep.subr.mxu0 0.0
        %1270 = vmatpush1.xpose.msra.mxu0 0.0
        %1271 = vmatprep.subr.mxu0 0.0
        %1272 = vmatpush1.xpose.msra.mxu0 0.0
        %1273 = vmatprep.subr.mxu0 0.0
        %1274 = vmatpush1.xpose.msra.mxu0 0.0
        %1275 = vmatprep.subr.mxu0 0.0
        %1276 = vmatpush1.xpose.msra.mxu0 0.0
        %1277 = vmatprep.subr.mxu0 0.0
        %1278 = vmatpush1.xpose.msra.mxu0 0.0
        %1279 = vmatprep.subr.mxu0 0.0
        %1280 = vmatpush1.xpose.msra.mxu0 0.0
        %1281 = vmatprep.subr.mxu0 0.0
        %1282 = vmatpush1.xpose.msra.mxu0 0.0
        %1283 = vmatprep.subr.mxu0 0.0
        %1284 = vmatpush1.xpose.msra.mxu0 0.0
        %1285 = vmatprep.subr.mxu0 0.0
        %1286 = vmatpush1.xpose.msra.mxu0 0.0
        %1287 = vmatprep.subr.mxu0 0.0
        %1288 = vmatpush1.xpose.msra.mxu0 0.0
        %1289 = vmatprep.subr.mxu0 0.0
        %1290 = vmatpush1.xpose.msra.mxu0 0.0
        %1291 = vmatprep.subr.mxu0 0.0
        %1292 = vmatpush1.xpose.msra.mxu0 0.0
        %1293 = vmatprep.subr.mxu0 0.0
        %1294 = vmatpush1.xpose.msra.mxu0 0.0
        %1295 = vmatprep.mubr.f32.mxu0 0.0
        %1296 = vmatmul.mubr.f32.gmra.mrb[0].mxu0 %v1223
        %v1297 = vpop.f32.mrb[0].mxu0
        %v1298 = vadd.f32 0.0, %v1297
        %v1299 = vpop.f32.mrb[0].mxu0
        %1300 = vmatprep.mubr.f32.mxu0 0.0
        %1301 = vmatmul.mubr.f32.gmra.mrb[0].mxu0 %v1225
        %v1302 = vpop.f32.mrb[0].mxu0
        %v1303 = vadd.f32 0.0, %v1302
        %v1304 = vpop.f32.mrb[0].mxu0
        %1305 = vdwg.mxu0
        %v1306 = vmul.f32 %v1298, 0.17677669
        %v1307 = vmul.f32 %v1303, 0.17677669
        %v1308 = vsel %vm1107, %v1306, -1e+09
        %v1309 = vsel %vm1108, %v1307, -1e+09
        %v1310 = vsel %vm1111, %v1308, -inf
        %1311 = vmax.xlane.f32.xlu0 %v1310
        %v1312 = vpop.xlane.xlu0 %1311
        %v1313 = vsel %vm1111, %v1309, -inf
        %1314 = vmax.xlane.f32.xlu0 %v1313
        %v1315 = vpop.xlane.xlu0 %1314
        %v1316 = vsub.f32 %v1308, %v1312
        %v1317 = vsub.f32 %v1309, %v1315
        %v1318 = vmul.f32 %v1316, 1.442695
        %v1319 = vpow.pop %v1318
        %v1320 = vmul.f32 %v1317, 1.442695
        %v1321 = vpow.pop %v1320
        %v1322 = vsel %vm1111, %v1319, 0.0
        %1323 = vadd.xlane.f32.xlu0 %v1322
        %v1324 = vpop.xlane.xlu0 %1323
        %v1325 = vsel %vm1111, %v1321, 0.0
        %1326 = vadd.xlane.f32.xlu0 %v1325
        %v1327 = vpop.xlane.xlu0 %1326
        %v1328 = vrcp.pop %v1324
        %v1329 = vmul.f32 %v1319, %v1328
        %v1330 = vrcp.pop %v1327
        %v1331 = vmul.f32 %v1321, %v1330
        %1334 = vrot.lane.b32.xlu0 %v991, 96
        %v1335 = vpop.permute.xlu0 %1334
        %1336 = vrot.lane.b32.xlu0 %v996, 96
        %v1337 = vpop.permute.xlu0 %1336
        %v1341 = vsel %vm1111, %v1329, 0
        %v1344 = vsel %vm1111, %v1331, 0
        %1346 = vmatprep.subr.mxu0 0.0
        %1347 = vmatpush1.msra.mxu0 %v1335
        %1348 = vmatprep.subr.mxu0 0.0
        %1349 = vmatpush1.msra.mxu0 %v1337
        %1350 = vmatprep.subr.mxu0 0.0
        %1351 = vmatpush1.msra.mxu0 0.0
        %1352 = vmatprep.subr.mxu0 0.0
        %1353 = vmatpush1.msra.mxu0 0.0
        %1354 = vmatprep.subr.mxu0 0.0
        %1355 = vmatpush1.msra.mxu0 0.0
        %1356 = vmatprep.subr.mxu0 0.0
        %1357 = vmatpush1.msra.mxu0 0.0
        %1358 = vmatprep.subr.mxu0 0.0
        %1359 = vmatpush1.msra.mxu0 0.0
        %1360 = vmatprep.subr.mxu0 0.0
        %1361 = vmatpush1.msra.mxu0 0.0
        %1362 = vmatprep.subr.mxu0 0.0
        %1363 = vmatpush1.msra.mxu0 0.0
        %1364 = vmatprep.subr.mxu0 0.0
        %1365 = vmatpush1.msra.mxu0 0.0
        %1366 = vmatprep.subr.mxu0 0.0
        %1367 = vmatpush1.msra.mxu0 0.0
        %1368 = vmatprep.subr.mxu0 0.0
        %1369 = vmatpush1.msra.mxu0 0.0
        %1370 = vmatprep.subr.mxu0 0.0
        %1371 = vmatpush1.msra.mxu0 0.0
        %1372 = vmatprep.subr.mxu0 0.0
        %1373 = vmatpush1.msra.mxu0 0.0
        %1374 = vmatprep.subr.mxu0 0.0
        %1375 = vmatpush1.msra.mxu0 0.0
        %1376 = vmatprep.subr.mxu0 0.0
        %1377 = vmatpush1.msra.mxu0 0.0
        %1378 = vmatprep.subr.mxu0 0.0
        %1379 = vmatpush1.msra.mxu0 0.0
        %1380 = vmatprep.subr.mxu0 0.0
        %1381 = vmatpush1.msra.mxu0 0.0
        %1382 = vmatprep.subr.mxu0 0.0
        %1383 = vmatpush1.msra.mxu0 0.0
        %1384 = vmatprep.subr.mxu0 0.0
        %1385 = vmatpush1.msra.mxu0 0.0
        %1386 = vmatprep.subr.mxu0 0.0
        %1387 = vmatpush1.msra.mxu0 0.0
        %1388 = vmatprep.subr.mxu0 0.0
        %1389 = vmatpush1.msra.mxu0 0.0
        %1390 = vmatprep.subr.mxu0 0.0
        %1391 = vmatpush1.msra.mxu0 0.0
        %1392 = vmatprep.subr.mxu0 0.0
        %1393 = vmatpush1.msra.mxu0 0.0
        %1394 = vmatprep.subr.mxu0 0.0
        %1395 = vmatpush1.msra.mxu0 0.0
        %1396 = vmatprep.subr.mxu0 0.0
        %1397 = vmatpush1.msra.mxu0 0.0
        %1398 = vmatprep.subr.mxu0 0.0
        %1399 = vmatpush1.msra.mxu0 0.0
        %1400 = vmatprep.subr.mxu0 0.0
        %1401 = vmatpush1.msra.mxu0 0.0
        %1402 = vmatprep.subr.mxu0 0.0
        %1403 = vmatpush1.msra.mxu0 0.0
        %1404 = vmatprep.subr.mxu0 0.0
        %1405 = vmatpush1.msra.mxu0 0.0
        %1406 = vmatprep.subr.mxu0 0.0
        %1407 = vmatpush1.msra.mxu0 0.0
        %1408 = vmatprep.subr.mxu0 0.0
        %1409 = vmatpush1.msra.mxu0 0.0
        %1410 = vmatprep.mubr.f32.mxu0 0.0
        %1411 = vmatmul.mubr.f32.gmra.mrb[0].mxu0 %v1341
        %v1412 = vpop.f32.mrb[0].mxu0
        %v1413 = vadd.f32 0.0, %v1412
        %v1414 = vpop.f32.mrb[0].mxu0
        %1415 = vmatprep.mubr.f32.mxu0 0.0
        %1416 = vmatmul.mubr.f32.gmra.mrb[0].mxu0 %v1344
        %v1417 = vpop.f32.mrb[0].mxu0
        %v1418 = vadd.f32 0.0, %v1417
        %v1419 = vpop.f32.mrb[0].mxu0
        %1420 = vdwg.mxu0
        %v1422 = vsel %vm1017, %v1413, 0
        %v1425 = vsel %vm1017, %v1418, 0
        %1427 = vmatprep.subr.mxu0 0.0
        %1428 = vmatpush1.msra.mxu0 %v1004
        %1429 = vmatprep.subr.mxu0 0.0
        %1430 = vmatpush1.msra.mxu0 %v1005
        %1431 = vmatprep.subr.mxu0 0.0
        %1432 = vmatpush1.msra.mxu0 %v1006
        %1433 = vmatprep.subr.mxu0 0.0
        %1434 = vmatpush1.msra.mxu0 %v1007
        %1435 = vmatprep.subr.mxu0 0.0
        %1436 = vmatpush1.msra.mxu0 0.0
        %1437 = vmatprep.subr.mxu0 0.0
        %1438 = vmatpush1.msra.mxu0 0.0
        %1439 = vmatprep.subr.mxu0 0.0
        %1440 = vmatpush1.msra.mxu0 0.0
        %1441 = vmatprep.subr.mxu0 0.0
        %1442 = vmatpush1.msra.mxu0 0.0
        %1443 = vmatprep.subr.mxu0 0.0
        %1444 = vmatpush1.msra.mxu0 0.0
        %1445 = vmatprep.subr.mxu0 0.0
        %1446 = vmatpush1.msra.mxu0 0.0
        %1447 = vmatprep.subr.mxu0 0.0
        %1448 = vmatpush1.msra.mxu0 0.0
        %1449 = vmatprep.subr.mxu0 0.0
        %1450 = vmatpush1.msra.mxu0 0.0
        %1451 = vmatprep.subr.mxu0 0.0
        %1452 = vmatpush1.msra.mxu0 0.0
        %1453 = vmatprep.subr.mxu0 0.0
        %1454 = vmatpush1.msra.mxu0 0.0
        %1455 = vmatprep.subr.mxu0 0.0
        %1456 = vmatpush1.msra.mxu0 0.0
        %1457 = vmatprep.subr.mxu0 0.0
        %1458 = vmatpush1.msra.mxu0 0.0
        %1459 = vmatprep.subr.mxu0 0.0
        %1460 = vmatpush1.msra.mxu0 0.0
        %1461 = vmatprep.subr.mxu0 0.0
        %1462 = vmatpush1.msra.mxu0 0.0
        %1463 = vmatprep.subr.mxu0 0.0
        %1464 = vmatpush1.msra.mxu0 0.0
        %1465 = vmatprep.subr.mxu0 0.0
        %1466 = vmatpush1.msra.mxu0 0.0
        %1467 = vmatprep.subr.mxu0 0.0
        %1468 = vmatpush1.msra.mxu0 0.0
        %1469 = vmatprep.subr.mxu0 0.0
        %1470 = vmatpush1.msra.mxu0 0.0
        %1471 = vmatprep.subr.mxu0 0.0
        %1472 = vmatpush1.msra.mxu0 0.0
        %1473 = vmatprep.subr.mxu0 0.0
        %1474 = vmatpush1.msra.mxu0 0.0
        %1475 = vmatprep.subr.mxu0 0.0
        %1476 = vmatpush1.msra.mxu0 0.0
        %1477 = vmatprep.subr.mxu0 0.0
        %1478 = vmatpush1.msra.mxu0 0.0
        %1479 = vmatprep.subr.mxu0 0.0
        %1480 = vmatpush1.msra.mxu0 0.0
        %1481 = vmatprep.subr.mxu0 0.0
        %1482 = vmatpush1.msra.mxu0 0.0
        %1483 = vmatprep.subr.mxu0 0.0
        %1484 = vmatpush1.msra.mxu0 0.0
        %1485 = vmatprep.subr.mxu0 0.0
        %1486 = vmatpush1.msra.mxu0 0.0
        %1487 = vmatprep.subr.mxu0 0.0
        %1488 = vmatpush1.msra.mxu0 0.0
        %1489 = vmatprep.subr.mxu0 0.0
        %1490 = vmatpush1.msra.mxu0 0.0
        %1491 = vmatprep.mubr.f32.mxu0 0.0
        %1492 = vmatmul.mubr.f32.gmra.mrb[0].mxu0 %v1422
        %v1493 = vpop.f32.mrb[0].mxu0
        %v1494 = vadd.f32 0.0, %v1493
        %v1495 = vpop.f32.mrb[0].mxu0
        %1496 = vmatprep.mubr.f32.mxu0 0.0
        %1497 = vmatmul.mubr.f32.gmra.mrb[0].mxu0 %v1425
        %v1498 = vpop.f32.mrb[0].mxu0
        %v1499 = vadd.f32 0.0, %v1498
        %v1500 = vpop.f32.mrb[0].mxu0
        %1501 = vdwg.mxu0
        %v1503 = vsel %vm1017, %v1207, 0
        %v1506 = vsel %vm1017, %v1212, 0
        %1508 = vmatprep.subr.mxu0 0.0
        %1509 = vmatpush1.msra.mxu0 %v1000
        %1510 = vmatprep.subr.mxu0 0.0
        %1511 = vmatpush1.msra.mxu0 %v1001
        %1512 = vmatprep.subr.mxu0 0.0
        %1513 = vmatpush1.msra.mxu0 %v1002
        %1514 = vmatprep.subr.mxu0 0.0
        %1515 = vmatpush1.msra.mxu0 %v1003
        %1516 = vmatprep.subr.mxu0 0.0
        %1517 = vmatpush1.msra.mxu0 0.0
        %1518 = vmatprep.subr.mxu0 0.0
        %1519 = vmatpush1.msra.mxu0 0.0
        %1520 = vmatprep.subr.mxu0 0.0
        %1521 = vmatpush1.msra.mxu0 0.0
        %1522 = vmatprep.subr.mxu0 0.0
        %1523 = vmatpush1.msra.mxu0 0.0
        %1524 = vmatprep.subr.mxu0 0.0
        %1525 = vmatpush1.msra.mxu0 0.0
        %1526 = vmatprep.subr.mxu0 0.0
        %1527 = vmatpush1.msra.mxu0 0.0
        %1528 = vmatprep.subr.mxu0 0.0
        %1529 = vmatpush1.msra.mxu0 0.0
        %1530 = vmatprep.subr.mxu0 0.0
        %1531 = vmatpush1.msra.mxu0 0.0
        %1532 = vmatprep.subr.mxu0 0.0
        %1533 = vmatpush1.msra.mxu0 0.0
        %1534 = vmatprep.subr.mxu0 0.0
        %1535 = vmatpush1.msra.mxu0 0.0
        %1536 = vmatprep.subr.mxu0 0.0
        %1537 = vmatpush1.msra.mxu0 0.0
        %1538 = vmatprep.subr.mxu0 0.0
        %1539 = vmatpush1.msra.mxu0 0.0
        %1540 = vmatprep.subr.mxu0 0.0
        %1541 = vmatpush1.msra.mxu0 0.0
        %1542 = vmatprep.subr.mxu0 0.0
        %1543 = vmatpush1.msra.mxu0 0.0
        %1544 = vmatprep.subr.mxu0 0.0
        %1545 = vmatpush1.msra.mxu0 0.0
        %1546 = vmatprep.subr.mxu0 0.0
        %1547 = vmatpush1.msra.mxu0 0.0
        %1548 = vmatprep.subr.mxu0 0.0
        %1549 = vmatpush1.msra.mxu0 0.0
        %1550 = vmatprep.subr.mxu0 0.0
        %1551 = vmatpush1.msra.mxu0 0.0
        %1552 = vmatprep.subr.mxu0 0.0
        %1553 = vmatpush1.msra.mxu0 0.0
        %1554 = vmatprep.subr.mxu0 0.0
        %1555 = vmatpush1.msra.mxu0 0.0
        %1556 = vmatprep.subr.mxu0 0.0
        %1557 = vmatpush1.msra.mxu0 0.0
        %1558 = vmatprep.subr.mxu0 0.0
        %1559 = vmatpush1.msra.mxu0 0.0
        %1560 = vmatprep.subr.mxu0 0.0
        %1561 = vmatpush1.msra.mxu0 0.0
        %1562 = vmatprep.subr.mxu0 0.0
        %1563 = vmatpush1.msra.mxu0 0.0
        %1564 = vmatprep.subr.mxu0 0.0
        %1565 = vmatpush1.msra.mxu0 0.0
        %1566 = vmatprep.subr.mxu0 0.0
        %1567 = vmatpush1.msra.mxu0 0.0
        %1568 = vmatprep.subr.mxu0 0.0
        %1569 = vmatpush1.msra.mxu0 0.0
        %1570 = vmatprep.subr.mxu0 0.0
        %1571 = vmatpush1.msra.mxu0 0.0
        %1572 = vmatprep.mubr.f32.mxu0 0.0
        %1573 = vmatmul.mubr.f32.gmra.mrb[0].mxu0 %v1503
        %v1574 = vpop.f32.mrb[0].mxu0
        %v1575 = vadd.f32 %v1494, %v1574
        %v1576 = vpop.f32.mrb[0].mxu0
        %1577 = vmatprep.mubr.f32.mxu0 0.0
        %1578 = vmatmul.mubr.f32.gmra.mrb[0].mxu0 %v1506
        %v1579 = vpop.f32.mrb[0].mxu0
        %v1580 = vadd.f32 %v1499, %v1579
        %v1581 = vpop.f32.mrb[0].mxu0
        %1582 = vdwg.mxu0
        %1583 = vrot.lane.b32.xlu0 %v797, 64
        %v1584 = vpop.permute.xlu0 %1583
        %1585 = vrot.lane.b32.xlu0 %v802, 64
        %v1586 = vpop.permute.xlu0 %1585
        %1587 = vrot.lane.b32.xlu0 %v894, 64
        %v1588 = vpop.permute.xlu0 %1587
        %1589 = vrot.lane.b32.xlu0 %v899, 64
        %v1590 = vpop.permute.xlu0 %1589
        %v1591 = vsel %vm1017, %v1584, 0
        %v1593 = vsel %vm1017, %v1586, 0
        %v1595 = vsel %vm1017, %v1588, 0
        %v1597 = vsel %vm1017, %v1590, 0
        %1599 = vmatprep.subr.mxu0 0.0
        %1600 = vmatpush1.xpose.msra.mxu0 %v1595
        %1601 = vmatprep.subr.mxu0 0.0
        %1602 = vmatpush1.xpose.msra.mxu0 %v1597
        %1603 = vmatprep.subr.mxu0 0.0
        %1604 = vmatpush1.xpose.msra.mxu0 0.0
        %1605 = vmatprep.subr.mxu0 0.0
        %1606 = vmatpush1.xpose.msra.mxu0 0.0
        %1607 = vmatprep.subr.mxu0 0.0
        %1608 = vmatpush1.xpose.msra.mxu0 0.0
        %1609 = vmatprep.subr.mxu0 0.0
        %1610 = vmatpush1.xpose.msra.mxu0 0.0
        %1611 = vmatprep.subr.mxu0 0.0
        %1612 = vmatpush1.xpose.msra.mxu0 0.0
        %1613 = vmatprep.subr.mxu0 0.0
        %1614 = vmatpush1.xpose.msra.mxu0 0.0
        %1615 = vmatprep.subr.mxu0 0.0
        %1616 = vmatpush1.xpose.msra.mxu0 0.0
        %1617 = vmatprep.subr.mxu0 0.0
        %1618 = vmatpush1.xpose.msra.mxu0 0.0
        %1619 = vmatprep.subr.mxu0 0.0
        %1620 = vmatpush1.xpose.msra.mxu0 0.0
        %1621 = vmatprep.subr.mxu0 0.0
        %1622 = vmatpush1.xpose.msra.mxu0 0.0
        %1623 = vmatprep.subr.mxu0 0.0
        %1624 = vmatpush1.xpose.msra.mxu0 0.0
        %1625 = vmatprep.subr.mxu0 0.0
        %1626 = vmatpush1.xpose.msra.mxu0 0.0
        %1627 = vmatprep.subr.mxu0 0.0
        %1628 = vmatpush1.xpose.msra.mxu0 0.0
        %1629 = vmatprep.subr.mxu0 0.0
        %1630 = vmatpush1.xpose.msra.mxu0 0.0
        %1631 = vmatprep.subr.mxu0 0.0
        %1632 = vmatpush1.xpose.msra.mxu0 0.0
        %1633 = vmatprep.subr.mxu0 0.0
        %1634 = vmatpush1.xpose.msra.mxu0 0.0
        %1635 = vmatprep.subr.mxu0 0.0
        %1636 = vmatpush1.xpose.msra.mxu0 0.0
        %1637 = vmatprep.subr.mxu0 0.0
        %1638 = vmatpush1.xpose.msra.mxu0 0.0
        %1639 = vmatprep.subr.mxu0 0.0
        %1640 = vmatpush1.xpose.msra.mxu0 0.0
        %1641 = vmatprep.subr.mxu0 0.0
        %1642 = vmatpush1.xpose.msra.mxu0 0.0
        %1643 = vmatprep.subr.mxu0 0.0
        %1644 = vmatpush1.xpose.msra.mxu0 0.0
        %1645 = vmatprep.subr.mxu0 0.0
        %1646 = vmatpush1.xpose.msra.mxu0 0.0
        %1647 = vmatprep.subr.mxu0 0.0
        %1648 = vmatpush1.xpose.msra.mxu0 0.0
        %1649 = vmatprep.subr.mxu0 0.0
        %1650 = vmatpush1.xpose.msra.mxu0 0.0
        %1651 = vmatprep.subr.mxu0 0.0
        %1652 = vmatpush1.xpose.msra.mxu0 0.0
        %1653 = vmatprep.subr.mxu0 0.0
        %1654 = vmatpush1.xpose.msra.mxu0 0.0
        %1655 = vmatprep.subr.mxu0 0.0
        %1656 = vmatpush1.xpose.msra.mxu0 0.0
        %1657 = vmatprep.subr.mxu0 0.0
        %1658 = vmatpush1.xpose.msra.mxu0 0.0
        %1659 = vmatprep.subr.mxu0 0.0
        %1660 = vmatpush1.xpose.msra.mxu0 0.0
        %1661 = vmatprep.subr.mxu0 0.0
        %1662 = vmatpush1.xpose.msra.mxu0 0.0
        %1663 = vmatprep.mubr.f32.mxu0 0.0
        %1664 = vmatmul.mubr.f32.gmra.mrb[0].mxu0 %v1591
        %v1665 = vpop.f32.mrb[0].mxu0
        %v1666 = vadd.f32 0.0, %v1665
        %v1667 = vpop.f32.mrb[0].mxu0
        %1668 = vmatprep.mubr.f32.mxu0 0.0
        %1669 = vmatmul.mubr.f32.gmra.mrb[0].mxu0 %v1593
        %v1670 = vpop.f32.mrb[0].mxu0
        %v1671 = vadd.f32 0.0, %v1670
        %v1672 = vpop.f32.mrb[0].mxu0
        %1673 = vdwg.mxu0
        %v1674 = vmul.f32 %v1666, 0.17677669
        %v1675 = vmul.f32 %v1671, 0.17677669
        %v1676 = vsel %vm1107, %v1674, -1e+09
        %v1677 = vsel %vm1108, %v1675, -1e+09
        %v1678 = vsel %vm1111, %v1676, -inf
        %1679 = vmax.xlane.f32.xlu0 %v1678
        %v1680 = vpop.xlane.xlu0 %1679
        %v1681 = vsel %vm1111, %v1677, -inf
        %1682 = vmax.xlane.f32.xlu0 %v1681
        %v1683 = vpop.xlane.xlu0 %1682
        %v1684 = vsub.f32 %v1676, %v1680
        %v1685 = vsub.f32 %v1677, %v1683
        %v1686 = vmul.f32 %v1684, 1.442695
        %v1687 = vpow.pop %v1686
        %v1688 = vmul.f32 %v1685, 1.442695
        %v1689 = vpow.pop %v1688
        %v1690 = vsel %vm1111, %v1687, 0.0
        %1691 = vadd.xlane.f32.xlu0 %v1690
        %v1692 = vpop.xlane.xlu0 %1691
        %v1693 = vsel %vm1111, %v1689, 0.0
        %1694 = vadd.xlane.f32.xlu0 %v1693
        %v1695 = vpop.xlane.xlu0 %1694
        %v1696 = vrcp.pop %v1692
        %v1697 = vmul.f32 %v1687, %v1696
        %v1698 = vrcp.pop %v1695
        %v1699 = vmul.f32 %v1689, %v1698
        %1700 = vrot.lane.b32.xlu0 %v991, 64
        %v1701 = vpop.permute.xlu0 %1700
        %1702 = vrot.lane.b32.xlu0 %v996, 64
        %v1703 = vpop.permute.xlu0 %1702
        %v1707 = vsel %vm1111, %v1697, 0
        %v1710 = vsel %vm1111, %v1699, 0
        %1712 = vmatprep.subr.mxu0 0.0
        %1713 = vmatpush1.msra.mxu0 %v1701
        %1714 = vmatprep.subr.mxu0 0.0
        %1715 = vmatpush1.msra.mxu0 %v1703
        %1716 = vmatprep.subr.mxu0 0.0
        %1717 = vmatpush1.msra.mxu0 0.0
        %1718 = vmatprep.subr.mxu0 0.0
        %1719 = vmatpush1.msra.mxu0 0.0
        %1720 = vmatprep.subr.mxu0 0.0
        %1721 = vmatpush1.msra.mxu0 0.0
        %1722 = vmatprep.subr.mxu0 0.0
        %1723 = vmatpush1.msra.mxu0 0.0
        %1724 = vmatprep.subr.mxu0 0.0
        %1725 = vmatpush1.msra.mxu0 0.0
        %1726 = vmatprep.subr.mxu0 0.0
        %1727 = vmatpush1.msra.mxu0 0.0
        %1728 = vmatprep.subr.mxu0 0.0
        %1729 = vmatpush1.msra.mxu0 0.0
        %1730 = vmatprep.subr.mxu0 0.0
        %1731 = vmatpush1.msra.mxu0 0.0
        %1732 = vmatprep.subr.mxu0 0.0
        %1733 = vmatpush1.msra.mxu0 0.0
        %1734 = vmatprep.subr.mxu0 0.0
        %1735 = vmatpush1.msra.mxu0 0.0
        %1736 = vmatprep.subr.mxu0 0.0
        %1737 = vmatpush1.msra.mxu0 0.0
        %1738 = vmatprep.subr.mxu0 0.0
        %1739 = vmatpush1.msra.mxu0 0.0
        %1740 = vmatprep.subr.mxu0 0.0
        %1741 = vmatpush1.msra.mxu0 0.0
        %1742 = vmatprep.subr.mxu0 0.0
        %1743 = vmatpush1.msra.mxu0 0.0
        %1744 = vmatprep.subr.mxu0 0.0
        %1745 = vmatpush1.msra.mxu0 0.0
        %1746 = vmatprep.subr.mxu0 0.0
        %1747 = vmatpush1.msra.mxu0 0.0
        %1748 = vmatprep.subr.mxu0 0.0
        %1749 = vmatpush1.msra.mxu0 0.0
        %1750 = vmatprep.subr.mxu0 0.0
        %1751 = vmatpush1.msra.mxu0 0.0
        %1752 = vmatprep.subr.mxu0 0.0
        %1753 = vmatpush1.msra.mxu0 0.0
        %1754 = vmatprep.subr.mxu0 0.0
        %1755 = vmatpush1.msra.mxu0 0.0
        %1756 = vmatprep.subr.mxu0 0.0
        %1757 = vmatpush1.msra.mxu0 0.0
        %1758 = vmatprep.subr.mxu0 0.0
        %1759 = vmatpush1.msra.mxu0 0.0
        %1760 = vmatprep.subr.mxu0 0.0
        %1761 = vmatpush1.msra.mxu0 0.0
        %1762 = vmatprep.subr.mxu0 0.0
        %1763 = vmatpush1.msra.mxu0 0.0
        %1764 = vmatprep.subr.mxu0 0.0
        %1765 = vmatpush1.msra.mxu0 0.0
        %1766 = vmatprep.subr.mxu0 0.0
        %1767 = vmatpush1.msra.mxu0 0.0
        %1768 = vmatprep.subr.mxu0 0.0
        %1769 = vmatpush1.msra.mxu0 0.0
        %1770 = vmatprep.subr.mxu0 0.0
        %1771 = vmatpush1.msra.mxu0 0.0
        %1772 = vmatprep.subr.mxu0 0.0
        %1773 = vmatpush1.msra.mxu0 0.0
        %1774 = vmatprep.subr.mxu0 0.0
        %1775 = vmatpush1.msra.mxu0 0.0
        %1776 = vmatprep.mubr.f32.mxu0 0.0
        %1777 = vmatmul.mubr.f32.gmra.mrb[0].mxu0 %v1707
        %v1778 = vpop.f32.mrb[0].mxu0
        %v1779 = vadd.f32 0.0, %v1778
        %v1780 = vpop.f32.mrb[0].mxu0
        %1781 = vmatprep.mubr.f32.mxu0 0.0
        %1782 = vmatmul.mubr.f32.gmra.mrb[0].mxu0 %v1710
        %v1783 = vpop.f32.mrb[0].mxu0
        %v1784 = vadd.f32 0.0, %v1783
        %v1785 = vpop.f32.mrb[0].mxu0
        %1786 = vdwg.mxu0
        %v1788 = vsel %vm1017, %v1779, 0
        %v1791 = vsel %vm1017, %v1784, 0
        %1793 = vmatprep.subr.mxu0 0.0
        %1794 = vmatpush1.msra.mxu0 %v1008
        %1795 = vmatprep.subr.mxu0 0.0
        %1796 = vmatpush1.msra.mxu0 %v1009
        %1797 = vmatprep.subr.mxu0 0.0
        %1798 = vmatpush1.msra.mxu0 %v1010
        %1799 = vmatprep.subr.mxu0 0.0
        %1800 = vmatpush1.msra.mxu0 %v1011
        %1801 = vmatprep.subr.mxu0 0.0
        %1802 = vmatpush1.msra.mxu0 0.0
        %1803 = vmatprep.subr.mxu0 0.0
        %1804 = vmatpush1.msra.mxu0 0.0
        %1805 = vmatprep.subr.mxu0 0.0
        %1806 = vmatpush1.msra.mxu0 0.0
        %1807 = vmatprep.subr.mxu0 0.0
        %1808 = vmatpush1.msra.mxu0 0.0
        %1809 = vmatprep.subr.mxu0 0.0
        %1810 = vmatpush1.msra.mxu0 0.0
        %1811 = vmatprep.subr.mxu0 0.0
        %1812 = vmatpush1.msra.mxu0 0.0
        %1813 = vmatprep.subr.mxu0 0.0
        %1814 = vmatpush1.msra.mxu0 0.0
        %1815 = vmatprep.subr.mxu0 0.0
        %1816 = vmatpush1.msra.mxu0 0.0
        %1817 = vmatprep.subr.mxu0 0.0
        %1818 = vmatpush1.msra.mxu0 0.0
        %1819 = vmatprep.subr.mxu0 0.0
        %1820 = vmatpush1.msra.mxu0 0.0
        %1821 = vmatprep.subr.mxu0 0.0
        %1822 = vmatpush1.msra.mxu0 0.0
        %1823 = vmatprep.subr.mxu0 0.0
        %1824 = vmatpush1.msra.mxu0 0.0
        %1825 = vmatprep.subr.mxu0 0.0
        %1826 = vmatpush1.msra.mxu0 0.0
        %1827 = vmatprep.subr.mxu0 0.0
        %1828 = vmatpush1.msra.mxu0 0.0
        %1829 = vmatprep.subr.mxu0 0.0
        %1830 = vmatpush1.msra.mxu0 0.0
        %1831 = vmatprep.subr.mxu0 0.0
        %1832 = vmatpush1.msra.mxu0 0.0
        %1833 = vmatprep.subr.mxu0 0.0
        %1834 = vmatpush1.msra.mxu0 0.0
        %1835 = vmatprep.subr.mxu0 0.0
        %1836 = vmatpush1.msra.mxu0 0.0
        %1837 = vmatprep.subr.mxu0 0.0
        %1838 = vmatpush1.msra.mxu0 0.0
        %1839 = vmatprep.subr.mxu0 0.0
        %1840 = vmatpush1.msra.mxu0 0.0
        %1841 = vmatprep.subr.mxu0 0.0
        %1842 = vmatpush1.msra.mxu0 0.0
        %1843 = vmatprep.subr.mxu0 0.0
        %1844 = vmatpush1.msra.mxu0 0.0
        %1845 = vmatprep.subr.mxu0 0.0
        %1846 = vmatpush1.msra.mxu0 0.0
        %1847 = vmatprep.subr.mxu0 0.0
        %1848 = vmatpush1.msra.mxu0 0.0
        %1849 = vmatprep.subr.mxu0 0.0
        %1850 = vmatpush1.msra.mxu0 0.0
        %1851 = vmatprep.subr.mxu0 0.0
        %1852 = vmatpush1.msra.mxu0 0.0
        %1853 = vmatprep.subr.mxu0 0.0
        %1854 = vmatpush1.msra.mxu0 0.0
        %1855 = vmatprep.subr.mxu0 0.0
        %1856 = vmatpush1.msra.mxu0 0.0
        %1857 = vmatprep.mubr.f32.mxu0 0.0
        %1858 = vmatmul.mubr.f32.gmra.mrb[0].mxu0 %v1788
        %v1859 = vpop.f32.mrb[0].mxu0
        %v1860 = vadd.f32 0.0, %v1859
        %v1861 = vpop.f32.mrb[0].mxu0
        %1862 = vmatprep.mubr.f32.mxu0 0.0
        %1863 = vmatmul.mubr.f32.gmra.mrb[0].mxu0 %v1791
        %v1864 = vpop.f32.mrb[0].mxu0
        %v1865 = vadd.f32 0.0, %v1864
        %v1866 = vpop.f32.mrb[0].mxu0
        %1867 = vdwg.mxu0
        %v1868 = vadd.f32 %v1575, %v1860
        %v1869 = vadd.f32 %v1580, %v1865
        %1870 = vrot.lane.b32.xlu0 %v797, 32
        %v1871 = vpop.permute.xlu0 %1870
        %1872 = vrot.lane.b32.xlu0 %v802, 32
        %v1873 = vpop.permute.xlu0 %1872
        %1874 = vrot.lane.b32.xlu0 %v894, 32
        %v1875 = vpop.permute.xlu0 %1874
        %1876 = vrot.lane.b32.xlu0 %v899, 32
        %v1877 = vpop.permute.xlu0 %1876
        %v1878 = vsel %vm1017, %v1871, 0
        %v1880 = vsel %vm1017, %v1873, 0
        %v1882 = vsel %vm1017, %v1875, 0
        %v1884 = vsel %vm1017, %v1877, 0
        %1886 = vmatprep.subr.mxu0 0.0
        %1887 = vmatpush1.xpose.msra.mxu0 %v1882
        %1888 = vmatprep.subr.mxu0 0.0
        %1889 = vmatpush1.xpose.msra.mxu0 %v1884
        %1890 = vmatprep.subr.mxu0 0.0
        %1891 = vmatpush1.xpose.msra.mxu0 0.0
        %1892 = vmatprep.subr.mxu0 0.0
        %1893 = vmatpush1.xpose.msra.mxu0 0.0
        %1894 = vmatprep.subr.mxu0 0.0
        %1895 = vmatpush1.xpose.msra.mxu0 0.0
        %1896 = vmatprep.subr.mxu0 0.0
        %1897 = vmatpush1.xpose.msra.mxu0 0.0
        %1898 = vmatprep.subr.mxu0 0.0
        %1899 = vmatpush1.xpose.msra.mxu0 0.0
        %1900 = vmatprep.subr.mxu0 0.0
        %1901 = vmatpush1.xpose.msra.mxu0 0.0
        %1902 = vmatprep.subr.mxu0 0.0
        %1903 = vmatpush1.xpose.msra.mxu0 0.0
        %1904 = vmatprep.subr.mxu0 0.0
        %1905 = vmatpush1.xpose.msra.mxu0 0.0
        %1906 = vmatprep.subr.mxu0 0.0
        %1907 = vmatpush1.xpose.msra.mxu0 0.0
        %1908 = vmatprep.subr.mxu0 0.0
        %1909 = vmatpush1.xpose.msra.mxu0 0.0
        %1910 = vmatprep.subr.mxu0 0.0
        %1911 = vmatpush1.xpose.msra.mxu0 0.0
        %1912 = vmatprep.subr.mxu0 0.0
        %1913 = vmatpush1.xpose.msra.mxu0 0.0
        %1914 = vmatprep.subr.mxu0 0.0
        %1915 = vmatpush1.xpose.msra.mxu0 0.0
        %1916 = vmatprep.subr.mxu0 0.0
        %1917 = vmatpush1.xpose.msra.mxu0 0.0
        %1918 = vmatprep.subr.mxu0 0.0
        %1919 = vmatpush1.xpose.msra.mxu0 0.0
        %1920 = vmatprep.subr.mxu0 0.0
        %1921 = vmatpush1.xpose.msra.mxu0 0.0
        %1922 = vmatprep.subr.mxu0 0.0
        %1923 = vmatpush1.xpose.msra.mxu0 0.0
        %1924 = vmatprep.subr.mxu0 0.0
        %1925 = vmatpush1.xpose.msra.mxu0 0.0
        %1926 = vmatprep.subr.mxu0 0.0
        %1927 = vmatpush1.xpose.msra.mxu0 0.0
        %1928 = vmatprep.subr.mxu0 0.0
        %1929 = vmatpush1.xpose.msra.mxu0 0.0
        %1930 = vmatprep.subr.mxu0 0.0
        %1931 = vmatpush1.xpose.msra.mxu0 0.0
        %1932 = vmatprep.subr.mxu0 0.0
        %1933 = vmatpush1.xpose.msra.mxu0 0.0
        %1934 = vmatprep.subr.mxu0 0.0
        %1935 = vmatpush1.xpose.msra.mxu0 0.0
        %1936 = vmatprep.subr.mxu0 0.0
        %1937 = vmatpush1.xpose.msra.mxu0 0.0
        %1938 = vmatprep.subr.mxu0 0.0
        %1939 = vmatpush1.xpose.msra.mxu0 0.0
        %1940 = vmatprep.subr.mxu0 0.0
        %1941 = vmatpush1.xpose.msra.mxu0 0.0
        %1942 = vmatprep.subr.mxu0 0.0
        %1943 = vmatpush1.xpose.msra.mxu0 0.0
        %1944 = vmatprep.subr.mxu0 0.0
        %1945 = vmatpush1.xpose.msra.mxu0 0.0
        %1946 = vmatprep.subr.mxu0 0.0
        %1947 = vmatpush1.xpose.msra.mxu0 0.0
        %1948 = vmatprep.subr.mxu0 0.0
        %1949 = vmatpush1.xpose.msra.mxu0 0.0
        %1950 = vmatprep.mubr.f32.mxu0 0.0
        %1951 = vmatmul.mubr.f32.gmra.mrb[0].mxu0 %v1878
        %v1952 = vpop.f32.mrb[0].mxu0
        %v1953 = vadd.f32 0.0, %v1952
        %v1954 = vpop.f32.mrb[0].mxu0
        %1955 = vmatprep.mubr.f32.mxu0 0.0
        %1956 = vmatmul.mubr.f32.gmra.mrb[0].mxu0 %v1880
        %v1957 = vpop.f32.mrb[0].mxu0
        %v1958 = vadd.f32 0.0, %v1957
        %v1959 = vpop.f32.mrb[0].mxu0
        %1960 = vdwg.mxu0
        %v1961 = vmul.f32 %v1953, 0.17677669
        %v1962 = vmul.f32 %v1958, 0.17677669
        %v1963 = vsel %vm1107, %v1961, -1e+09
        %v1964 = vsel %vm1108, %v1962, -1e+09
        %v1965 = vsel %vm1111, %v1963, -inf
        %1966 = vmax.xlane.f32.xlu0 %v1965
        %v1967 = vpop.xlane.xlu0 %1966
        %v1968 = vsel %vm1111, %v1964, -inf
        %1969 = vmax.xlane.f32.xlu0 %v1968
        %v1970 = vpop.xlane.xlu0 %1969
        %v1971 = vsub.f32 %v1963, %v1967
        %v1972 = vsub.f32 %v1964, %v1970
        %v1973 = vmul.f32 %v1971, 1.442695
        %v1974 = vpow.pop %v1973
        %v1975 = vmul.f32 %v1972, 1.442695
        %v1976 = vpow.pop %v1975
        %v1977 = vsel %vm1111, %v1974, 0.0
        %1978 = vadd.xlane.f32.xlu0 %v1977
        %v1979 = vpop.xlane.xlu0 %1978
        %v1980 = vsel %vm1111, %v1976, 0.0
        %1981 = vadd.xlane.f32.xlu0 %v1980
        %v1982 = vpop.xlane.xlu0 %1981
        %v1983 = vrcp.pop %v1979
        %v1984 = vmul.f32 %v1974, %v1983
        %v1985 = vrcp.pop %v1982
        %v1986 = vmul.f32 %v1976, %v1985
        %1987 = vrot.lane.b32.xlu0 %v991, 32
        %v1988 = vpop.permute.xlu0 %1987
        %1989 = vrot.lane.b32.xlu0 %v996, 32
        %v1990 = vpop.permute.xlu0 %1989
        %v1994 = vsel %vm1111, %v1984, 0
        %v1997 = vsel %vm1111, %v1986, 0
        %1999 = vmatprep.subr.mxu0 0.0
        %2000 = vmatpush1.msra.mxu0 %v1988
        %2001 = vmatprep.subr.mxu0 0.0
        %2002 = vmatpush1.msra.mxu0 %v1990
        %2003 = vmatprep.subr.mxu0 0.0
        %2004 = vmatpush1.msra.mxu0 0.0
        %2005 = vmatprep.subr.mxu0 0.0
        %2006 = vmatpush1.msra.mxu0 0.0
        %2007 = vmatprep.subr.mxu0 0.0
        %2008 = vmatpush1.msra.mxu0 0.0
        %2009 = vmatprep.subr.mxu0 0.0
        %2010 = vmatpush1.msra.mxu0 0.0
        %2011 = vmatprep.subr.mxu0 0.0
        %2012 = vmatpush1.msra.mxu0 0.0
        %2013 = vmatprep.subr.mxu0 0.0
        %2014 = vmatpush1.msra.mxu0 0.0
        %2015 = vmatprep.subr.mxu0 0.0
        %2016 = vmatpush1.msra.mxu0 0.0
        %2017 = vmatprep.subr.mxu0 0.0
        %2018 = vmatpush1.msra.mxu0 0.0
        %2019 = vmatprep.subr.mxu0 0.0
        %2020 = vmatpush1.msra.mxu0 0.0
        %2021 = vmatprep.subr.mxu0 0.0
        %2022 = vmatpush1.msra.mxu0 0.0
        %2023 = vmatprep.subr.mxu0 0.0
        %2024 = vmatpush1.msra.mxu0 0.0
        %2025 = vmatprep.subr.mxu0 0.0
        %2026 = vmatpush1.msra.mxu0 0.0
        %2027 = vmatprep.subr.mxu0 0.0
        %2028 = vmatpush1.msra.mxu0 0.0
        %2029 = vmatprep.subr.mxu0 0.0
        %2030 = vmatpush1.msra.mxu0 0.0
        %2031 = vmatprep.subr.mxu0 0.0
        %2032 = vmatpush1.msra.mxu0 0.0
        %2033 = vmatprep.subr.mxu0 0.0
        %2034 = vmatpush1.msra.mxu0 0.0
        %2035 = vmatprep.subr.mxu0 0.0
        %2036 = vmatpush1.msra.mxu0 0.0
        %2037 = vmatprep.subr.mxu0 0.0
        %2038 = vmatpush1.msra.mxu0 0.0
        %2039 = vmatprep.subr.mxu0 0.0
        %2040 = vmatpush1.msra.mxu0 0.0
        %2041 = vmatprep.subr.mxu0 0.0
        %2042 = vmatpush1.msra.mxu0 0.0
        %2043 = vmatprep.subr.mxu0 0.0
        %2044 = vmatpush1.msra.mxu0 0.0
        %2045 = vmatprep.subr.mxu0 0.0
        %2046 = vmatpush1.msra.mxu0 0.0
        %2047 = vmatprep.subr.mxu0 0.0
        %2048 = vmatpush1.msra.mxu0 0.0
        %2049 = vmatprep.subr.mxu0 0.0
        %2050 = vmatpush1.msra.mxu0 0.0
        %2051 = vmatprep.subr.mxu0 0.0
        %2052 = vmatpush1.msra.mxu0 0.0
        %2053 = vmatprep.subr.mxu0 0.0
        %2054 = vmatpush1.msra.mxu0 0.0
        %2055 = vmatprep.subr.mxu0 0.0
        %2056 = vmatpush1.msra.mxu0 0.0
        %2057 = vmatprep.subr.mxu0 0.0
        %2058 = vmatpush1.msra.mxu0 0.0
        %2059 = vmatprep.subr.mxu0 0.0
        %2060 = vmatpush1.msra.mxu0 0.0
        %2061 = vmatprep.subr.mxu0 0.0
        %2062 = vmatpush1.msra.mxu0 0.0
        %2063 = vmatprep.mubr.f32.mxu0 0.0
        %2064 = vmatmul.mubr.f32.gmra.mrb[0].mxu0 %v1994
        %v2065 = vpop.f32.mrb[0].mxu0
        %v2066 = vadd.f32 0.0, %v2065
        %v2067 = vpop.f32.mrb[0].mxu0
        %2068 = vmatprep.mubr.f32.mxu0 0.0
        %2069 = vmatmul.mubr.f32.gmra.mrb[0].mxu0 %v1997
        %v2070 = vpop.f32.mrb[0].mxu0
        %v2071 = vadd.f32 0.0, %v2070
        %v2072 = vpop.f32.mrb[0].mxu0
        %2073 = vdwg.mxu0
        %v2075 = vsel %vm1017, %v2066, 0
        %v2078 = vsel %vm1017, %v2071, 0
        %2080 = vmatprep.subr.mxu0 0.0
        %2081 = vmatpush1.msra.mxu0 %v1012
        %2082 = vmatprep.subr.mxu0 0.0
        %2083 = vmatpush1.msra.mxu0 %v1013
        %2084 = vmatprep.subr.mxu0 0.0
        %2085 = vmatpush1.msra.mxu0 %v1014
        %2086 = vmatprep.subr.mxu0 0.0
        %2087 = vmatpush1.msra.mxu0 %v1015
        %2088 = vmatprep.subr.mxu0 0.0
        %2089 = vmatpush1.msra.mxu0 0.0
        %2090 = vmatprep.subr.mxu0 0.0
        %2091 = vmatpush1.msra.mxu0 0.0
        %2092 = vmatprep.subr.mxu0 0.0
        %2093 = vmatpush1.msra.mxu0 0.0
        %2094 = vmatprep.subr.mxu0 0.0
        %2095 = vmatpush1.msra.mxu0 0.0
        %2096 = vmatprep.subr.mxu0 0.0
        %2097 = vmatpush1.msra.mxu0 0.0
        %2098 = vmatprep.subr.mxu0 0.0
        %2099 = vmatpush1.msra.mxu0 0.0
        %2100 = vmatprep.subr.mxu0 0.0
        %2101 = vmatpush1.msra.mxu0 0.0
        %2102 = vmatprep.subr.mxu0 0.0
        %2103 = vmatpush1.msra.mxu0 0.0
        %2104 = vmatprep.subr.mxu0 0.0
        %2105 = vmatpush1.msra.mxu0 0.0
        %2106 = vmatprep.subr.mxu0 0.0
        %2107 = vmatpush1.msra.mxu0 0.0
        %2108 = vmatprep.subr.mxu0 0.0
        %2109 = vmatpush1.msra.mxu0 0.0
        %2110 = vmatprep.subr.mxu0 0.0
        %2111 = vmatpush1.msra.mxu0 0.0
        %2112 = vmatprep.subr.mxu0 0.0
        %2113 = vmatpush1.msra.mxu0 0.0
        %2114 = vmatprep.subr.mxu0 0.0
        %2115 = vmatpush1.msra.mxu0 0.0
        %2116 = vmatprep.subr.mxu0 0.0
        %2117 = vmatpush1.msra.mxu0 0.0
        %2118 = vmatprep.subr.mxu0 0.0
        %2119 = vmatpush1.msra.mxu0 0.0
        %2120 = vmatprep.subr.mxu0 0.0
        %2121 = vmatpush1.msra.mxu0 0.0
        %2122 = vmatprep.subr.mxu0 0.0
        %2123 = vmatpush1.msra.mxu0 0.0
        %2124 = vmatprep.subr.mxu0 0.0
        %2125 = vmatpush1.msra.mxu0 0.0
        %2126 = vmatprep.subr.mxu0 0.0
        %2127 = vmatpush1.msra.mxu0 0.0
        %2128 = vmatprep.subr.mxu0 0.0
        %2129 = vmatpush1.msra.mxu0 0.0
        %2130 = vmatprep.subr.mxu0 0.0
        %2131 = vmatpush1.msra.mxu0 0.0
        %2132 = vmatprep.subr.mxu0 0.0
        %2133 = vmatpush1.msra.mxu0 0.0
        %2134 = vmatprep.subr.mxu0 0.0
        %2135 = vmatpush1.msra.mxu0 0.0
        %2136 = vmatprep.subr.mxu0 0.0
        %2137 = vmatpush1.msra.mxu0 0.0
        %2138 = vmatprep.subr.mxu0 0.0
        %2139 = vmatpush1.msra.mxu0 0.0
        %2140 = vmatprep.subr.mxu0 0.0
        %2141 = vmatpush1.msra.mxu0 0.0
        %2142 = vmatprep.subr.mxu0 0.0
        %2143 = vmatpush1.msra.mxu0 0.0
        %2144 = vmatprep.mubr.f32.mxu0 0.0
        %2145 = vmatmul.mubr.f32.gmra.mrb[0].mxu0 %v2075
        %v2146 = vpop.f32.mrb[0].mxu0
        %v2147 = vadd.f32 0.0, %v2146
        %v2148 = vpop.f32.mrb[0].mxu0
        %2149 = vmatprep.mubr.f32.mxu0 0.0
        %2150 = vmatmul.mubr.f32.gmra.mrb[0].mxu0 %v2078
        %v2151 = vpop.f32.mrb[0].mxu0
        %v2152 = vadd.f32 0.0, %v2151
        %v2153 = vpop.f32.mrb[0].mxu0
        %2154 = vdwg.mxu0
        %v2155 = vadd.f32 %v1868, %v2147
        %v2156 = vadd.f32 %v1869, %v2152
        %v2157 = vlaneseq
        %v2158 = vshrl.u32 %v2157, 7
        %v2159 = vsub.s32 0, %v2158
        %v2160 = vrot.slane %v1016, %v2159
        %v2161 = vadd.f32 %v2155, %v2160
        %v2162 = vadd.f32 %v2156, %v2160
        %v2163 = vadd.f32 %v650, %v2161
        %v2164 = vadd.f32 %v651, %v2162
        %s2165 = scalar_lea.vmem [#allocation10], 128
        %v2166 = vld [vmem:[%s2165] sm:$0xff]
        %v2167 = vld [vmem:[%s2165 + $0x8] sm:$0xff]
        %v2168 = vld [vmem:[%s2165 + $0x10] sm:$0xff]
        %v2169 = vld [vmem:[%s2165 + $0x18] sm:$0xff]
        %v2170 = vld [vmem:[%s2165 + $0x20] sm:$0xff]
        %v2171 = vld [vmem:[%s2165 + $0x28] sm:$0xff]
        %v2172 = vld [vmem:[%s2165 + $0x30] sm:$0xff]
        %v2173 = vld [vmem:[%s2165 + $0x38] sm:$0xff]
        %v2174 = vld [vmem:[%s2165 + $0x40] sm:$0xff]
        %v2175 = vld [vmem:[%s2165 + $0x48] sm:$0xff]
        %v2176 = vld [vmem:[%s2165 + $0x50] sm:$0xff]
        %v2177 = vld [vmem:[%s2165 + $0x58] sm:$0xff]
        %v2178 = vld [vmem:[%s2165 + $0x60] sm:$0xff]
        %v2179 = vld [vmem:[%s2165 + $0x68] sm:$0xff]
        %v2180 = vld [vmem:[%s2165 + $0x70] sm:$0xff]
        %v2181 = vld [vmem:[%s2165 + $0x78] sm:$0xff]
        %v2182 = vld [vmem:[%s7 + $0x1] sm:$0x1]
        %v2183 = vlaneseq
        %v2184 = vshrl.u32 %v2183, 7
        %v2185 = vsub.s32 0, %v2184
        %v2186 = vrot.slane %v2182, %v2185
        %2187 = vmatprep.subr.mxu0 0.0
        %2188 = vmatpush1.msra.mxu0 %v2166
        %2189 = vmatprep.subr.mxu0 0.0
        %2190 = vmatpush1.msra.mxu0 %v2167
        %2191 = vmatprep.subr.mxu0 0.0
        %2192 = vmatpush1.msra.mxu0 %v2168
        %2193 = vmatprep.subr.mxu0 0.0
        %2194 = vmatpush1.msra.mxu0 %v2169
        %2195 = vmatprep.subr.mxu0 0.0
        %2196 = vmatpush1.msra.mxu0 %v2170
        %2197 = vmatprep.subr.mxu0 0.0
        %2198 = vmatpush1.msra.mxu0 %v2171
        %2199 = vmatprep.subr.mxu0 0.0
        %2200 = vmatpush1.msra.mxu0 %v2172
        %2201 = vmatprep.subr.mxu0 0.0
        %2202 = vmatpush1.msra.mxu0 %v2173
        %2203 = vmatprep.subr.mxu0 0.0
        %2204 = vmatpush1.msra.mxu0 %v2174
        %2205 = vmatprep.subr.mxu0 0.0
        %2206 = vmatpush1.msra.mxu0 %v2175
        %2207 = vmatprep.subr.mxu0 0.0
        %2208 = vmatpush1.msra.mxu0 %v2176
        %2209 = vmatprep.subr.mxu0 0.0
        %2210 = vmatpush1.msra.mxu0 %v2177
        %2211 = vmatprep.subr.mxu0 0.0
        %2212 = vmatpush1.msra.mxu0 %v2178
        %2213 = vmatprep.subr.mxu0 0.0
        %2214 = vmatpush1.msra.mxu0 %v2179
        %2215 = vmatprep.subr.mxu0 0.0
        %2216 = vmatpush1.msra.mxu0 %v2180
        %2217 = vmatprep.subr.mxu0 0.0
        %2218 = vmatpush1.msra.mxu0 %v2181
        %2219 = vmatprep.subr.mxu0 0.0
        %2220 = vmatpush1.msra.mxu0 0.0
        %2221 = vmatprep.subr.mxu0 0.0
        %2222 = vmatpush1.msra.mxu0 0.0
        %2223 = vmatprep.subr.mxu0 0.0
        %2224 = vmatpush1.msra.mxu0 0.0
        %2225 = vmatprep.subr.mxu0 0.0
        %2226 = vmatpush1.msra.mxu0 0.0
        %2227 = vmatprep.subr.mxu0 0.0
        %2228 = vmatpush1.msra.mxu0 0.0
        %2229 = vmatprep.subr.mxu0 0.0
        %2230 = vmatpush1.msra.mxu0 0.0
        %2231 = vmatprep.subr.mxu0 0.0
        %2232 = vmatpush1.msra.mxu0 0.0
        %2233 = vmatprep.subr.mxu0 0.0
        %2234 = vmatpush1.msra.mxu0 0.0
        %2235 = vmatprep.subr.mxu0 0.0
        %2236 = vmatpush1.msra.mxu0 0.0
        %2237 = vmatprep.subr.mxu0 0.0
        %2238 = vmatpush1.msra.mxu0 0.0
        %2239 = vmatprep.subr.mxu0 0.0
        %2240 = vmatpush1.msra.mxu0 0.0
        %2241 = vmatprep.subr.mxu0 0.0
        %2242 = vmatpush1.msra.mxu0 0.0
        %2243 = vmatprep.subr.mxu0 0.0
        %2244 = vmatpush1.msra.mxu0 0.0
        %2245 = vmatprep.subr.mxu0 0.0
        %2246 = vmatpush1.msra.mxu0 0.0
        %2247 = vmatprep.subr.mxu0 0.0
        %2248 = vmatpush1.msra.mxu0 0.0
        %2249 = vmatprep.subr.mxu0 0.0
        %2250 = vmatpush1.msra.mxu0 0.0
        %2251 = vmatprep.mubr.f32.mxu0 0.0
        %2252 = vmatmul.mubr.f32.gmra.mrb[0].mxu0 %v652
        %v2253 = vpop.f32.mrb[0].mxu0
        %v2254 = vadd.f32 %v2186, %v2253
        %v2255 = vpop.f32.mrb[0].mxu0
        %2256 = vmatprep.mubr.f32.mxu0 0.0
        %2257 = vmatmul.mubr.f32.gmra.mrb[0].mxu0 %v653
        %v2258 = vpop.f32.mrb[0].mxu0
        %v2259 = vadd.f32 %v2186, %v2258
        %v2260 = vpop.f32.mrb[0].mxu0
        %2261 = vdwg.mxu0
        %s2262 = scalar_lea.vmem [#allocation10], 256
        %v2263 = vld [vmem:[%s2262] sm:$0xff]
        %v2264 = vld [vmem:[%s2262 + $0x8] sm:$0xff]
        %v2265 = vld [vmem:[%s2262 + $0x10] sm:$0xff]
        %v2266 = vld [vmem:[%s2262 + $0x18] sm:$0xff]
        %v2267 = vld [vmem:[%s2262 + $0x20] sm:$0xff]
        %v2268 = vld [vmem:[%s2262 + $0x28] sm:$0xff]
        %v2269 = vld [vmem:[%s2262 + $0x30] sm:$0xff]
        %v2270 = vld [vmem:[%s2262 + $0x38] sm:$0xff]
        %v2271 = vld [vmem:[%s2262 + $0x40] sm:$0xff]
        %v2272 = vld [vmem:[%s2262 + $0x48] sm:$0xff]
        %v2273 = vld [vmem:[%s2262 + $0x50] sm:$0xff]
        %v2274 = vld [vmem:[%s2262 + $0x58] sm:$0xff]
        %v2275 = vld [vmem:[%s2262 + $0x60] sm:$0xff]
        %v2276 = vld [vmem:[%s2262 + $0x68] sm:$0xff]
        %v2277 = vld [vmem:[%s2262 + $0x70] sm:$0xff]
        %v2278 = vld [vmem:[%s2262 + $0x78] sm:$0xff]
        %v2279 = vld [vmem:[%s7 + $0x2] sm:$0x1]
        %v2280 = vlaneseq
        %v2281 = vshrl.u32 %v2280, 7
        %v2282 = vsub.s32 0, %v2281
        %v2283 = vrot.slane %v2279, %v2282
        %2284 = vmatprep.subr.mxu0 0.0
        %2285 = vmatpush1.msra.mxu0 %v2263
        %2286 = vmatprep.subr.mxu0 0.0
        %2287 = vmatpush1.msra.mxu0 %v2264
        %2288 = vmatprep.subr.mxu0 0.0
        %2289 = vmatpush1.msra.mxu0 %v2265
        %2290 = vmatprep.subr.mxu0 0.0
        %2291 = vmatpush1.msra.mxu0 %v2266
        %2292 = vmatprep.subr.mxu0 0.0
        %2293 = vmatpush1.msra.mxu0 %v2267
        %2294 = vmatprep.subr.mxu0 0.0
        %2295 = vmatpush1.msra.mxu0 %v2268
        %2296 = vmatprep.subr.mxu0 0.0
        %2297 = vmatpush1.msra.mxu0 %v2269
        %2298 = vmatprep.subr.mxu0 0.0
        %2299 = vmatpush1.msra.mxu0 %v2270
        %2300 = vmatprep.subr.mxu0 0.0
        %2301 = vmatpush1.msra.mxu0 %v2271
        %2302 = vmatprep.subr.mxu0 0.0
        %2303 = vmatpush1.msra.mxu0 %v2272
        %2304 = vmatprep.subr.mxu0 0.0
        %2305 = vmatpush1.msra.mxu0 %v2273
        %2306 = vmatprep.subr.mxu0 0.0
        %2307 = vmatpush1.msra.mxu0 %v2274
        %2308 = vmatprep.subr.mxu0 0.0
        %2309 = vmatpush1.msra.mxu0 %v2275
        %2310 = vmatprep.subr.mxu0 0.0
        %2311 = vmatpush1.msra.mxu0 %v2276
        %2312 = vmatprep.subr.mxu0 0.0
        %2313 = vmatpush1.msra.mxu0 %v2277
        %2314 = vmatprep.subr.mxu0 0.0
        %2315 = vmatpush1.msra.mxu0 %v2278
        %2316 = vmatprep.subr.mxu0 0.0
        %2317 = vmatpush1.msra.mxu0 0.0
        %2318 = vmatprep.subr.mxu0 0.0
        %2319 = vmatpush1.msra.mxu0 0.0
        %2320 = vmatprep.subr.mxu0 0.0
        %2321 = vmatpush1.msra.mxu0 0.0
        %2322 = vmatprep.subr.mxu0 0.0
        %2323 = vmatpush1.msra.mxu0 0.0
        %2324 = vmatprep.subr.mxu0 0.0
        %2325 = vmatpush1.msra.mxu0 0.0
        %2326 = vmatprep.subr.mxu0 0.0
        %2327 = vmatpush1.msra.mxu0 0.0
        %2328 = vmatprep.subr.mxu0 0.0
        %2329 = vmatpush1.msra.mxu0 0.0
        %2330 = vmatprep.subr.mxu0 0.0
        %2331 = vmatpush1.msra.mxu0 0.0
        %2332 = vmatprep.subr.mxu0 0.0
        %2333 = vmatpush1.msra.mxu0 0.0
        %2334 = vmatprep.subr.mxu0 0.0
        %2335 = vmatpush1.msra.mxu0 0.0
        %2336 = vmatprep.subr.mxu0 0.0
        %2337 = vmatpush1.msra.mxu0 0.0
        %2338 = vmatprep.subr.mxu0 0.0
        %2339 = vmatpush1.msra.mxu0 0.0
        %2340 = vmatprep.subr.mxu0 0.0
        %2341 = vmatpush1.msra.mxu0 0.0
        %2342 = vmatprep.subr.mxu0 0.0
        %2343 = vmatpush1.msra.mxu0 0.0
        %2344 = vmatprep.subr.mxu0 0.0
        %2345 = vmatpush1.msra.mxu0 0.0
        %2346 = vmatprep.subr.mxu0 0.0
        %2347 = vmatpush1.msra.mxu0 0.0
        %2348 = vmatprep.mubr.f32.mxu0 0.0
        %2349 = vmatmul.mubr.f32.gmra.mrb[0].mxu0 %v652
        %v2350 = vpop.f32.mrb[0].mxu0
        %v2351 = vadd.f32 %v2283, %v2350
        %v2352 = vpop.f32.mrb[0].mxu0
        %2353 = vmatprep.mubr.f32.mxu0 0.0
        %2354 = vmatmul.mubr.f32.gmra.mrb[0].mxu0 %v653
        %v2355 = vpop.f32.mrb[0].mxu0
        %v2356 = vadd.f32 %v2283, %v2355
        %v2357 = vpop.f32.mrb[0].mxu0
        %2358 = vdwg.mxu0
        %v2359 = vld [vmem:[#allocation10] sm:$0xff]
        %v2360 = vld [vmem:[#allocation10 + $0x8] sm:$0xff]
        %v2361 = vld [vmem:[#allocation10 + $0x10] sm:$0xff]
        %v2362 = vld [vmem:[#allocation10 + $0x18] sm:$0xff]
        %v2363 = vld [vmem:[#allocation10 + $0x20] sm:$0xff]
        %v2364 = vld [vmem:[#allocation10 + $0x28] sm:$0xff]
        %v2365 = vld [vmem:[#allocation10 + $0x30] sm:$0xff]
        %v2366 = vld [vmem:[#allocation10 + $0x38] sm:$0xff]
        %v2367 = vld [vmem:[#allocation10 + $0x40] sm:$0xff]
        %v2368 = vld [vmem:[#allocation10 + $0x48] sm:$0xff]
        %v2369 = vld [vmem:[#allocation10 + $0x50] sm:$0xff]
        %v2370 = vld [vmem:[#allocation10 + $0x58] sm:$0xff]
        %v2371 = vld [vmem:[#allocation10 + $0x60] sm:$0xff]
        %v2372 = vld [vmem:[#allocation10 + $0x68] sm:$0xff]
        %v2373 = vld [vmem:[#allocation10 + $0x70] sm:$0xff]
        %v2374 = vld [vmem:[#allocation10 + $0x78] sm:$0xff]
        %v2375 = vld [vmem:[%s7] sm:$0x1]
        %v2376 = vlaneseq
        %v2377 = vshrl.u32 %v2376, 7
        %v2378 = vsub.s32 0, %v2377
        %v2379 = vrot.slane %v2375, %v2378
        %2380 = vmatprep.subr.mxu0 0.0
        %2381 = vmatpush1.msra.mxu0 %v2359
        %2382 = vmatprep.subr.mxu0 0.0
        %2383 = vmatpush1.msra.mxu0 %v2360
        %2384 = vmatprep.subr.mxu0 0.0
        %2385 = vmatpush1.msra.mxu0 %v2361
        %2386 = vmatprep.subr.mxu0 0.0
        %2387 = vmatpush1.msra.mxu0 %v2362
        %2388 = vmatprep.subr.mxu0 0.0
        %2389 = vmatpush1.msra.mxu0 %v2363
        %2390 = vmatprep.subr.mxu0 0.0
        %2391 = vmatpush1.msra.mxu0 %v2364
        %2392 = vmatprep.subr.mxu0 0.0
        %2393 = vmatpush1.msra.mxu0 %v2365
        %2394 = vmatprep.subr.mxu0 0.0
        %2395 = vmatpush1.msra.mxu0 %v2366
        %2396 = vmatprep.subr.mxu0 0.0
        %2397 = vmatpush1.msra.mxu0 %v2367
        %2398 = vmatprep.subr.mxu0 0.0
        %2399 = vmatpush1.msra.mxu0 %v2368
        %2400 = vmatprep.subr.mxu0 0.0
        %2401 = vmatpush1.msra.mxu0 %v2369
        %2402 = vmatprep.subr.mxu0 0.0
        %2403 = vmatpush1.msra.mxu0 %v2370
        %2404 = vmatprep.subr.mxu0 0.0
        %2405 = vmatpush1.msra.mxu0 %v2371
        %2406 = vmatprep.subr.mxu0 0.0
        %2407 = vmatpush1.msra.mxu0 %v2372
        %2408 = vmatprep.subr.mxu0 0.0
        %2409 = vmatpush1.msra.mxu0 %v2373
        %2410 = vmatprep.subr.mxu0 0.0
        %2411 = vmatpush1.msra.mxu0 %v2374
        %2412 = vmatprep.subr.mxu0 0.0
        %2413 = vmatpush1.msra.mxu0 0.0
        %2414 = vmatprep.subr.mxu0 0.0
        %2415 = vmatpush1.msra.mxu0 0.0
        %2416 = vmatprep.subr.mxu0 0.0
        %2417 = vmatpush1.msra.mxu0 0.0
        %2418 = vmatprep.subr.mxu0 0.0
        %2419 = vmatpush1.msra.mxu0 0.0
        %2420 = vmatprep.subr.mxu0 0.0
        %2421 = vmatpush1.msra.mxu0 0.0
        %2422 = vmatprep.subr.mxu0 0.0
        %2423 = vmatpush1.msra.mxu0 0.0
        %2424 = vmatprep.subr.mxu0 0.0
        %2425 = vmatpush1.msra.mxu0 0.0
        %2426 = vmatprep.subr.mxu0 0.0
        %2427 = vmatpush1.msra.mxu0 0.0
        %2428 = vmatprep.subr.mxu0 0.0
        %2429 = vmatpush1.msra.mxu0 0.0
        %2430 = vmatprep.subr.mxu0 0.0
        %2431 = vmatpush1.msra.mxu0 0.0
        %2432 = vmatprep.subr.mxu0 0.0
        %2433 = vmatpush1.msra.mxu0 0.0
        %2434 = vmatprep.subr.mxu0 0.0
        %2435 = vmatpush1.msra.mxu0 0.0
        %2436 = vmatprep.subr.mxu0 0.0
        %2437 = vmatpush1.msra.mxu0 0.0
        %2438 = vmatprep.subr.mxu0 0.0
        %2439 = vmatpush1.msra.mxu0 0.0
        %2440 = vmatprep.subr.mxu0 0.0
        %2441 = vmatpush1.msra.mxu0 0.0
        %2442 = vmatprep.subr.mxu0 0.0
        %2443 = vmatpush1.msra.mxu0 0.0
        %2444 = vmatprep.mubr.f32.mxu0 0.0
        %2445 = vmatmul.mubr.f32.gmra.mrb[0].mxu0 %v2163
        %v2446 = vpop.f32.mrb[0].mxu0
        %v2447 = vadd.f32 %v2379, %v2446
        %v2448 = vpop.f32.mrb[0].mxu0
        %2449 = vmatprep.mubr.f32.mxu0 0.0
        %2450 = vmatmul.mubr.f32.gmra.mrb[0].mxu0 %v2164
        %v2451 = vpop.f32.mrb[0].mxu0
        %v2452 = vadd.f32 %v2379, %v2451
        %v2453 = vpop.f32.mrb[0].mxu0
        %2454 = vdwg.mxu0
        %v2456 = vsel %vm1017, %v2447, 0
        %v2459 = vsel %vm1017, %v2452, 0
        %v2462 = vsel %vm1017, %v2254, 0
        %v2465 = vsel %vm1017, %v2259, 0
        %2467 = vmatprep.subr.mxu0 0.0
        %2468 = vmatpush1.xpose.msra.mxu0 %v2462
        %2469 = vmatprep.subr.mxu0 0.0
        %2470 = vmatpush1.xpose.msra.mxu0 %v2465
        %2471 = vmatprep.subr.mxu0 0.0
        %2472 = vmatpush1.xpose.msra.mxu0 0.0
        %2473 = vmatprep.subr.mxu0 0.0
        %2474 = vmatpush1.xpose.msra.mxu0 0.0
        %2475 = vmatprep.subr.mxu0 0.0
        %2476 = vmatpush1.xpose.msra.mxu0 0.0
        %2477 = vmatprep.subr.mxu0 0.0
        %2478 = vmatpush1.xpose.msra.mxu0 0.0
        %2479 = vmatprep.subr.mxu0 0.0
        %2480 = vmatpush1.xpose.msra.mxu0 0.0
        %2481 = vmatprep.subr.mxu0 0.0
        %2482 = vmatpush1.xpose.msra.mxu0 0.0
        %2483 = vmatprep.subr.mxu0 0.0
        %2484 = vmatpush1.xpose.msra.mxu0 0.0
        %2485 = vmatprep.subr.mxu0 0.0
        %2486 = vmatpush1.xpose.msra.mxu0 0.0
        %2487 = vmatprep.subr.mxu0 0.0
        %2488 = vmatpush1.xpose.msra.mxu0 0.0
        %2489 = vmatprep.subr.mxu0 0.0
        %2490 = vmatpush1.xpose.msra.mxu0 0.0
        %2491 = vmatprep.subr.mxu0 0.0
        %2492 = vmatpush1.xpose.msra.mxu0 0.0
        %2493 = vmatprep.subr.mxu0 0.0
        %2494 = vmatpush1.xpose.msra.mxu0 0.0
        %2495 = vmatprep.subr.mxu0 0.0
        %2496 = vmatpush1.xpose.msra.mxu0 0.0
        %2497 = vmatprep.subr.mxu0 0.0
        %2498 = vmatpush1.xpose.msra.mxu0 0.0
        %2499 = vmatprep.subr.mxu0 0.0
        %2500 = vmatpush1.xpose.msra.mxu0 0.0
        %2501 = vmatprep.subr.mxu0 0.0
        %2502 = vmatpush1.xpose.msra.mxu0 0.0
        %2503 = vmatprep.subr.mxu0 0.0
        %2504 = vmatpush1.xpose.msra.mxu0 0.0
        %2505 = vmatprep.subr.mxu0 0.0
        %2506 = vmatpush1.xpose.msra.mxu0 0.0
        %2507 = vmatprep.subr.mxu0 0.0
        %2508 = vmatpush1.xpose.msra.mxu0 0.0
        %2509 = vmatprep.subr.mxu0 0.0
        %2510 = vmatpush1.xpose.msra.mxu0 0.0
        %2511 = vmatprep.subr.mxu0 0.0
        %2512 = vmatpush1.xpose.msra.mxu0 0.0
        %2513 = vmatprep.subr.mxu0 0.0
        %2514 = vmatpush1.xpose.msra.mxu0 0.0
        %2515 = vmatprep.subr.mxu0 0.0
        %2516 = vmatpush1.xpose.msra.mxu0 0.0
        %2517 = vmatprep.subr.mxu0 0.0
        %2518 = vmatpush1.xpose.msra.mxu0 0.0
        %2519 = vmatprep.subr.mxu0 0.0
        %2520 = vmatpush1.xpose.msra.mxu0 0.0
        %2521 = vmatprep.subr.mxu0 0.0
        %2522 = vmatpush1.xpose.msra.mxu0 0.0
        %2523 = vmatprep.subr.mxu0 0.0
        %2524 = vmatpush1.xpose.msra.mxu0 0.0
        %2525 = vmatprep.subr.mxu0 0.0
        %2526 = vmatpush1.xpose.msra.mxu0 0.0
        %2527 = vmatprep.subr.mxu0 0.0
        %2528 = vmatpush1.xpose.msra.mxu0 0.0
        %2529 = vmatprep.subr.mxu0 0.0
        %2530 = vmatpush1.xpose.msra.mxu0 0.0
        %2531 = vmatprep.mubr.f32.mxu0 0.0
        %2532 = vmatmul.mubr.f32.gmra.mrb[0].mxu0 %v2456
        %v2533 = vpop.f32.mrb[0].mxu0
        %v2534 = vadd.f32 0.0, %v2533
        %v2535 = vpop.f32.mrb[0].mxu0
        %2536 = vmatprep.mubr.f32.mxu0 0.0
        %2537 = vmatmul.mubr.f32.gmra.mrb[0].mxu0 %v2459
        %v2538 = vpop.f32.mrb[0].mxu0
        %v2539 = vadd.f32 0.0, %v2538
        %v2540 = vpop.f32.mrb[0].mxu0
        %2541 = vdwg.mxu0
        %v2542 = vmul.f32 %v2534, 0.17677669
        %v2543 = vmul.f32 %v2539, 0.17677669
        %vm2544 = vcmp.gt.f32.partialorder %v656, 0.0
        %v2545 = vsel %vm2544, 1, 0
        %v2546 = vlaneseq
        %v2547 = vshrl.u32 %v2546, 7
        %v2548 = vsub.s32 0, %v2547
        %v2549 = vrot.slane %v2545, %v2548
        %vm2550 = vcmp.eq.s32.totalorder %v2549, 1
        %v2551 = vsel %vm2550, %v2542, -1e+09
        %v2552 = vsel %vm2550, %v2543, -1e+09
        %v2553 = vsel %vm1111, %v2551, -inf
        %2554 = vmax.xlane.f32.xlu0 %v2553
        %v2555 = vpop.xlane.xlu0 %2554
        %v2556 = vsel %vm1111, %v2552, -inf
        %2557 = vmax.xlane.f32.xlu0 %v2556
        %v2558 = vpop.xlane.xlu0 %2557
        %v2559 = vsub.f32 %v2551, %v2555
        %v2560 = vsub.f32 %v2552, %v2558
        %v2561 = vmul.f32 %v2559, 1.442695
        %v2562 = vpow.pop %v2561
        %v2563 = vmul.f32 %v2560, 1.442695
        %v2564 = vpow.pop %v2563
        %v2565 = vsel %vm1111, %v2562, 0.0
        %2566 = vadd.xlane.f32.xlu0 %v2565
        %v2567 = vpop.xlane.xlu0 %2566
        %v2568 = vsel %vm1111, %v2564, 0.0
        %2569 = vadd.xlane.f32.xlu0 %v2568
        %v2570 = vpop.xlane.xlu0 %2569
        %v2571 = vrcp.pop %v2567
        %v2572 = vmul.f32 %v2562, %v2571
        %v2573 = vrcp.pop %v2570
        %v2574 = vmul.f32 %v2564, %v2573
        %2575 = vst.msk [vmem:[%s646] sm:$0xff] %vm1111, %v2572
        %2576 = vst.msk [vmem:[%s646 + $0x8] sm:$0xff] %vm1111, %v2574
        %2577 = vrot.lane.b32.xlu0 %v2447, 96
        %v2578 = vpop.permute.xlu0 %2577
        %2579 = vrot.lane.b32.xlu0 %v2452, 96
        %v2580 = vpop.permute.xlu0 %2579
        %2581 = vrot.lane.b32.xlu0 %v2254, 96
        %v2582 = vpop.permute.xlu0 %2581
        %2583 = vrot.lane.b32.xlu0 %v2259, 96
        %v2584 = vpop.permute.xlu0 %2583
        %v2585 = vsel %vm1017, %v2578, 0
        %v2587 = vsel %vm1017, %v2580, 0
        %v2589 = vsel %vm1017, %v2582, 0
        %v2591 = vsel %vm1017, %v2584, 0
        %2593 = vmatprep.subr.mxu0 0.0
        %2594 = vmatpush1.xpose.msra.mxu0 %v2589
        %2595 = vmatprep.subr.mxu0 0.0
        %2596 = vmatpush1.xpose.msra.mxu0 %v2591
        %2597 = vmatprep.subr.mxu0 0.0
        %2598 = vmatpush1.xpose.msra.mxu0 0.0
        %2599 = vmatprep.subr.mxu0 0.0
        %2600 = vmatpush1.xpose.msra.mxu0 0.0
        %2601 = vmatprep.subr.mxu0 0.0
        %2602 = vmatpush1.xpose.msra.mxu0 0.0
        %2603 = vmatprep.subr.mxu0 0.0
        %2604 = vmatpush1.xpose.msra.mxu0 0.0
        %2605 = vmatprep.subr.mxu0 0.0
        %2606 = vmatpush1.xpose.msra.mxu0 0.0
        %2607 = vmatprep.subr.mxu0 0.0
        %2608 = vmatpush1.xpose.msra.mxu0 0.0
        %2609 = vmatprep.subr.mxu0 0.0
        %2610 = vmatpush1.xpose.msra.mxu0 0.0
        %2611 = vmatprep.subr.mxu0 0.0
        %2612 = vmatpush1.xpose.msra.mxu0 0.0
        %2613 = vmatprep.subr.mxu0 0.0
        %2614 = vmatpush1.xpose.msra.mxu0 0.0
        %2615 = vmatprep.subr.mxu0 0.0
        %2616 = vmatpush1.xpose.msra.mxu0 0.0
        %2617 = vmatprep.subr.mxu0 0.0
        %2618 = vmatpush1.xpose.msra.mxu0 0.0
        %2619 = vmatprep.subr.mxu0 0.0
        %2620 = vmatpush1.xpose.msra.mxu0 0.0
        %2621 = vmatprep.subr.mxu0 0.0
        %2622 = vmatpush1.xpose.msra.mxu0 0.0
        %2623 = vmatprep.subr.mxu0 0.0
        %2624 = vmatpush1.xpose.msra.mxu0 0.0
        %2625 = vmatprep.subr.mxu0 0.0
        %2626 = vmatpush1.xpose.msra.mxu0 0.0
        %2627 = vmatprep.subr.mxu0 0.0
        %2628 = vmatpush1.xpose.msra.mxu0 0.0
        %2629 = vmatprep.subr.mxu0 0.0
        %2630 = vmatpush1.xpose.msra.mxu0 0.0
        %2631 = vmatprep.subr.mxu0 0.0
        %2632 = vmatpush1.xpose.msra.mxu0 0.0
        %2633 = vmatprep.subr.mxu0 0.0
        %2634 = vmatpush1.xpose.msra.mxu0 0.0
        %2635 = vmatprep.subr.mxu0 0.0
        %2636 = vmatpush1.xpose.msra.mxu0 0.0
        %2637 = vmatprep.subr.mxu0 0.0
        %2638 = vmatpush1.xpose.msra.mxu0 0.0
        %2639 = vmatprep.subr.mxu0 0.0
        %2640 = vmatpush1.xpose.msra.mxu0 0.0
        %2641 = vmatprep.subr.mxu0 0.0
        %2642 = vmatpush1.xpose.msra.mxu0 0.0
        %2643 = vmatprep.subr.mxu0 0.0
        %2644 = vmatpush1.xpose.msra.mxu0 0.0
        %2645 = vmatprep.subr.mxu0 0.0
        %2646 = vmatpush1.xpose.msra.mxu0 0.0
        %2647 = vmatprep.subr.mxu0 0.0
        %2648 = vmatpush1.xpose.msra.mxu0 0.0
        %2649 = vmatprep.subr.mxu0 0.0
        %2650 = vmatpush1.xpose.msra.mxu0 0.0
        %2651 = vmatprep.subr.mxu0 0.0
        %2652 = vmatpush1.xpose.msra.mxu0 0.0
        %2653 = vmatprep.subr.mxu0 0.0
        %2654 = vmatpush1.xpose.msra.mxu0 0.0
        %2655 = vmatprep.subr.mxu0 0.0
        %2656 = vmatpush1.xpose.msra.mxu0 0.0
        %2657 = vmatprep.mubr.f32.mxu0 0.0
        %2658 = vmatmul.mubr.f32.gmra.mrb[0].mxu0 %v2585
        %v2659 = vpop.f32.mrb[0].mxu0
        %v2660 = vadd.f32 0.0, %v2659
        %v2661 = vpop.f32.mrb[0].mxu0
        %2662 = vmatprep.mubr.f32.mxu0 0.0
        %2663 = vmatmul.mubr.f32.gmra.mrb[0].mxu0 %v2587
        %v2664 = vpop.f32.mrb[0].mxu0
        %v2665 = vadd.f32 0.0, %v2664
        %v2666 = vpop.f32.mrb[0].mxu0
        %2667 = vdwg.mxu0
        %v2668 = vmul.f32 %v2660, 0.17677669
        %v2669 = vmul.f32 %v2665, 0.17677669
        %v2670 = vsel %vm2550, %v2668, -1e+09
        %v2671 = vsel %vm2550, %v2669, -1e+09
        %v2672 = vsel %vm1111, %v2670, -inf
        %2673 = vmax.xlane.f32.xlu0 %v2672
        %v2674 = vpop.xlane.xlu0 %2673
        %v2675 = vsel %vm1111, %v2671, -inf
        %2676 = vmax.xlane.f32.xlu0 %v2675
        %v2677 = vpop.xlane.xlu0 %2676
        %v2678 = vsub.f32 %v2670, %v2674
        %v2679 = vsub.f32 %v2671, %v2677
        %v2680 = vmul.f32 %v2678, 1.442695
        %v2681 = vpow.pop %v2680
        %v2682 = vmul.f32 %v2679, 1.442695
        %v2683 = vpow.pop %v2682
        %v2684 = vsel %vm1111, %v2681, 0.0
        %2685 = vadd.xlane.f32.xlu0 %v2684
        %v2686 = vpop.xlane.xlu0 %2685
        %v2687 = vsel %vm1111, %v2683, 0.0
        %2688 = vadd.xlane.f32.xlu0 %v2687
        %v2689 = vpop.xlane.xlu0 %2688
        %v2690 = vrcp.pop %v2686
        %v2691 = vmul.f32 %v2681, %v2690
        %v2692 = vrcp.pop %v2689
        %v2693 = vmul.f32 %v2683, %v2692
        %s2694 = scalar_lea.vmem %s646, 16 [#allocation15]
        %2695 = vst.msk [vmem:[%s2694] sm:$0xff] %vm1111, %v2691
        %2696 = vst.msk [vmem:[%s2694 + $0x8] sm:$0xff] %vm1111, %v2693
        %2697 = vrot.lane.b32.xlu0 %v2447, 64
        %v2698 = vpop.permute.xlu0 %2697
        %2699 = vrot.lane.b32.xlu0 %v2452, 64
        %v2700 = vpop.permute.xlu0 %2699
        %2701 = vrot.lane.b32.xlu0 %v2254, 64
        %v2702 = vpop.permute.xlu0 %2701
        %2703 = vrot.lane.b32.xlu0 %v2259, 64
        %v2704 = vpop.permute.xlu0 %2703
        %v2705 = vsel %vm1017, %v2698, 0
        %v2707 = vsel %vm1017, %v2700, 0
        %v2709 = vsel %vm1017, %v2702, 0
        %v2711 = vsel %vm1017, %v2704, 0
        %2713 = vmatprep.subr.mxu0 0.0
        %2714 = vmatpush1.xpose.msra.mxu0 %v2709
        %2715 = vmatprep.subr.mxu0 0.0
        %2716 = vmatpush1.xpose.msra.mxu0 %v2711
        %2717 = vmatprep.subr.mxu0 0.0
        %2718 = vmatpush1.xpose.msra.mxu0 0.0
        %2719 = vmatprep.subr.mxu0 0.0
        %2720 = vmatpush1.xpose.msra.mxu0 0.0
        %2721 = vmatprep.subr.mxu0 0.0
        %2722 = vmatpush1.xpose.msra.mxu0 0.0
        %2723 = vmatprep.subr.mxu0 0.0
        %2724 = vmatpush1.xpose.msra.mxu0 0.0
        %2725 = vmatprep.subr.mxu0 0.0
        %2726 = vmatpush1.xpose.msra.mxu0 0.0
        %2727 = vmatprep.subr.mxu0 0.0
        %2728 = vmatpush1.xpose.msra.mxu0 0.0
        %2729 = vmatprep.subr.mxu0 0.0
        %2730 = vmatpush1.xpose.msra.mxu0 0.0
        %2731 = vmatprep.subr.mxu0 0.0
        %2732 = vmatpush1.xpose.msra.mxu0 0.0
        %2733 = vmatprep.subr.mxu0 0.0
        %2734 = vmatpush1.xpose.msra.mxu0 0.0
        %2735 = vmatprep.subr.mxu0 0.0
        %2736 = vmatpush1.xpose.msra.mxu0 0.0
        %2737 = vmatprep.subr.mxu0 0.0
        %2738 = vmatpush1.xpose.msra.mxu0 0.0
        %2739 = vmatprep.subr.mxu0 0.0
        %2740 = vmatpush1.xpose.msra.mxu0 0.0
        %2741 = vmatprep.subr.mxu0 0.0
        %2742 = vmatpush1.xpose.msra.mxu0 0.0
        %2743 = vmatprep.subr.mxu0 0.0
        %2744 = vmatpush1.xpose.msra.mxu0 0.0
        %2745 = vmatprep.subr.mxu0 0.0
        %2746 = vmatpush1.xpose.msra.mxu0 0.0
        %2747 = vmatprep.subr.mxu0 0.0
        %2748 = vmatpush1.xpose.msra.mxu0 0.0
        %2749 = vmatprep.subr.mxu0 0.0
        %2750 = vmatpush1.xpose.msra.mxu0 0.0
        %2751 = vmatprep.subr.mxu0 0.0
        %2752 = vmatpush1.xpose.msra.mxu0 0.0
        %2753 = vmatprep.subr.mxu0 0.0
        %2754 = vmatpush1.xpose.msra.mxu0 0.0
        %2755 = vmatprep.subr.mxu0 0.0
        %2756 = vmatpush1.xpose.msra.mxu0 0.0
        %2757 = vmatprep.subr.mxu0 0.0
        %2758 = vmatpush1.xpose.msra.mxu0 0.0
        %2759 = vmatprep.subr.mxu0 0.0
        %2760 = vmatpush1.xpose.msra.mxu0 0.0
        %2761 = vmatprep.subr.mxu0 0.0
        %2762 = vmatpush1.xpose.msra.mxu0 0.0
        %2763 = vmatprep.subr.mxu0 0.0
        %2764 = vmatpush1.xpose.msra.mxu0 0.0
        %2765 = vmatprep.subr.mxu0 0.0
        %2766 = vmatpush1.xpose.msra.mxu0 0.0
        %2767 = vmatprep.subr.mxu0 0.0
        %2768 = vmatpush1.xpose.msra.mxu0 0.0
        %2769 = vmatprep.subr.mxu0 0.0
        %2770 = vmatpush1.xpose.msra.mxu0 0.0
        %2771 = vmatprep.subr.mxu0 0.0
        %2772 = vmatpush1.xpose.msra.mxu0 0.0
        %2773 = vmatprep.subr.mxu0 0.0
        %2774 = vmatpush1.xpose.msra.mxu0 0.0
        %2775 = vmatprep.subr.mxu0 0.0
        %2776 = vmatpush1.xpose.msra.mxu0 0.0
        %2777 = vmatprep.mubr.f32.mxu0 0.0
        %2778 = vmatmul.mubr.f32.gmra.mrb[0].mxu0 %v2705
        %v2779 = vpop.f32.mrb[0].mxu0
        %v2780 = vadd.f32 0.0, %v2779
        %v2781 = vpop.f32.mrb[0].mxu0
        %2782 = vmatprep.mubr.f32.mxu0 0.0
        %2783 = vmatmul.mubr.f32.gmra.mrb[0].mxu0 %v2707
        %v2784 = vpop.f32.mrb[0].mxu0
        %v2785 = vadd.f32 0.0, %v2784
        %v2786 = vpop.f32.mrb[0].mxu0
        %2787 = vdwg.mxu0
        %v2788 = vmul.f32 %v2780, 0.17677669
        %v2789 = vmul.f32 %v2785, 0.17677669
        %v2790 = vsel %vm2550, %v2788, -1e+09
        %v2791 = vsel %vm2550, %v2789, -1e+09
        %v2792 = vsel %vm1111, %v2790, -inf
        %2793 = vmax.xlane.f32.xlu0 %v2792
        %v2794 = vpop.xlane.xlu0 %2793
        %v2795 = vsel %vm1111, %v2791, -inf
        %2796 = vmax.xlane.f32.xlu0 %v2795
        %v2797 = vpop.xlane.xlu0 %2796
        %v2798 = vsub.f32 %v2790, %v2794
        %v2799 = vsub.f32 %v2791, %v2797
        %v2800 = vmul.f32 %v2798, 1.442695
        %v2801 = vpow.pop %v2800
        %v2802 = vmul.f32 %v2799, 1.442695
        %v2803 = vpow.pop %v2802
        %v2804 = vsel %vm1111, %v2801, 0.0
        %2805 = vadd.xlane.f32.xlu0 %v2804
        %v2806 = vpop.xlane.xlu0 %2805
        %v2807 = vsel %vm1111, %v2803, 0.0
        %2808 = vadd.xlane.f32.xlu0 %v2807
        %v2809 = vpop.xlane.xlu0 %2808
        %v2810 = vrcp.pop %v2806
        %v2811 = vmul.f32 %v2801, %v2810
        %v2812 = vrcp.pop %v2809
        %v2813 = vmul.f32 %v2803, %v2812
        %s2814 = scalar_lea.vmem %s646, 32 [#allocation15]
        %2815 = vst.msk [vmem:[%s2814] sm:$0xff] %vm1111, %v2811
        %2816 = vst.msk [vmem:[%s2814 + $0x8] sm:$0xff] %vm1111, %v2813
        %2817 = vrot.lane.b32.xlu0 %v2447, 32
        %v2818 = vpop.permute.xlu0 %2817
        %2819 = vrot.lane.b32.xlu0 %v2452, 32
        %v2820 = vpop.permute.xlu0 %2819
        %2821 = vrot.lane.b32.xlu0 %v2254, 32
        %v2822 = vpop.permute.xlu0 %2821
        %2823 = vrot.lane.b32.xlu0 %v2259, 32
        %v2824 = vpop.permute.xlu0 %2823
        %v2825 = vsel %vm1017, %v2818, 0
        %v2827 = vsel %vm1017, %v2820, 0
        %v2829 = vsel %vm1017, %v2822, 0
        %v2831 = vsel %vm1017, %v2824, 0
        %2833 = vmatprep.subr.mxu0 0.0
        %2834 = vmatpush1.xpose.msra.mxu0 %v2829
        %2835 = vmatprep.subr.mxu0 0.0
        %2836 = vmatpush1.xpose.msra.mxu0 %v2831
        %2837 = vmatprep.subr.mxu0 0.0
        %2838 = vmatpush1.xpose.msra.mxu0 0.0
        %2839 = vmatprep.subr.mxu0 0.0
        %2840 = vmatpush1.xpose.msra.mxu0 0.0
        %2841 = vmatprep.subr.mxu0 0.0
        %2842 = vmatpush1.xpose.msra.mxu0 0.0
        %2843 = vmatprep.subr.mxu0 0.0
        %2844 = vmatpush1.xpose.msra.mxu0 0.0
        %2845 = vmatprep.subr.mxu0 0.0
        %2846 = vmatpush1.xpose.msra.mxu0 0.0
        %2847 = vmatprep.subr.mxu0 0.0
        %2848 = vmatpush1.xpose.msra.mxu0 0.0
        %2849 = vmatprep.subr.mxu0 0.0
        %2850 = vmatpush1.xpose.msra.mxu0 0.0
        %2851 = vmatprep.subr.mxu0 0.0
        %2852 = vmatpush1.xpose.msra.mxu0 0.0
        %2853 = vmatprep.subr.mxu0 0.0
        %2854 = vmatpush1.xpose.msra.mxu0 0.0
        %2855 = vmatprep.subr.mxu0 0.0
        %2856 = vmatpush1.xpose.msra.mxu0 0.0
        %2857 = vmatprep.subr.mxu0 0.0
        %2858 = vmatpush1.xpose.msra.mxu0 0.0
        %2859 = vmatprep.subr.mxu0 0.0
        %2860 = vmatpush1.xpose.msra.mxu0 0.0
        %2861 = vmatprep.subr.mxu0 0.0
        %2862 = vmatpush1.xpose.msra.mxu0 0.0
        %2863 = vmatprep.subr.mxu0 0.0
        %2864 = vmatpush1.xpose.msra.mxu0 0.0
        %2865 = vmatprep.subr.mxu0 0.0
        %2866 = vmatpush1.xpose.msra.mxu0 0.0
        %2867 = vmatprep.subr.mxu0 0.0
        %2868 = vmatpush1.xpose.msra.mxu0 0.0
        %2869 = vmatprep.subr.mxu0 0.0
        %2870 = vmatpush1.xpose.msra.mxu0 0.0
        %2871 = vmatprep.subr.mxu0 0.0
        %2872 = vmatpush1.xpose.msra.mxu0 0.0
        %2873 = vmatprep.subr.mxu0 0.0
        %2874 = vmatpush1.xpose.msra.mxu0 0.0
        %2875 = vmatprep.subr.mxu0 0.0
        %2876 = vmatpush1.xpose.msra.mxu0 0.0
        %2877 = vmatprep.subr.mxu0 0.0
        %2878 = vmatpush1.xpose.msra.mxu0 0.0
        %2879 = vmatprep.subr.mxu0 0.0
        %2880 = vmatpush1.xpose.msra.mxu0 0.0
        %2881 = vmatprep.subr.mxu0 0.0
        %2882 = vmatpush1.xpose.msra.mxu0 0.0
        %2883 = vmatprep.subr.mxu0 0.0
        %2884 = vmatpush1.xpose.msra.mxu0 0.0
        %2885 = vmatprep.subr.mxu0 0.0
        %2886 = vmatpush1.xpose.msra.mxu0 0.0
        %2887 = vmatprep.subr.mxu0 0.0
        %2888 = vmatpush1.xpose.msra.mxu0 0.0
        %2889 = vmatprep.subr.mxu0 0.0
        %2890 = vmatpush1.xpose.msra.mxu0 0.0
        %2891 = vmatprep.subr.mxu0 0.0
        %2892 = vmatpush1.xpose.msra.mxu0 0.0
        %2893 = vmatprep.subr.mxu0 0.0
        %2894 = vmatpush1.xpose.msra.mxu0 0.0
        %2895 = vmatprep.subr.mxu0 0.0
        %2896 = vmatpush1.xpose.msra.mxu0 0.0
        %2897 = vmatprep.mubr.f32.mxu0 0.0
        %2898 = vmatmul.mubr.f32.gmra.mrb[0].mxu0 %v2825
        %v2899 = vpop.f32.mrb[0].mxu0
        %v2900 = vadd.f32 0.0, %v2899
        %v2901 = vpop.f32.mrb[0].mxu0
        %2902 = vmatprep.mubr.f32.mxu0 0.0
        %2903 = vmatmul.mubr.f32.gmra.mrb[0].mxu0 %v2827
        %v2904 = vpop.f32.mrb[0].mxu0
        %v2905 = vadd.f32 0.0, %v2904
        %v2906 = vpop.f32.mrb[0].mxu0
        %2907 = vdwg.mxu0
        %v2908 = vmul.f32 %v2900, 0.17677669
        %v2909 = vmul.f32 %v2905, 0.17677669
        %v2910 = vsel %vm2550, %v2908, -1e+09
        %v2911 = vsel %vm2550, %v2909, -1e+09
        %v2912 = vsel %vm1111, %v2910, -inf
        %2913 = vmax.xlane.f32.xlu0 %v2912
        %v2914 = vpop.xlane.xlu0 %2913
        %v2915 = vsel %vm1111, %v2911, -inf
        %2916 = vmax.xlane.f32.xlu0 %v2915
        %v2917 = vpop.xlane.xlu0 %2916
        %v2918 = vsub.f32 %v2910, %v2914
        %v2919 = vsub.f32 %v2911, %v2917
        %v2920 = vmul.f32 %v2918, 1.442695
        %v2921 = vpow.pop %v2920
        %v2922 = vmul.f32 %v2919, 1.442695
        %v2923 = vpow.pop %v2922
        %v2924 = vsel %vm1111, %v2921, 0.0
        %2925 = vadd.xlane.f32.xlu0 %v2924
        %v2926 = vpop.xlane.xlu0 %2925
        %v2927 = vsel %vm1111, %v2923, 0.0
        %2928 = vadd.xlane.f32.xlu0 %v2927
        %v2929 = vpop.xlane.xlu0 %2928
        %v2930 = vrcp.pop %v2926
        %v2931 = vmul.f32 %v2921, %v2930
        %v2932 = vrcp.pop %v2929
        %v2933 = vmul.f32 %v2923, %v2932
        %s2934 = scalar_lea.vmem %s646, 48 [#allocation15]
        %2935 = vst.msk [vmem:[%s2934] sm:$0xff] %vm1111, %v2931
        %2936 = vst.msk [vmem:[%s2934 + $0x8] sm:$0xff] %vm1111, %v2933
        %v2937 = vld [vmem:[%s12 + $0x1] sm:$0x1]
        %v2938 = vld [vmem:[%s13 + $0x1] sm:$0x1]
        %2939 = vadd.xlane.f32.xlu0 %v2163
        %v2940 = vpop.xlane.xlu0 %2939
        %2941 = vadd.xlane.f32.xlu0 %v2164
        %v2942 = vpop.xlane.xlu0 %2941
        %v2943 = vmul.f32 %v2940, %v663
        %v2944 = vmul.f32 %v2942, %v663
        %v2945 = vsub.f32 %v2163, %v2943
        %v2946 = vsub.f32 %v2164, %v2944
        %v2947 = vmul.f32 %v2945, %v2945
        %v2948 = vmul.f32 %v2946, %v2946
        %2949 = vadd.xlane.f32.xlu0 %v2947
        %v2950 = vpop.xlane.xlu0 %2949
        %2951 = vadd.xlane.f32.xlu0 %v2948
        %v2952 = vpop.xlane.xlu0 %2951
        %v2953 = vmul.f32 %v2950, %v674
        %v2954 = vmul.f32 %v2952, %v674
        %v2955 = vlaneseq
        %v2956 = vshrl.u32 %v2955, 7
        %v2957 = vsub.s32 0, %v2956
        %v2958 = vrot.slane %v2937, %v2957
        %v2959 = vmul.f32 %v2958, %v2945
        %v2960 = vmul.f32 %v2958, %v2946
        %v2961 = vrsqrt.pop %v2953
        %v2962 = vmul.f32 %v2953, %v2961
        %vm2963 = vcmp.eq.f32.partialorder %v2953, inf
        %v2964 = vsel %vm2963, %v2953, %v2962
        %vm2965 = vcmp.eq.f32.partialorder %v2953, 0.0
        %v2966 = vand.u32 %v2953, 2147483648
        %v2967 = vsel %vm2965, %v2966, %v2964
        %v2968 = vrsqrt.pop %v2954
        %v2969 = vmul.f32 %v2954, %v2968
        %vm2970 = vcmp.eq.f32.partialorder %v2954, inf
        %v2971 = vsel %vm2970, %v2954, %v2969
        %vm2972 = vcmp.eq.f32.partialorder %v2954, 0.0
        %v2973 = vand.u32 %v2954, 2147483648
        %v2974 = vsel %vm2972, %v2973, %v2971
        %v2975 = vadd.f32 %v2967, 1e-06
        %v2976 = vadd.f32 %v2974, 1e-06
        %v2977 = vrcp.pop %v2975
        %v2978 = vmul.f32 %v2959, %v2977
        %v2979 = vrcp.pop %v2976
        %v2980 = vmul.f32 %v2960, %v2979
        %v2981 = vlaneseq
        %v2982 = vshrl.u32 %v2981, 7
        %v2983 = vsub.s32 0, %v2982
        %v2984 = vrot.slane %v2938, %v2983
        %v2985 = vadd.f32 %v2978, %v2984
        %v2986 = vadd.f32 %v2980, %v2984
        %v2987 = vld [vmem:[#allocation10] sm:$0xff]
        %v2988 = vld [vmem:[#allocation10 + $0x8] sm:$0xff]
        %v2989 = vld [vmem:[#allocation10 + $0x10] sm:$0xff]
        %v2990 = vld [vmem:[#allocation10 + $0x18] sm:$0xff]
        %v2991 = vld [vmem:[#allocation10 + $0x20] sm:$0xff]
        %v2992 = vld [vmem:[#allocation10 + $0x28] sm:$0xff]
        %v2993 = vld [vmem:[#allocation10 + $0x30] sm:$0xff]
        %v2994 = vld [vmem:[#allocation10 + $0x38] sm:$0xff]
        %v2995 = vld [vmem:[#allocation10 + $0x40] sm:$0xff]
        %v2996 = vld [vmem:[#allocation10 + $0x48] sm:$0xff]
        %v2997 = vld [vmem:[#allocation10 + $0x50] sm:$0xff]
        %v2998 = vld [vmem:[#allocation10 + $0x58] sm:$0xff]
        %v2999 = vld [vmem:[#allocation10 + $0x60] sm:$0xff]
        %v3000 = vld [vmem:[#allocation10 + $0x68] sm:$0xff]
        %v3001 = vld [vmem:[#allocation10 + $0x70] sm:$0xff]
        %v3002 = vld [vmem:[#allocation10 + $0x78] sm:$0xff]
        %v3003 = vld [vmem:[%s7] sm:$0x1]
        %v3004 = vlaneseq
        %v3005 = vshrl.u32 %v3004, 7
        %v3006 = vsub.s32 0, %v3005
        %v3007 = vrot.slane %v3003, %v3006
        %3008 = vmatprep.subr.mxu0 0.0
        %3009 = vmatpush1.msra.mxu0 %v2987
        %3010 = vmatprep.subr.mxu0 0.0
        %3011 = vmatpush1.msra.mxu0 %v2988
        %3012 = vmatprep.subr.mxu0 0.0
        %3013 = vmatpush1.msra.mxu0 %v2989
        %3014 = vmatprep.subr.mxu0 0.0
        %3015 = vmatpush1.msra.mxu0 %v2990
        %3016 = vmatprep.subr.mxu0 0.0
        %3017 = vmatpush1.msra.mxu0 %v2991
        %3018 = vmatprep.subr.mxu0 0.0
        %3019 = vmatpush1.msra.mxu0 %v2992
        %3020 = vmatprep.subr.mxu0 0.0
        %3021 = vmatpush1.msra.mxu0 %v2993
        %3022 = vmatprep.subr.mxu0 0.0
        %3023 = vmatpush1.msra.mxu0 %v2994
        %3024 = vmatprep.subr.mxu0 0.0
        %3025 = vmatpush1.msra.mxu0 %v2995
        %3026 = vmatprep.subr.mxu0 0.0
        %3027 = vmatpush1.msra.mxu0 %v2996
        %3028 = vmatprep.subr.mxu0 0.0
        %3029 = vmatpush1.msra.mxu0 %v2997
        %3030 = vmatprep.subr.mxu0 0.0
        %3031 = vmatpush1.msra.mxu0 %v2998
        %3032 = vmatprep.subr.mxu0 0.0
        %3033 = vmatpush1.msra.mxu0 %v2999
        %3034 = vmatprep.subr.mxu0 0.0
        %3035 = vmatpush1.msra.mxu0 %v3000
        %3036 = vmatprep.subr.mxu0 0.0
        %3037 = vmatpush1.msra.mxu0 %v3001
        %3038 = vmatprep.subr.mxu0 0.0
        %3039 = vmatpush1.msra.mxu0 %v3002
        %3040 = vmatprep.subr.mxu0 0.0
        %3041 = vmatpush1.msra.mxu0 0.0
        %3042 = vmatprep.subr.mxu0 0.0
        %3043 = vmatpush1.msra.mxu0 0.0
        %3044 = vmatprep.subr.mxu0 0.0
        %3045 = vmatpush1.msra.mxu0 0.0
        %3046 = vmatprep.subr.mxu0 0.0
        %3047 = vmatpush1.msra.mxu0 0.0
        %3048 = vmatprep.subr.mxu0 0.0
        %3049 = vmatpush1.msra.mxu0 0.0
        %3050 = vmatprep.subr.mxu0 0.0
        %3051 = vmatpush1.msra.mxu0 0.0
        %3052 = vmatprep.subr.mxu0 0.0
        %3053 = vmatpush1.msra.mxu0 0.0
        %3054 = vmatprep.subr.mxu0 0.0
        %3055 = vmatpush1.msra.mxu0 0.0
        %3056 = vmatprep.subr.mxu0 0.0
        %3057 = vmatpush1.msra.mxu0 0.0
        %3058 = vmatprep.subr.mxu0 0.0
        %3059 = vmatpush1.msra.mxu0 0.0
        %3060 = vmatprep.subr.mxu0 0.0
        %3061 = vmatpush1.msra.mxu0 0.0
        %3062 = vmatprep.subr.mxu0 0.0
        %3063 = vmatpush1.msra.mxu0 0.0
        %3064 = vmatprep.subr.mxu0 0.0
        %3065 = vmatpush1.msra.mxu0 0.0
        %3066 = vmatprep.subr.mxu0 0.0
        %3067 = vmatpush1.msra.mxu0 0.0
        %3068 = vmatprep.subr.mxu0 0.0
        %3069 = vmatpush1.msra.mxu0 0.0
        %3070 = vmatprep.subr.mxu0 0.0
        %3071 = vmatpush1.msra.mxu0 0.0
        %3072 = vmatprep.mubr.f32.mxu0 0.0
        %3073 = vmatmul.mubr.f32.gmra.mrb[0].mxu0 %v2985
        %v3074 = vpop.f32.mrb[0].mxu0
        %v3075 = vadd.f32 %v3007, %v3074
        %v3076 = vpop.f32.mrb[0].mxu0
        %3077 = vmatprep.mubr.f32.mxu0 0.0
        %3078 = vmatmul.mubr.f32.gmra.mrb[0].mxu0 %v2986
        %v3079 = vpop.f32.mrb[0].mxu0
        %v3080 = vadd.f32 %v3007, %v3079
        %v3081 = vpop.f32.mrb[0].mxu0
        %3082 = vdwg.mxu0
        %s3083 = scalar_lea.vmem [#allocation10], 384
        %v3084 = vld [vmem:[%s3083] sm:$0xff]
        %v3085 = vld [vmem:[%s3083 + $0x8] sm:$0xff]
        %v3086 = vld [vmem:[%s3083 + $0x10] sm:$0xff]
        %v3087 = vld [vmem:[%s3083 + $0x18] sm:$0xff]
        %v3088 = vld [vmem:[%s3083 + $0x20] sm:$0xff]
        %v3089 = vld [vmem:[%s3083 + $0x28] sm:$0xff]
        %v3090 = vld [vmem:[%s3083 + $0x30] sm:$0xff]
        %v3091 = vld [vmem:[%s3083 + $0x38] sm:$0xff]
        %v3092 = vld [vmem:[%s3083 + $0x40] sm:$0xff]
        %v3093 = vld [vmem:[%s3083 + $0x48] sm:$0xff]
        %v3094 = vld [vmem:[%s3083 + $0x50] sm:$0xff]
        %v3095 = vld [vmem:[%s3083 + $0x58] sm:$0xff]
        %v3096 = vld [vmem:[%s3083 + $0x60] sm:$0xff]
        %v3097 = vld [vmem:[%s3083 + $0x68] sm:$0xff]
        %v3098 = vld [vmem:[%s3083 + $0x70] sm:$0xff]
        %v3099 = vld [vmem:[%s3083 + $0x78] sm:$0xff]
        %v3100 = vld [vmem:[%s7 + $0x3] sm:$0x1]
        %v3102 = vsel %vm1017, %v3075, 0
        %v3105 = vsel %vm1017, %v3080, 0
        %3107 = vmatprep.subr.mxu0 0.0
        %3108 = vmatpush1.xpose.msra.mxu0 %v2462
        %3109 = vmatprep.subr.mxu0 0.0
        %3110 = vmatpush1.xpose.msra.mxu0 %v2465
        %3111 = vmatprep.subr.mxu0 0.0
        %3112 = vmatpush1.xpose.msra.mxu0 0.0
        %3113 = vmatprep.subr.mxu0 0.0
        %3114 = vmatpush1.xpose.msra.mxu0 0.0
        %3115 = vmatprep.subr.mxu0 0.0
        %3116 = vmatpush1.xpose.msra.mxu0 0.0
        %3117 = vmatprep.subr.mxu0 0.0
        %3118 = vmatpush1.xpose.msra.mxu0 0.0
        %3119 = vmatprep.subr.mxu0 0.0
        %3120 = vmatpush1.xpose.msra.mxu0 0.0
        %3121 = vmatprep.subr.mxu0 0.0
        %3122 = vmatpush1.xpose.msra.mxu0 0.0
        %3123 = vmatprep.subr.mxu0 0.0
        %3124 = vmatpush1.xpose.msra.mxu0 0.0
        %3125 = vmatprep.subr.mxu0 0.0
        %3126 = vmatpush1.xpose.msra.mxu0 0.0
        %3127 = vmatprep.subr.mxu0 0.0
        %3128 = vmatpush1.xpose.msra.mxu0 0.0
        %3129 = vmatprep.subr.mxu0 0.0
        %3130 = vmatpush1.xpose.msra.mxu0 0.0
        %3131 = vmatprep.subr.mxu0 0.0
        %3132 = vmatpush1.xpose.msra.mxu0 0.0
        %3133 = vmatprep.subr.mxu0 0.0
        %3134 = vmatpush1.xpose.msra.mxu0 0.0
        %3135 = vmatprep.subr.mxu0 0.0
        %3136 = vmatpush1.xpose.msra.mxu0 0.0
        %3137 = vmatprep.subr.mxu0 0.0
        %3138 = vmatpush1.xpose.msra.mxu0 0.0
        %3139 = vmatprep.subr.mxu0 0.0
        %3140 = vmatpush1.xpose.msra.mxu0 0.0
        %3141 = vmatprep.subr.mxu0 0.0
        %3142 = vmatpush1.xpose.msra.mxu0 0.0
        %3143 = vmatprep.subr.mxu0 0.0
        %3144 = vmatpush1.xpose.msra.mxu0 0.0
        %3145 = vmatprep.subr.mxu0 0.0
        %3146 = vmatpush1.xpose.msra.mxu0 0.0
        %3147 = vmatprep.subr.mxu0 0.0
        %3148 = vmatpush1.xpose.msra.mxu0 0.0
        %3149 = vmatprep.subr.mxu0 0.0
        %3150 = vmatpush1.xpose.msra.mxu0 0.0
        %3151 = vmatprep.subr.mxu0 0.0
        %3152 = vmatpush1.xpose.msra.mxu0 0.0
        %3153 = vmatprep.subr.mxu0 0.0
        %3154 = vmatpush1.xpose.msra.mxu0 0.0
        %3155 = vmatprep.subr.mxu0 0.0
        %3156 = vmatpush1.xpose.msra.mxu0 0.0
        %3157 = vmatprep.subr.mxu0 0.0
        %3158 = vmatpush1.xpose.msra.mxu0 0.0
        %3159 = vmatprep.subr.mxu0 0.0
        %3160 = vmatpush1.xpose.msra.mxu0 0.0
        %3161 = vmatprep.subr.mxu0 0.0
        %3162 = vmatpush1.xpose.msra.mxu0 0.0
        %3163 = vmatprep.subr.mxu0 0.0
        %3164 = vmatpush1.xpose.msra.mxu0 0.0
        %3165 = vmatprep.subr.mxu0 0.0
        %3166 = vmatpush1.xpose.msra.mxu0 0.0
        %3167 = vmatprep.subr.mxu0 0.0
        %3168 = vmatpush1.xpose.msra.mxu0 0.0
        %3169 = vmatprep.subr.mxu0 0.0
        %3170 = vmatpush1.xpose.msra.mxu0 0.0
        %3171 = vmatprep.mubr.f32.mxu0 0.0
        %3172 = vmatmul.mubr.f32.gmra.mrb[0].mxu0 %v3102
        %v3173 = vpop.f32.mrb[0].mxu0
        %v3174 = vadd.f32 0.0, %v3173
        %v3175 = vpop.f32.mrb[0].mxu0
        %3176 = vmatprep.mubr.f32.mxu0 0.0
        %3177 = vmatmul.mubr.f32.gmra.mrb[0].mxu0 %v3105
        %v3178 = vpop.f32.mrb[0].mxu0
        %v3179 = vadd.f32 0.0, %v3178
        %v3180 = vpop.f32.mrb[0].mxu0
        %3181 = vdwg.mxu0
        %v3182 = vmul.f32 %v3174, 0.17677669
        %v3183 = vmul.f32 %v3179, 0.17677669
        %v3184 = vsel %vm2550, %v3182, -1e+09
        %v3185 = vsel %vm2550, %v3183, -1e+09
        %v3186 = vsel %vm1111, %v3184, -inf
        %3187 = vmax.xlane.f32.xlu0 %v3186
        %v3188 = vpop.xlane.xlu0 %3187
        %v3189 = vsel %vm1111, %v3185, -inf
        %3190 = vmax.xlane.f32.xlu0 %v3189
        %v3191 = vpop.xlane.xlu0 %3190
        %v3192 = vsub.f32 %v3184, %v3188
        %v3193 = vsub.f32 %v3185, %v3191
        %v3194 = vmul.f32 %v3192, 1.442695
        %v3195 = vpow.pop %v3194
        %v3196 = vmul.f32 %v3193, 1.442695
        %v3197 = vpow.pop %v3196
        %v3198 = vsel %vm1111, %v3195, 0.0
        %3199 = vadd.xlane.f32.xlu0 %v3198
        %v3200 = vpop.xlane.xlu0 %3199
        %v3201 = vsel %vm1111, %v3197, 0.0
        %3202 = vadd.xlane.f32.xlu0 %v3201
        %v3203 = vpop.xlane.xlu0 %3202
        %v3204 = vrcp.pop %v3200
        %v3205 = vmul.f32 %v3195, %v3204
        %v3206 = vrcp.pop %v3203
        %v3207 = vmul.f32 %v3197, %v3206
        %v3209 = vsel %vm1111, %v3205, 0
        %v3212 = vsel %vm1111, %v3207, 0
        %3214 = vmatprep.subr.mxu0 0.0
        %3215 = vmatpush1.msra.mxu0 %v2351
        %3216 = vmatprep.subr.mxu0 0.0
        %3217 = vmatpush1.msra.mxu0 %v2356
        %3218 = vmatprep.subr.mxu0 0.0
        %3219 = vmatpush1.msra.mxu0 0.0
        %3220 = vmatprep.subr.mxu0 0.0
        %3221 = vmatpush1.msra.mxu0 0.0
        %3222 = vmatprep.subr.mxu0 0.0
        %3223 = vmatpush1.msra.mxu0 0.0
        %3224 = vmatprep.subr.mxu0 0.0
        %3225 = vmatpush1.msra.mxu0 0.0
        %3226 = vmatprep.subr.mxu0 0.0
        %3227 = vmatpush1.msra.mxu0 0.0
        %3228 = vmatprep.subr.mxu0 0.0
        %3229 = vmatpush1.msra.mxu0 0.0
        %3230 = vmatprep.subr.mxu0 0.0
        %3231 = vmatpush1.msra.mxu0 0.0
        %3232 = vmatprep.subr.mxu0 0.0
        %3233 = vmatpush1.msra.mxu0 0.0
        %3234 = vmatprep.subr.mxu0 0.0
        %3235 = vmatpush1.msra.mxu0 0.0
        %3236 = vmatprep.subr.mxu0 0.0
        %3237 = vmatpush1.msra.mxu0 0.0
        %3238 = vmatprep.subr.mxu0 0.0
        %3239 = vmatpush1.msra.mxu0 0.0
        %3240 = vmatprep.subr.mxu0 0.0
        %3241 = vmatpush1.msra.mxu0 0.0
        %3242 = vmatprep.subr.mxu0 0.0
        %3243 = vmatpush1.msra.mxu0 0.0
        %3244 = vmatprep.subr.mxu0 0.0
        %3245 = vmatpush1.msra.mxu0 0.0
        %3246 = vmatprep.subr.mxu0 0.0
        %3247 = vmatpush1.msra.mxu0 0.0
        %3248 = vmatprep.subr.mxu0 0.0
        %3249 = vmatpush1.msra.mxu0 0.0
        %3250 = vmatprep.subr.mxu0 0.0
        %3251 = vmatpush1.msra.mxu0 0.0
        %3252 = vmatprep.subr.mxu0 0.0
        %3253 = vmatpush1.msra.mxu0 0.0
        %3254 = vmatprep.subr.mxu0 0.0
        %3255 = vmatpush1.msra.mxu0 0.0
        %3256 = vmatprep.subr.mxu0 0.0
        %3257 = vmatpush1.msra.mxu0 0.0
        %3258 = vmatprep.subr.mxu0 0.0
        %3259 = vmatpush1.msra.mxu0 0.0
        %3260 = vmatprep.subr.mxu0 0.0
        %3261 = vmatpush1.msra.mxu0 0.0
        %3262 = vmatprep.subr.mxu0 0.0
        %3263 = vmatpush1.msra.mxu0 0.0
        %3264 = vmatprep.subr.mxu0 0.0
        %3265 = vmatpush1.msra.mxu0 0.0
        %3266 = vmatprep.subr.mxu0 0.0
        %3267 = vmatpush1.msra.mxu0 0.0
        %3268 = vmatprep.subr.mxu0 0.0
        %3269 = vmatpush1.msra.mxu0 0.0
        %3270 = vmatprep.subr.mxu0 0.0
        %3271 = vmatpush1.msra.mxu0 0.0
        %3272 = vmatprep.subr.mxu0 0.0
        %3273 = vmatpush1.msra.mxu0 0.0
        %3274 = vmatprep.subr.mxu0 0.0
        %3275 = vmatpush1.msra.mxu0 0.0
        %3276 = vmatprep.subr.mxu0 0.0
        %3277 = vmatpush1.msra.mxu0 0.0
        %3278 = vmatprep.mubr.f32.mxu0 0.0
        %3279 = vmatmul.mubr.f32.gmra.mrb[0].mxu0 %v3209
        %v3280 = vpop.f32.mrb[0].mxu0
        %v3281 = vadd.f32 0.0, %v3280
        %v3282 = vpop.f32.mrb[0].mxu0
        %3283 = vmatprep.mubr.f32.mxu0 0.0
        %3284 = vmatmul.mubr.f32.gmra.mrb[0].mxu0 %v3212
        %v3285 = vpop.f32.mrb[0].mxu0
        %v3286 = vadd.f32 0.0, %v3285
        %v3287 = vpop.f32.mrb[0].mxu0
        %3288 = vdwg.mxu0
        %3289 = vrot.lane.b32.xlu0 %v3075, 96
        %v3290 = vpop.permute.xlu0 %3289
        %3291 = vrot.lane.b32.xlu0 %v3080, 96
        %v3292 = vpop.permute.xlu0 %3291
        %v3293 = vsel %vm1017, %v3290, 0
        %v3295 = vsel %vm1017, %v3292, 0
        %3297 = vmatprep.subr.mxu0 0.0
        %3298 = vmatpush1.xpose.msra.mxu0 %v2589
        %3299 = vmatprep.subr.mxu0 0.0
        %3300 = vmatpush1.xpose.msra.mxu0 %v2591
        %3301 = vmatprep.subr.mxu0 0.0
        %3302 = vmatpush1.xpose.msra.mxu0 0.0
        %3303 = vmatprep.subr.mxu0 0.0
        %3304 = vmatpush1.xpose.msra.mxu0 0.0
        %3305 = vmatprep.subr.mxu0 0.0
        %3306 = vmatpush1.xpose.msra.mxu0 0.0
        %3307 = vmatprep.subr.mxu0 0.0
        %3308 = vmatpush1.xpose.msra.mxu0 0.0
        %3309 = vmatprep.subr.mxu0 0.0
        %3310 = vmatpush1.xpose.msra.mxu0 0.0
        %3311 = vmatprep.subr.mxu0 0.0
        %3312 = vmatpush1.xpose.msra.mxu0 0.0
        %3313 = vmatprep.subr.mxu0 0.0
        %3314 = vmatpush1.xpose.msra.mxu0 0.0
        %3315 = vmatprep.subr.mxu0 0.0
        %3316 = vmatpush1.xpose.msra.mxu0 0.0
        %3317 = vmatprep.subr.mxu0 0.0
        %3318 = vmatpush1.xpose.msra.mxu0 0.0
        %3319 = vmatprep.subr.mxu0 0.0
        %3320 = vmatpush1.xpose.msra.mxu0 0.0
        %3321 = vmatprep.subr.mxu0 0.0
        %3322 = vmatpush1.xpose.msra.mxu0 0.0
        %3323 = vmatprep.subr.mxu0 0.0
        %3324 = vmatpush1.xpose.msra.mxu0 0.0
        %3325 = vmatprep.subr.mxu0 0.0
        %3326 = vmatpush1.xpose.msra.mxu0 0.0
        %3327 = vmatprep.subr.mxu0 0.0
        %3328 = vmatpush1.xpose.msra.mxu0 0.0
        %3329 = vmatprep.subr.mxu0 0.0
        %3330 = vmatpush1.xpose.msra.mxu0 0.0
        %3331 = vmatprep.subr.mxu0 0.0
        %3332 = vmatpush1.xpose.msra.mxu0 0.0
        %3333 = vmatprep.subr.mxu0 0.0
        %3334 = vmatpush1.xpose.msra.mxu0 0.0
        %3335 = vmatprep.subr.mxu0 0.0
        %3336 = vmatpush1.xpose.msra.mxu0 0.0
        %3337 = vmatprep.subr.mxu0 0.0
        %3338 = vmatpush1.xpose.msra.mxu0 0.0
        %3339 = vmatprep.subr.mxu0 0.0
        %3340 = vmatpush1.xpose.msra.mxu0 0.0
        %3341 = vmatprep.subr.mxu0 0.0
        %3342 = vmatpush1.xpose.msra.mxu0 0.0
        %3343 = vmatprep.subr.mxu0 0.0
        %3344 = vmatpush1.xpose.msra.mxu0 0.0
        %3345 = vmatprep.subr.mxu0 0.0
        %3346 = vmatpush1.xpose.msra.mxu0 0.0
        %3347 = vmatprep.subr.mxu0 0.0
        %3348 = vmatpush1.xpose.msra.mxu0 0.0
        %3349 = vmatprep.subr.mxu0 0.0
        %3350 = vmatpush1.xpose.msra.mxu0 0.0
        %3351 = vmatprep.subr.mxu0 0.0
        %3352 = vmatpush1.xpose.msra.mxu0 0.0
        %3353 = vmatprep.subr.mxu0 0.0
        %3354 = vmatpush1.xpose.msra.mxu0 0.0
        %3355 = vmatprep.subr.mxu0 0.0
        %3356 = vmatpush1.xpose.msra.mxu0 0.0
        %3357 = vmatprep.subr.mxu0 0.0
        %3358 = vmatpush1.xpose.msra.mxu0 0.0
        %3359 = vmatprep.subr.mxu0 0.0
        %3360 = vmatpush1.xpose.msra.mxu0 0.0
        %3361 = vmatprep.mubr.f32.mxu0 0.0
        %3362 = vmatmul.mubr.f32.gmra.mrb[0].mxu0 %v3293
        %v3363 = vpop.f32.mrb[0].mxu0
        %v3364 = vadd.f32 0.0, %v3363
        %v3365 = vpop.f32.mrb[0].mxu0
        %3366 = vmatprep.mubr.f32.mxu0 0.0
        %3367 = vmatmul.mubr.f32.gmra.mrb[0].mxu0 %v3295
        %v3368 = vpop.f32.mrb[0].mxu0
        %v3369 = vadd.f32 0.0, %v3368
        %v3370 = vpop.f32.mrb[0].mxu0
        %3371 = vdwg.mxu0
        %v3372 = vmul.f32 %v3364, 0.17677669
        %v3373 = vmul.f32 %v3369, 0.17677669
        %v3374 = vsel %vm2550, %v3372, -1e+09
        %v3375 = vsel %vm2550, %v3373, -1e+09
        %v3376 = vsel %vm1111, %v3374, -inf
        %3377 = vmax.xlane.f32.xlu0 %v3376
        %v3378 = vpop.xlane.xlu0 %3377
        %v3379 = vsel %vm1111, %v3375, -inf
        %3380 = vmax.xlane.f32.xlu0 %v3379
        %v3381 = vpop.xlane.xlu0 %3380
        %v3382 = vsub.f32 %v3374, %v3378
        %v3383 = vsub.f32 %v3375, %v3381
        %v3384 = vmul.f32 %v3382, 1.442695
        %v3385 = vpow.pop %v3384
        %v3386 = vmul.f32 %v3383, 1.442695
        %v3387 = vpow.pop %v3386
        %v3388 = vsel %vm1111, %v3385, 0.0
        %3389 = vadd.xlane.f32.xlu0 %v3388
        %v3390 = vpop.xlane.xlu0 %3389
        %v3391 = vsel %vm1111, %v3387, 0.0
        %3392 = vadd.xlane.f32.xlu0 %v3391
        %v3393 = vpop.xlane.xlu0 %3392
        %v3394 = vrcp.pop %v3390
        %v3395 = vmul.f32 %v3385, %v3394
        %v3396 = vrcp.pop %v3393
        %v3397 = vmul.f32 %v3387, %v3396
        %3400 = vrot.lane.b32.xlu0 %v2351, 96
        %v3401 = vpop.permute.xlu0 %3400
        %3402 = vrot.lane.b32.xlu0 %v2356, 96
        %v3403 = vpop.permute.xlu0 %3402
        %v3407 = vsel %vm1111, %v3395, 0
        %v3410 = vsel %vm1111, %v3397, 0
        %3412 = vmatprep.subr.mxu0 0.0
        %3413 = vmatpush1.msra.mxu0 %v3401
        %3414 = vmatprep.subr.mxu0 0.0
        %3415 = vmatpush1.msra.mxu0 %v3403
        %3416 = vmatprep.subr.mxu0 0.0
        %3417 = vmatpush1.msra.mxu0 0.0
        %3418 = vmatprep.subr.mxu0 0.0
        %3419 = vmatpush1.msra.mxu0 0.0
        %3420 = vmatprep.subr.mxu0 0.0
        %3421 = vmatpush1.msra.mxu0 0.0
        %3422 = vmatprep.subr.mxu0 0.0
        %3423 = vmatpush1.msra.mxu0 0.0
        %3424 = vmatprep.subr.mxu0 0.0
        %3425 = vmatpush1.msra.mxu0 0.0
        %3426 = vmatprep.subr.mxu0 0.0
        %3427 = vmatpush1.msra.mxu0 0.0
        %3428 = vmatprep.subr.mxu0 0.0
        %3429 = vmatpush1.msra.mxu0 0.0
        %3430 = vmatprep.subr.mxu0 0.0
        %3431 = vmatpush1.msra.mxu0 0.0
        %3432 = vmatprep.subr.mxu0 0.0
        %3433 = vmatpush1.msra.mxu0 0.0
        %3434 = vmatprep.subr.mxu0 0.0
        %3435 = vmatpush1.msra.mxu0 0.0
        %3436 = vmatprep.subr.mxu0 0.0
        %3437 = vmatpush1.msra.mxu0 0.0
        %3438 = vmatprep.subr.mxu0 0.0
        %3439 = vmatpush1.msra.mxu0 0.0
        %3440 = vmatprep.subr.mxu0 0.0
        %3441 = vmatpush1.msra.mxu0 0.0
        %3442 = vmatprep.subr.mxu0 0.0
        %3443 = vmatpush1.msra.mxu0 0.0
        %3444 = vmatprep.subr.mxu0 0.0
        %3445 = vmatpush1.msra.mxu0 0.0
        %3446 = vmatprep.subr.mxu0 0.0
        %3447 = vmatpush1.msra.mxu0 0.0
        %3448 = vmatprep.subr.mxu0 0.0
        %3449 = vmatpush1.msra.mxu0 0.0
        %3450 = vmatprep.subr.mxu0 0.0
        %3451 = vmatpush1.msra.mxu0 0.0
        %3452 = vmatprep.subr.mxu0 0.0
        %3453 = vmatpush1.msra.mxu0 0.0
        %3454 = vmatprep.subr.mxu0 0.0
        %3455 = vmatpush1.msra.mxu0 0.0
        %3456 = vmatprep.subr.mxu0 0.0
        %3457 = vmatpush1.msra.mxu0 0.0
        %3458 = vmatprep.subr.mxu0 0.0
        %3459 = vmatpush1.msra.mxu0 0.0
        %3460 = vmatprep.subr.mxu0 0.0
        %3461 = vmatpush1.msra.mxu0 0.0
        %3462 = vmatprep.subr.mxu0 0.0
        %3463 = vmatpush1.msra.mxu0 0.0
        %3464 = vmatprep.subr.mxu0 0.0
        %3465 = vmatpush1.msra.mxu0 0.0
        %3466 = vmatprep.subr.mxu0 0.0
        %3467 = vmatpush1.msra.mxu0 0.0
        %3468 = vmatprep.subr.mxu0 0.0
        %3469 = vmatpush1.msra.mxu0 0.0
        %3470 = vmatprep.subr.mxu0 0.0
        %3471 = vmatpush1.msra.mxu0 0.0
        %3472 = vmatprep.subr.mxu0 0.0
        %3473 = vmatpush1.msra.mxu0 0.0
        %3474 = vmatprep.subr.mxu0 0.0
        %3475 = vmatpush1.msra.mxu0 0.0
        %3476 = vmatprep.mubr.f32.mxu0 0.0
        %3477 = vmatmul.mubr.f32.gmra.mrb[0].mxu0 %v3407
        %v3478 = vpop.f32.mrb[0].mxu0
        %v3479 = vadd.f32 0.0, %v3478
        %v3480 = vpop.f32.mrb[0].mxu0
        %3481 = vmatprep.mubr.f32.mxu0 0.0
        %3482 = vmatmul.mubr.f32.gmra.mrb[0].mxu0 %v3410
        %v3483 = vpop.f32.mrb[0].mxu0
        %v3484 = vadd.f32 0.0, %v3483
        %v3485 = vpop.f32.mrb[0].mxu0
        %3486 = vdwg.mxu0
        %v3488 = vsel %vm1017, %v3479, 0
        %v3491 = vsel %vm1017, %v3484, 0
        %3493 = vmatprep.subr.mxu0 0.0
        %3494 = vmatpush1.msra.mxu0 %v3088
        %3495 = vmatprep.subr.mxu0 0.0
        %3496 = vmatpush1.msra.mxu0 %v3089
        %3497 = vmatprep.subr.mxu0 0.0
        %3498 = vmatpush1.msra.mxu0 %v3090
        %3499 = vmatprep.subr.mxu0 0.0
        %3500 = vmatpush1.msra.mxu0 %v3091
        %3501 = vmatprep.subr.mxu0 0.0
        %3502 = vmatpush1.msra.mxu0 0.0
        %3503 = vmatprep.subr.mxu0 0.0
        %3504 = vmatpush1.msra.mxu0 0.0
        %3505 = vmatprep.subr.mxu0 0.0
        %3506 = vmatpush1.msra.mxu0 0.0
        %3507 = vmatprep.subr.mxu0 0.0
        %3508 = vmatpush1.msra.mxu0 0.0
        %3509 = vmatprep.subr.mxu0 0.0
        %3510 = vmatpush1.msra.mxu0 0.0
        %3511 = vmatprep.subr.mxu0 0.0
        %3512 = vmatpush1.msra.mxu0 0.0
        %3513 = vmatprep.subr.mxu0 0.0
        %3514 = vmatpush1.msra.mxu0 0.0
        %3515 = vmatprep.subr.mxu0 0.0
        %3516 = vmatpush1.msra.mxu0 0.0
        %3517 = vmatprep.subr.mxu0 0.0
        %3518 = vmatpush1.msra.mxu0 0.0
        %3519 = vmatprep.subr.mxu0 0.0
        %3520 = vmatpush1.msra.mxu0 0.0
        %3521 = vmatprep.subr.mxu0 0.0
        %3522 = vmatpush1.msra.mxu0 0.0
        %3523 = vmatprep.subr.mxu0 0.0
        %3524 = vmatpush1.msra.mxu0 0.0
        %3525 = vmatprep.subr.mxu0 0.0
        %3526 = vmatpush1.msra.mxu0 0.0
        %3527 = vmatprep.subr.mxu0 0.0
        %3528 = vmatpush1.msra.mxu0 0.0
        %3529 = vmatprep.subr.mxu0 0.0
        %3530 = vmatpush1.msra.mxu0 0.0
        %3531 = vmatprep.subr.mxu0 0.0
        %3532 = vmatpush1.msra.mxu0 0.0
        %3533 = vmatprep.subr.mxu0 0.0
        %3534 = vmatpush1.msra.mxu0 0.0
        %3535 = vmatprep.subr.mxu0 0.0
        %3536 = vmatpush1.msra.mxu0 0.0
        %3537 = vmatprep.subr.mxu0 0.0
        %3538 = vmatpush1.msra.mxu0 0.0
        %3539 = vmatprep.subr.mxu0 0.0
        %3540 = vmatpush1.msra.mxu0 0.0
        %3541 = vmatprep.subr.mxu0 0.0
        %3542 = vmatpush1.msra.mxu0 0.0
        %3543 = vmatprep.subr.mxu0 0.0
        %3544 = vmatpush1.msra.mxu0 0.0
        %3545 = vmatprep.subr.mxu0 0.0
        %3546 = vmatpush1.msra.mxu0 0.0
        %3547 = vmatprep.subr.mxu0 0.0
        %3548 = vmatpush1.msra.mxu0 0.0
        %3549 = vmatprep.subr.mxu0 0.0
        %3550 = vmatpush1.msra.mxu0 0.0
        %3551 = vmatprep.subr.mxu0 0.0
        %3552 = vmatpush1.msra.mxu0 0.0
        %3553 = vmatprep.subr.mxu0 0.0
        %3554 = vmatpush1.msra.mxu0 0.0
        %3555 = vmatprep.subr.mxu0 0.0
        %3556 = vmatpush1.msra.mxu0 0.0
        %3557 = vmatprep.mubr.f32.mxu0 0.0
        %3558 = vmatmul.mubr.f32.gmra.mrb[0].mxu0 %v3488
        %v3559 = vpop.f32.mrb[0].mxu0
        %v3560 = vadd.f32 0.0, %v3559
        %v3561 = vpop.f32.mrb[0].mxu0
        %3562 = vmatprep.mubr.f32.mxu0 0.0
        %3563 = vmatmul.mubr.f32.gmra.mrb[0].mxu0 %v3491
        %v3564 = vpop.f32.mrb[0].mxu0
        %v3565 = vadd.f32 0.0, %v3564
        %v3566 = vpop.f32.mrb[0].mxu0
        %3567 = vdwg.mxu0
        %v3569 = vsel %vm1017, %v3281, 0
        %v3572 = vsel %vm1017, %v3286, 0
        %3574 = vmatprep.subr.mxu0 0.0
        %3575 = vmatpush1.msra.mxu0 %v3084
        %3576 = vmatprep.subr.mxu0 0.0
        %3577 = vmatpush1.msra.mxu0 %v3085
        %3578 = vmatprep.subr.mxu0 0.0
        %3579 = vmatpush1.msra.mxu0 %v3086
        %3580 = vmatprep.subr.mxu0 0.0
        %3581 = vmatpush1.msra.mxu0 %v3087
        %3582 = vmatprep.subr.mxu0 0.0
        %3583 = vmatpush1.msra.mxu0 0.0
        %3584 = vmatprep.subr.mxu0 0.0
        %3585 = vmatpush1.msra.mxu0 0.0
        %3586 = vmatprep.subr.mxu0 0.0
        %3587 = vmatpush1.msra.mxu0 0.0
        %3588 = vmatprep.subr.mxu0 0.0
        %3589 = vmatpush1.msra.mxu0 0.0
        %3590 = vmatprep.subr.mxu0 0.0
        %3591 = vmatpush1.msra.mxu0 0.0
        %3592 = vmatprep.subr.mxu0 0.0
        %3593 = vmatpush1.msra.mxu0 0.0
        %3594 = vmatprep.subr.mxu0 0.0
        %3595 = vmatpush1.msra.mxu0 0.0
        %3596 = vmatprep.subr.mxu0 0.0
        %3597 = vmatpush1.msra.mxu0 0.0
        %3598 = vmatprep.subr.mxu0 0.0
        %3599 = vmatpush1.msra.mxu0 0.0
        %3600 = vmatprep.subr.mxu0 0.0
        %3601 = vmatpush1.msra.mxu0 0.0
        %3602 = vmatprep.subr.mxu0 0.0
        %3603 = vmatpush1.msra.mxu0 0.0
        %3604 = vmatprep.subr.mxu0 0.0
        %3605 = vmatpush1.msra.mxu0 0.0
        %3606 = vmatprep.subr.mxu0 0.0
        %3607 = vmatpush1.msra.mxu0 0.0
        %3608 = vmatprep.subr.mxu0 0.0
        %3609 = vmatpush1.msra.mxu0 0.0
        %3610 = vmatprep.subr.mxu0 0.0
        %3611 = vmatpush1.msra.mxu0 0.0
        %3612 = vmatprep.subr.mxu0 0.0
        %3613 = vmatpush1.msra.mxu0 0.0
        %3614 = vmatprep.subr.mxu0 0.0
        %3615 = vmatpush1.msra.mxu0 0.0
        %3616 = vmatprep.subr.mxu0 0.0
        %3617 = vmatpush1.msra.mxu0 0.0
        %3618 = vmatprep.subr.mxu0 0.0
        %3619 = vmatpush1.msra.mxu0 0.0
        %3620 = vmatprep.subr.mxu0 0.0
        %3621 = vmatpush1.msra.mxu0 0.0
        %3622 = vmatprep.subr.mxu0 0.0
        %3623 = vmatpush1.msra.mxu0 0.0
        %3624 = vmatprep.subr.mxu0 0.0
        %3625 = vmatpush1.msra.mxu0 0.0
        %3626 = vmatprep.subr.mxu0 0.0
        %3627 = vmatpush1.msra.mxu0 0.0
        %3628 = vmatprep.subr.mxu0 0.0
        %3629 = vmatpush1.msra.mxu0 0.0
        %3630 = vmatprep.subr.mxu0 0.0
        %3631 = vmatpush1.msra.mxu0 0.0
        %3632 = vmatprep.subr.mxu0 0.0
        %3633 = vmatpush1.msra.mxu0 0.0
        %3634 = vmatprep.subr.mxu0 0.0
        %3635 = vmatpush1.msra.mxu0 0.0
        %3636 = vmatprep.subr.mxu0 0.0
        %3637 = vmatpush1.msra.mxu0 0.0
        %3638 = vmatprep.mubr.f32.mxu0 0.0
        %3639 = vmatmul.mubr.f32.gmra.mrb[0].mxu0 %v3569
        %v3640 = vpop.f32.mrb[0].mxu0
        %v3641 = vadd.f32 %v3560, %v3640
        %v3642 = vpop.f32.mrb[0].mxu0
        %3643 = vmatprep.mubr.f32.mxu0 0.0
        %3644 = vmatmul.mubr.f32.gmra.mrb[0].mxu0 %v3572
        %v3645 = vpop.f32.mrb[0].mxu0
        %v3646 = vadd.f32 %v3565, %v3645
        %v3647 = vpop.f32.mrb[0].mxu0
        %3648 = vdwg.mxu0
        %3649 = vrot.lane.b32.xlu0 %v3075, 64
        %v3650 = vpop.permute.xlu0 %3649
        %3651 = vrot.lane.b32.xlu0 %v3080, 64
        %v3652 = vpop.permute.xlu0 %3651
        %v3653 = vsel %vm1017, %v3650, 0
        %v3655 = vsel %vm1017, %v3652, 0
        %3657 = vmatprep.subr.mxu0 0.0
        %3658 = vmatpush1.xpose.msra.mxu0 %v2709
        %3659 = vmatprep.subr.mxu0 0.0
        %3660 = vmatpush1.xpose.msra.mxu0 %v2711
        %3661 = vmatprep.subr.mxu0 0.0
        %3662 = vmatpush1.xpose.msra.mxu0 0.0
        %3663 = vmatprep.subr.mxu0 0.0
        %3664 = vmatpush1.xpose.msra.mxu0 0.0
        %3665 = vmatprep.subr.mxu0 0.0
        %3666 = vmatpush1.xpose.msra.mxu0 0.0
        %3667 = vmatprep.subr.mxu0 0.0
        %3668 = vmatpush1.xpose.msra.mxu0 0.0
        %3669 = vmatprep.subr.mxu0 0.0
        %3670 = vmatpush1.xpose.msra.mxu0 0.0
        %3671 = vmatprep.subr.mxu0 0.0
        %3672 = vmatpush1.xpose.msra.mxu0 0.0
        %3673 = vmatprep.subr.mxu0 0.0
        %3674 = vmatpush1.xpose.msra.mxu0 0.0
        %3675 = vmatprep.subr.mxu0 0.0
        %3676 = vmatpush1.xpose.msra.mxu0 0.0
        %3677 = vmatprep.subr.mxu0 0.0
        %3678 = vmatpush1.xpose.msra.mxu0 0.0
        %3679 = vmatprep.subr.mxu0 0.0
        %3680 = vmatpush1.xpose.msra.mxu0 0.0
        %3681 = vmatprep.subr.mxu0 0.0
        %3682 = vmatpush1.xpose.msra.mxu0 0.0
        %3683 = vmatprep.subr.mxu0 0.0
        %3684 = vmatpush1.xpose.msra.mxu0 0.0
        %3685 = vmatprep.subr.mxu0 0.0
        %3686 = vmatpush1.xpose.msra.mxu0 0.0
        %3687 = vmatprep.subr.mxu0 0.0
        %3688 = vmatpush1.xpose.msra.mxu0 0.0
        %3689 = vmatprep.subr.mxu0 0.0
        %3690 = vmatpush1.xpose.msra.mxu0 0.0
        %3691 = vmatprep.subr.mxu0 0.0
        %3692 = vmatpush1.xpose.msra.mxu0 0.0
        %3693 = vmatprep.subr.mxu0 0.0
        %3694 = vmatpush1.xpose.msra.mxu0 0.0
        %3695 = vmatprep.subr.mxu0 0.0
        %3696 = vmatpush1.xpose.msra.mxu0 0.0
        %3697 = vmatprep.subr.mxu0 0.0
        %3698 = vmatpush1.xpose.msra.mxu0 0.0
        %3699 = vmatprep.subr.mxu0 0.0
        %3700 = vmatpush1.xpose.msra.mxu0 0.0
        %3701 = vmatprep.subr.mxu0 0.0
        %3702 = vmatpush1.xpose.msra.mxu0 0.0
        %3703 = vmatprep.subr.mxu0 0.0
        %3704 = vmatpush1.xpose.msra.mxu0 0.0
        %3705 = vmatprep.subr.mxu0 0.0
        %3706 = vmatpush1.xpose.msra.mxu0 0.0
        %3707 = vmatprep.subr.mxu0 0.0
        %3708 = vmatpush1.xpose.msra.mxu0 0.0
        %3709 = vmatprep.subr.mxu0 0.0
        %3710 = vmatpush1.xpose.msra.mxu0 0.0
        %3711 = vmatprep.subr.mxu0 0.0
        %3712 = vmatpush1.xpose.msra.mxu0 0.0
        %3713 = vmatprep.subr.mxu0 0.0
        %3714 = vmatpush1.xpose.msra.mxu0 0.0
        %3715 = vmatprep.subr.mxu0 0.0
        %3716 = vmatpush1.xpose.msra.mxu0 0.0
        %3717 = vmatprep.subr.mxu0 0.0
        %3718 = vmatpush1.xpose.msra.mxu0 0.0
        %3719 = vmatprep.subr.mxu0 0.0
        %3720 = vmatpush1.xpose.msra.mxu0 0.0
        %3721 = vmatprep.mubr.f32.mxu0 0.0
        %3722 = vmatmul.mubr.f32.gmra.mrb[0].mxu0 %v3653
        %v3723 = vpop.f32.mrb[0].mxu0
        %v3724 = vadd.f32 0.0, %v3723
        %v3725 = vpop.f32.mrb[0].mxu0
        %3726 = vmatprep.mubr.f32.mxu0 0.0
        %3727 = vmatmul.mubr.f32.gmra.mrb[0].mxu0 %v3655
        %v3728 = vpop.f32.mrb[0].mxu0
        %v3729 = vadd.f32 0.0, %v3728
        %v3730 = vpop.f32.mrb[0].mxu0
        %3731 = vdwg.mxu0
        %v3732 = vmul.f32 %v3724, 0.17677669
        %v3733 = vmul.f32 %v3729, 0.17677669
        %v3734 = vsel %vm2550, %v3732, -1e+09
        %v3735 = vsel %vm2550, %v3733, -1e+09
        %v3736 = vsel %vm1111, %v3734, -inf
        %3737 = vmax.xlane.f32.xlu0 %v3736
        %v3738 = vpop.xlane.xlu0 %3737
        %v3739 = vsel %vm1111, %v3735, -inf
        %3740 = vmax.xlane.f32.xlu0 %v3739
        %v3741 = vpop.xlane.xlu0 %3740
        %v3742 = vsub.f32 %v3734, %v3738
        %v3743 = vsub.f32 %v3735, %v3741
        %v3744 = vmul.f32 %v3742, 1.442695
        %v3745 = vpow.pop %v3744
        %v3746 = vmul.f32 %v3743, 1.442695
        %v3747 = vpow.pop %v3746
        %v3748 = vsel %vm1111, %v3745, 0.0
        %3749 = vadd.xlane.f32.xlu0 %v3748
        %v3750 = vpop.xlane.xlu0 %3749
        %v3751 = vsel %vm1111, %v3747, 0.0
        %3752 = vadd.xlane.f32.xlu0 %v3751
        %v3753 = vpop.xlane.xlu0 %3752
        %v3754 = vrcp.pop %v3750
        %v3755 = vmul.f32 %v3745, %v3754
        %v3756 = vrcp.pop %v3753
        %v3757 = vmul.f32 %v3747, %v3756
        %3758 = vrot.lane.b32.xlu0 %v2351, 64
        %v3759 = vpop.permute.xlu0 %3758
        %3760 = vrot.lane.b32.xlu0 %v2356, 64
        %v3761 = vpop.permute.xlu0 %3760
        %v3765 = vsel %vm1111, %v3755, 0
        %v3768 = vsel %vm1111, %v3757, 0
        %3770 = vmatprep.subr.mxu0 0.0
        %3771 = vmatpush1.msra.mxu0 %v3759
        %3772 = vmatprep.subr.mxu0 0.0
        %3773 = vmatpush1.msra.mxu0 %v3761
        %3774 = vmatprep.subr.mxu0 0.0
        %3775 = vmatpush1.msra.mxu0 0.0
        %3776 = vmatprep.subr.mxu0 0.0
        %3777 = vmatpush1.msra.mxu0 0.0
        %3778 = vmatprep.subr.mxu0 0.0
        %3779 = vmatpush1.msra.mxu0 0.0
        %3780 = vmatprep.subr.mxu0 0.0
        %3781 = vmatpush1.msra.mxu0 0.0
        %3782 = vmatprep.subr.mxu0 0.0
        %3783 = vmatpush1.msra.mxu0 0.0
        %3784 = vmatprep.subr.mxu0 0.0
        %3785 = vmatpush1.msra.mxu0 0.0
        %3786 = vmatprep.subr.mxu0 0.0
        %3787 = vmatpush1.msra.mxu0 0.0
        %3788 = vmatprep.subr.mxu0 0.0
        %3789 = vmatpush1.msra.mxu0 0.0
        %3790 = vmatprep.subr.mxu0 0.0
        %3791 = vmatpush1.msra.mxu0 0.0
        %3792 = vmatprep.subr.mxu0 0.0
        %3793 = vmatpush1.msra.mxu0 0.0
        %3794 = vmatprep.subr.mxu0 0.0
        %3795 = vmatpush1.msra.mxu0 0.0
        %3796 = vmatprep.subr.mxu0 0.0
        %3797 = vmatpush1.msra.mxu0 0.0
        %3798 = vmatprep.subr.mxu0 0.0
        %3799 = vmatpush1.msra.mxu0 0.0
        %3800 = vmatprep.subr.mxu0 0.0
        %3801 = vmatpush1.msra.mxu0 0.0
        %3802 = vmatprep.subr.mxu0 0.0
        %3803 = vmatpush1.msra.mxu0 0.0
        %3804 = vmatprep.subr.mxu0 0.0
        %3805 = vmatpush1.msra.mxu0 0.0
        %3806 = vmatprep.subr.mxu0 0.0
        %3807 = vmatpush1.msra.mxu0 0.0
        %3808 = vmatprep.subr.mxu0 0.0
        %3809 = vmatpush1.msra.mxu0 0.0
        %3810 = vmatprep.subr.mxu0 0.0
        %3811 = vmatpush1.msra.mxu0 0.0
        %3812 = vmatprep.subr.mxu0 0.0
        %3813 = vmatpush1.msra.mxu0 0.0
        %3814 = vmatprep.subr.mxu0 0.0
        %3815 = vmatpush1.msra.mxu0 0.0
        %3816 = vmatprep.subr.mxu0 0.0
        %3817 = vmatpush1.msra.mxu0 0.0
        %3818 = vmatprep.subr.mxu0 0.0
        %3819 = vmatpush1.msra.mxu0 0.0
        %3820 = vmatprep.subr.mxu0 0.0
        %3821 = vmatpush1.msra.mxu0 0.0
        %3822 = vmatprep.subr.mxu0 0.0
        %3823 = vmatpush1.msra.mxu0 0.0
        %3824 = vmatprep.subr.mxu0 0.0
        %3825 = vmatpush1.msra.mxu0 0.0
        %3826 = vmatprep.subr.mxu0 0.0
        %3827 = vmatpush1.msra.mxu0 0.0
        %3828 = vmatprep.subr.mxu0 0.0
        %3829 = vmatpush1.msra.mxu0 0.0
        %3830 = vmatprep.subr.mxu0 0.0
        %3831 = vmatpush1.msra.mxu0 0.0
        %3832 = vmatprep.subr.mxu0 0.0
        %3833 = vmatpush1.msra.mxu0 0.0
        %3834 = vmatprep.mubr.f32.mxu0 0.0
        %3835 = vmatmul.mubr.f32.gmra.mrb[0].mxu0 %v3765
        %v3836 = vpop.f32.mrb[0].mxu0
        %v3837 = vadd.f32 0.0, %v3836
        %v3838 = vpop.f32.mrb[0].mxu0
        %3839 = vmatprep.mubr.f32.mxu0 0.0
        %3840 = vmatmul.mubr.f32.gmra.mrb[0].mxu0 %v3768
        %v3841 = vpop.f32.mrb[0].mxu0
        %v3842 = vadd.f32 0.0, %v3841
        %v3843 = vpop.f32.mrb[0].mxu0
        %3844 = vdwg.mxu0
        %v3846 = vsel %vm1017, %v3837, 0
        %v3849 = vsel %vm1017, %v3842, 0
        %3851 = vmatprep.subr.mxu0 0.0
        %3852 = vmatpush1.msra.mxu0 %v3092
        %3853 = vmatprep.subr.mxu0 0.0
        %3854 = vmatpush1.msra.mxu0 %v3093
        %3855 = vmatprep.subr.mxu0 0.0
        %3856 = vmatpush1.msra.mxu0 %v3094
        %3857 = vmatprep.subr.mxu0 0.0
        %3858 = vmatpush1.msra.mxu0 %v3095
        %3859 = vmatprep.subr.mxu0 0.0
        %3860 = vmatpush1.msra.mxu0 0.0
        %3861 = vmatprep.subr.mxu0 0.0
        %3862 = vmatpush1.msra.mxu0 0.0
        %3863 = vmatprep.subr.mxu0 0.0
        %3864 = vmatpush1.msra.mxu0 0.0
        %3865 = vmatprep.subr.mxu0 0.0
        %3866 = vmatpush1.msra.mxu0 0.0
        %3867 = vmatprep.subr.mxu0 0.0
        %3868 = vmatpush1.msra.mxu0 0.0
        %3869 = vmatprep.subr.mxu0 0.0
        %3870 = vmatpush1.msra.mxu0 0.0
        %3871 = vmatprep.subr.mxu0 0.0
        %3872 = vmatpush1.msra.mxu0 0.0
        %3873 = vmatprep.subr.mxu0 0.0
        %3874 = vmatpush1.msra.mxu0 0.0
        %3875 = vmatprep.subr.mxu0 0.0
        %3876 = vmatpush1.msra.mxu0 0.0
        %3877 = vmatprep.subr.mxu0 0.0
        %3878 = vmatpush1.msra.mxu0 0.0
        %3879 = vmatprep.subr.mxu0 0.0
        %3880 = vmatpush1.msra.mxu0 0.0
        %3881 = vmatprep.subr.mxu0 0.0
        %3882 = vmatpush1.msra.mxu0 0.0
        %3883 = vmatprep.subr.mxu0 0.0
        %3884 = vmatpush1.msra.mxu0 0.0
        %3885 = vmatprep.subr.mxu0 0.0
        %3886 = vmatpush1.msra.mxu0 0.0
        %3887 = vmatprep.subr.mxu0 0.0
        %3888 = vmatpush1.msra.mxu0 0.0
        %3889 = vmatprep.subr.mxu0 0.0
        %3890 = vmatpush1.msra.mxu0 0.0
        %3891 = vmatprep.subr.mxu0 0.0
        %3892 = vmatpush1.msra.mxu0 0.0
        %3893 = vmatprep.subr.mxu0 0.0
        %3894 = vmatpush1.msra.mxu0 0.0
        %3895 = vmatprep.subr.mxu0 0.0
        %3896 = vmatpush1.msra.mxu0 0.0
        %3897 = vmatprep.subr.mxu0 0.0
        %3898 = vmatpush1.msra.mxu0 0.0
        %3899 = vmatprep.subr.mxu0 0.0
        %3900 = vmatpush1.msra.mxu0 0.0
        %3901 = vmatprep.subr.mxu0 0.0
        %3902 = vmatpush1.msra.mxu0 0.0
        %3903 = vmatprep.subr.mxu0 0.0
        %3904 = vmatpush1.msra.mxu0 0.0
        %3905 = vmatprep.subr.mxu0 0.0
        %3906 = vmatpush1.msra.mxu0 0.0
        %3907 = vmatprep.subr.mxu0 0.0
        %3908 = vmatpush1.msra.mxu0 0.0
        %3909 = vmatprep.subr.mxu0 0.0
        %3910 = vmatpush1.msra.mxu0 0.0
        %3911 = vmatprep.subr.mxu0 0.0
        %3912 = vmatpush1.msra.mxu0 0.0
        %3913 = vmatprep.subr.mxu0 0.0
        %3914 = vmatpush1.msra.mxu0 0.0
        %3915 = vmatprep.mubr.f32.mxu0 0.0
        %3916 = vmatmul.mubr.f32.gmra.mrb[0].mxu0 %v3846
        %v3917 = vpop.f32.mrb[0].mxu0
        %v3918 = vadd.f32 0.0, %v3917
        %v3919 = vpop.f32.mrb[0].mxu0
        %3920 = vmatprep.mubr.f32.mxu0 0.0
        %3921 = vmatmul.mubr.f32.gmra.mrb[0].mxu0 %v3849
        %v3922 = vpop.f32.mrb[0].mxu0
        %v3923 = vadd.f32 0.0, %v3922
        %v3924 = vpop.f32.mrb[0].mxu0
        %3925 = vdwg.mxu0
        %v3926 = vadd.f32 %v3641, %v3918
        %v3927 = vadd.f32 %v3646, %v3923
        %3928 = vrot.lane.b32.xlu0 %v3075, 32
        %v3929 = vpop.permute.xlu0 %3928
        %3930 = vrot.lane.b32.xlu0 %v3080, 32
        %v3931 = vpop.permute.xlu0 %3930
        %v3932 = vsel %vm1017, %v3929, 0
        %v3934 = vsel %vm1017, %v3931, 0
        %3936 = vmatprep.subr.mxu0 0.0
        %3937 = vmatpush1.xpose.msra.mxu0 %v2829
        %3938 = vmatprep.subr.mxu0 0.0
        %3939 = vmatpush1.xpose.msra.mxu0 %v2831
        %3940 = vmatprep.subr.mxu0 0.0
        %3941 = vmatpush1.xpose.msra.mxu0 0.0
        %3942 = vmatprep.subr.mxu0 0.0
        %3943 = vmatpush1.xpose.msra.mxu0 0.0
        %3944 = vmatprep.subr.mxu0 0.0
        %3945 = vmatpush1.xpose.msra.mxu0 0.0
        %3946 = vmatprep.subr.mxu0 0.0
        %3947 = vmatpush1.xpose.msra.mxu0 0.0
        %3948 = vmatprep.subr.mxu0 0.0
        %3949 = vmatpush1.xpose.msra.mxu0 0.0
        %3950 = vmatprep.subr.mxu0 0.0
        %3951 = vmatpush1.xpose.msra.mxu0 0.0
        %3952 = vmatprep.subr.mxu0 0.0
        %3953 = vmatpush1.xpose.msra.mxu0 0.0
        %3954 = vmatprep.subr.mxu0 0.0
        %3955 = vmatpush1.xpose.msra.mxu0 0.0
        %3956 = vmatprep.subr.mxu0 0.0
        %3957 = vmatpush1.xpose.msra.mxu0 0.0
        %3958 = vmatprep.subr.mxu0 0.0
        %3959 = vmatpush1.xpose.msra.mxu0 0.0
        %3960 = vmatprep.subr.mxu0 0.0
        %3961 = vmatpush1.xpose.msra.mxu0 0.0
        %3962 = vmatprep.subr.mxu0 0.0
        %3963 = vmatpush1.xpose.msra.mxu0 0.0
        %3964 = vmatprep.subr.mxu0 0.0
        %3965 = vmatpush1.xpose.msra.mxu0 0.0
        %3966 = vmatprep.subr.mxu0 0.0
        %3967 = vmatpush1.xpose.msra.mxu0 0.0
        %3968 = vmatprep.subr.mxu0 0.0
        %3969 = vmatpush1.xpose.msra.mxu0 0.0
        %3970 = vmatprep.subr.mxu0 0.0
        %3971 = vmatpush1.xpose.msra.mxu0 0.0
        %3972 = vmatprep.subr.mxu0 0.0
        %3973 = vmatpush1.xpose.msra.mxu0 0.0
        %3974 = vmatprep.subr.mxu0 0.0
        %3975 = vmatpush1.xpose.msra.mxu0 0.0
        %3976 = vmatprep.subr.mxu0 0.0
        %3977 = vmatpush1.xpose.msra.mxu0 0.0
        %3978 = vmatprep.subr.mxu0 0.0
        %3979 = vmatpush1.xpose.msra.mxu0 0.0
        %3980 = vmatprep.subr.mxu0 0.0
        %3981 = vmatpush1.xpose.msra.mxu0 0.0
        %3982 = vmatprep.subr.mxu0 0.0
        %3983 = vmatpush1.xpose.msra.mxu0 0.0
        %3984 = vmatprep.subr.mxu0 0.0
        %3985 = vmatpush1.xpose.msra.mxu0 0.0
        %3986 = vmatprep.subr.mxu0 0.0
        %3987 = vmatpush1.xpose.msra.mxu0 0.0
        %3988 = vmatprep.subr.mxu0 0.0
        %3989 = vmatpush1.xpose.msra.mxu0 0.0
        %3990 = vmatprep.subr.mxu0 0.0
        %3991 = vmatpush1.xpose.msra.mxu0 0.0
        %3992 = vmatprep.subr.mxu0 0.0
        %3993 = vmatpush1.xpose.msra.mxu0 0.0
        %3994 = vmatprep.subr.mxu0 0.0
        %3995 = vmatpush1.xpose.msra.mxu0 0.0
        %3996 = vmatprep.subr.mxu0 0.0
        %3997 = vmatpush1.xpose.msra.mxu0 0.0
        %3998 = vmatprep.subr.mxu0 0.0
        %3999 = vmatpush1.xpose.msra.mxu0 0.0
        %4000 = vmatprep.mubr.f32.mxu0 0.0
        %4001 = vmatmul.mubr.f32.gmra.mrb[0].mxu0 %v3932
        %v4002 = vpop.f32.mrb[0].mxu0
        %v4003 = vadd.f32 0.0, %v4002
        %v4004 = vpop.f32.mrb[0].mxu0
        %4005 = vmatprep.mubr.f32.mxu0 0.0
        %4006 = vmatmul.mubr.f32.gmra.mrb[0].mxu0 %v3934
        %v4007 = vpop.f32.mrb[0].mxu0
        %v4008 = vadd.f32 0.0, %v4007
        %v4009 = vpop.f32.mrb[0].mxu0
        %4010 = vdwg.mxu0
        %v4011 = vmul.f32 %v4003, 0.17677669
        %v4012 = vmul.f32 %v4008, 0.17677669
        %v4013 = vsel %vm2550, %v4011, -1e+09
        %v4014 = vsel %vm2550, %v4012, -1e+09
        %v4015 = vsel %vm1111, %v4013, -inf
        %4016 = vmax.xlane.f32.xlu0 %v4015
        %v4017 = vpop.xlane.xlu0 %4016
        %v4018 = vsel %vm1111, %v4014, -inf
        %4019 = vmax.xlane.f32.xlu0 %v4018
        %v4020 = vpop.xlane.xlu0 %4019
        %v4021 = vsub.f32 %v4013, %v4017
        %v4022 = vsub.f32 %v4014, %v4020
        %v4023 = vmul.f32 %v4021, 1.442695
        %v4024 = vpow.pop %v4023
        %v4025 = vmul.f32 %v4022, 1.442695
        %v4026 = vpow.pop %v4025
        %v4027 = vsel %vm1111, %v4024, 0.0
        %4028 = vadd.xlane.f32.xlu0 %v4027
        %v4029 = vpop.xlane.xlu0 %4028
        %v4030 = vsel %vm1111, %v4026, 0.0
        %4031 = vadd.xlane.f32.xlu0 %v4030
        %v4032 = vpop.xlane.xlu0 %4031
        %v4033 = vrcp.pop %v4029
        %v4034 = vmul.f32 %v4024, %v4033
        %v4035 = vrcp.pop %v4032
        %v4036 = vmul.f32 %v4026, %v4035
        %4037 = vrot.lane.b32.xlu0 %v2351, 32
        %v4038 = vpop.permute.xlu0 %4037
        %4039 = vrot.lane.b32.xlu0 %v2356, 32
        %v4040 = vpop.permute.xlu0 %4039
        %v4044 = vsel %vm1111, %v4034, 0
        %v4047 = vsel %vm1111, %v4036, 0
        %4049 = vmatprep.subr.mxu0 0.0
        %4050 = vmatpush1.msra.mxu0 %v4038
        %4051 = vmatprep.subr.mxu0 0.0
        %4052 = vmatpush1.msra.mxu0 %v4040
        %4053 = vmatprep.subr.mxu0 0.0
        %4054 = vmatpush1.msra.mxu0 0.0
        %4055 = vmatprep.subr.mxu0 0.0
        %4056 = vmatpush1.msra.mxu0 0.0
        %4057 = vmatprep.subr.mxu0 0.0
        %4058 = vmatpush1.msra.mxu0 0.0
        %4059 = vmatprep.subr.mxu0 0.0
        %4060 = vmatpush1.msra.mxu0 0.0
        %4061 = vmatprep.subr.mxu0 0.0
        %4062 = vmatpush1.msra.mxu0 0.0
        %4063 = vmatprep.subr.mxu0 0.0
        %4064 = vmatpush1.msra.mxu0 0.0
        %4065 = vmatprep.subr.mxu0 0.0
        %4066 = vmatpush1.msra.mxu0 0.0
        %4067 = vmatprep.subr.mxu0 0.0
        %4068 = vmatpush1.msra.mxu0 0.0
        %4069 = vmatprep.subr.mxu0 0.0
        %4070 = vmatpush1.msra.mxu0 0.0
        %4071 = vmatprep.subr.mxu0 0.0
        %4072 = vmatpush1.msra.mxu0 0.0
        %4073 = vmatprep.subr.mxu0 0.0
        %4074 = vmatpush1.msra.mxu0 0.0
        %4075 = vmatprep.subr.mxu0 0.0
        %4076 = vmatpush1.msra.mxu0 0.0
        %4077 = vmatprep.subr.mxu0 0.0
        %4078 = vmatpush1.msra.mxu0 0.0
        %4079 = vmatprep.subr.mxu0 0.0
        %4080 = vmatpush1.msra.mxu0 0.0
        %4081 = vmatprep.subr.mxu0 0.0
        %4082 = vmatpush1.msra.mxu0 0.0
        %4083 = vmatprep.subr.mxu0 0.0
        %4084 = vmatpush1.msra.mxu0 0.0
        %4085 = vmatprep.subr.mxu0 0.0
        %4086 = vmatpush1.msra.mxu0 0.0
        %4087 = vmatprep.subr.mxu0 0.0
        %4088 = vmatpush1.msra.mxu0 0.0
        %4089 = vmatprep.subr.mxu0 0.0
        %4090 = vmatpush1.msra.mxu0 0.0
        %4091 = vmatprep.subr.mxu0 0.0
        %4092 = vmatpush1.msra.mxu0 0.0
        %4093 = vmatprep.subr.mxu0 0.0
        %4094 = vmatpush1.msra.mxu0 0.0
        %4095 = vmatprep.subr.mxu0 0.0
        %4096 = vmatpush1.msra.mxu0 0.0
        %4097 = vmatprep.subr.mxu0 0.0
        %4098 = vmatpush1.msra.mxu0 0.0
        %4099 = vmatprep.subr.mxu0 0.0
        %4100 = vmatpush1.msra.mxu0 0.0
        %4101 = vmatprep.subr.mxu0 0.0
        %4102 = vmatpush1.msra.mxu0 0.0
        %4103 = vmatprep.subr.mxu0 0.0
        %4104 = vmatpush1.msra.mxu0 0.0
        %4105 = vmatprep.subr.mxu0 0.0
        %4106 = vmatpush1.msra.mxu0 0.0
        %4107 = vmatprep.subr.mxu0 0.0
        %4108 = vmatpush1.msra.mxu0 0.0
        %4109 = vmatprep.subr.mxu0 0.0
        %4110 = vmatpush1.msra.mxu0 0.0
        %4111 = vmatprep.subr.mxu0 0.0
        %4112 = vmatpush1.msra.mxu0 0.0
        %4113 = vmatprep.mubr.f32.mxu0 0.0
        %4114 = vmatmul.mubr.f32.gmra.mrb[0].mxu0 %v4044
        %v4115 = vpop.f32.mrb[0].mxu0
        %v4116 = vadd.f32 0.0, %v4115
        %v4117 = vpop.f32.mrb[0].mxu0
        %4118 = vmatprep.mubr.f32.mxu0 0.0
        %4119 = vmatmul.mubr.f32.gmra.mrb[0].mxu0 %v4047
        %v4120 = vpop.f32.mrb[0].mxu0
        %v4121 = vadd.f32 0.0, %v4120
        %v4122 = vpop.f32.mrb[0].mxu0
        %4123 = vdwg.mxu0
        %v4125 = vsel %vm1017, %v4116, 0
        %v4128 = vsel %vm1017, %v4121, 0
        %4130 = vmatprep.subr.mxu0 0.0
        %4131 = vmatpush1.msra.mxu0 %v3096
        %4132 = vmatprep.subr.mxu0 0.0
        %4133 = vmatpush1.msra.mxu0 %v3097
        %4134 = vmatprep.subr.mxu0 0.0
        %4135 = vmatpush1.msra.mxu0 %v3098
        %4136 = vmatprep.subr.mxu0 0.0
        %4137 = vmatpush1.msra.mxu0 %v3099
        %4138 = vmatprep.subr.mxu0 0.0
        %4139 = vmatpush1.msra.mxu0 0.0
        %4140 = vmatprep.subr.mxu0 0.0
        %4141 = vmatpush1.msra.mxu0 0.0
        %4142 = vmatprep.subr.mxu0 0.0
        %4143 = vmatpush1.msra.mxu0 0.0
        %4144 = vmatprep.subr.mxu0 0.0
        %4145 = vmatpush1.msra.mxu0 0.0
        %4146 = vmatprep.subr.mxu0 0.0
        %4147 = vmatpush1.msra.mxu0 0.0
        %4148 = vmatprep.subr.mxu0 0.0
        %4149 = vmatpush1.msra.mxu0 0.0
        %4150 = vmatprep.subr.mxu0 0.0
        %4151 = vmatpush1.msra.mxu0 0.0
        %4152 = vmatprep.subr.mxu0 0.0
        %4153 = vmatpush1.msra.mxu0 0.0
        %4154 = vmatprep.subr.mxu0 0.0
        %4155 = vmatpush1.msra.mxu0 0.0
        %4156 = vmatprep.subr.mxu0 0.0
        %4157 = vmatpush1.msra.mxu0 0.0
        %4158 = vmatprep.subr.mxu0 0.0
        %4159 = vmatpush1.msra.mxu0 0.0
        %4160 = vmatprep.subr.mxu0 0.0
        %4161 = vmatpush1.msra.mxu0 0.0
        %4162 = vmatprep.subr.mxu0 0.0
        %4163 = vmatpush1.msra.mxu0 0.0
        %4164 = vmatprep.subr.mxu0 0.0
        %4165 = vmatpush1.msra.mxu0 0.0
        %4166 = vmatprep.subr.mxu0 0.0
        %4167 = vmatpush1.msra.mxu0 0.0
        %4168 = vmatprep.subr.mxu0 0.0
        %4169 = vmatpush1.msra.mxu0 0.0
        %4170 = vmatprep.subr.mxu0 0.0
        %4171 = vmatpush1.msra.mxu0 0.0
        %4172 = vmatprep.subr.mxu0 0.0
        %4173 = vmatpush1.msra.mxu0 0.0
        %4174 = vmatprep.subr.mxu0 0.0
        %4175 = vmatpush1.msra.mxu0 0.0
        %4176 = vmatprep.subr.mxu0 0.0
        %4177 = vmatpush1.msra.mxu0 0.0
        %4178 = vmatprep.subr.mxu0 0.0
        %4179 = vmatpush1.msra.mxu0 0.0
        %4180 = vmatprep.subr.mxu0 0.0
        %4181 = vmatpush1.msra.mxu0 0.0
        %4182 = vmatprep.subr.mxu0 0.0
        %4183 = vmatpush1.msra.mxu0 0.0
        %4184 = vmatprep.subr.mxu0 0.0
        %4185 = vmatpush1.msra.mxu0 0.0
        %4186 = vmatprep.subr.mxu0 0.0
        %4187 = vmatpush1.msra.mxu0 0.0
        %4188 = vmatprep.subr.mxu0 0.0
        %4189 = vmatpush1.msra.mxu0 0.0
        %4190 = vmatprep.subr.mxu0 0.0
        %4191 = vmatpush1.msra.mxu0 0.0
        %4192 = vmatprep.subr.mxu0 0.0
        %4193 = vmatpush1.msra.mxu0 0.0
        %4194 = vmatprep.mubr.f32.mxu0 0.0
        %4195 = vmatmul.mubr.f32.gmra.mrb[0].mxu0 %v4125
        %v4196 = vpop.f32.mrb[0].mxu0
        %v4197 = vadd.f32 0.0, %v4196
        %v4198 = vpop.f32.mrb[0].mxu0
        %4199 = vmatprep.mubr.f32.mxu0 0.0
        %4200 = vmatmul.mubr.f32.gmra.mrb[0].mxu0 %v4128
        %v4201 = vpop.f32.mrb[0].mxu0
        %v4202 = vadd.f32 0.0, %v4201
        %v4203 = vpop.f32.mrb[0].mxu0
        %4204 = vdwg.mxu0
        %v4205 = vadd.f32 %v3926, %v4197
        %v4206 = vadd.f32 %v3927, %v4202
        %v4207 = vlaneseq
        %v4208 = vshrl.u32 %v4207, 7
        %v4209 = vsub.s32 0, %v4208
        %v4210 = vrot.slane %v3100, %v4209
        %v4211 = vadd.f32 %v4205, %v4210
        %v4212 = vadd.f32 %v4206, %v4210
        %v4213 = vadd.f32 %v2163, %v4211
        %v4214 = vadd.f32 %v2164, %v4212
        %v4215 = vld [vmem:[%s12 + $0x2] sm:$0x1]
        %v4216 = vld [vmem:[%s13 + $0x2] sm:$0x1]
        %4217 = vadd.xlane.f32.xlu0 %v4213
        %v4218 = vpop.xlane.xlu0 %4217
        %4219 = vadd.xlane.f32.xlu0 %v4214
        %v4220 = vpop.xlane.xlu0 %4219
        %v4221 = vmul.f32 %v4218, %v663
        %v4222 = vmul.f32 %v4220, %v663
        %v4223 = vsub.f32 %v4213, %v4221
        %v4224 = vsub.f32 %v4214, %v4222
        %v4225 = vmul.f32 %v4223, %v4223
        %v4226 = vmul.f32 %v4224, %v4224
        %4227 = vadd.xlane.f32.xlu0 %v4225
        %v4228 = vpop.xlane.xlu0 %4227
        %4229 = vadd.xlane.f32.xlu0 %v4226
        %v4230 = vpop.xlane.xlu0 %4229
        %v4231 = vmul.f32 %v4228, %v674
        %v4232 = vmul.f32 %v4230, %v674
        %v4233 = vlaneseq
        %v4234 = vshrl.u32 %v4233, 7
        %v4235 = vsub.s32 0, %v4234
        %v4236 = vrot.slane %v4215, %v4235
        %v4237 = vmul.f32 %v4236, %v4223
        %v4238 = vmul.f32 %v4236, %v4224
        %v4239 = vrsqrt.pop %v4231
        %v4240 = vmul.f32 %v4231, %v4239
        %vm4241 = vcmp.eq.f32.partialorder %v4231, inf
        %v4242 = vsel %vm4241, %v4231, %v4240
        %vm4243 = vcmp.eq.f32.partialorder %v4231, 0.0
        %v4244 = vand.u32 %v4231, 2147483648
        %v4245 = vsel %vm4243, %v4244, %v4242
        %v4246 = vrsqrt.pop %v4232
        %v4247 = vmul.f32 %v4232, %v4246
        %vm4248 = vcmp.eq.f32.partialorder %v4232, inf
        %v4249 = vsel %vm4248, %v4232, %v4247
        %vm4250 = vcmp.eq.f32.partialorder %v4232, 0.0
        %v4251 = vand.u32 %v4232, 2147483648
        %v4252 = vsel %vm4250, %v4251, %v4249
        %v4253 = vadd.f32 %v4245, 1e-06
        %v4254 = vadd.f32 %v4252, 1e-06
        %v4255 = vrcp.pop %v4253
        %v4256 = vmul.f32 %v4237, %v4255
        %v4257 = vrcp.pop %v4254
        %v4258 = vmul.f32 %v4238, %v4257
        %v4259 = vlaneseq
        %v4260 = vshrl.u32 %v4259, 7
        %v4261 = vsub.s32 0, %v4260
        %v4262 = vrot.slane %v4216, %v4261
        %v4263 = vadd.f32 %v4256, %v4262
        %v4264 = vadd.f32 %v4258, %v4262
        %v4265 = vld [vmem:[#allocation11] sm:$0xff]
        %v4266 = vld [vmem:[#allocation11 + $0x8] sm:$0xff]
        %v4267 = vld [vmem:[#allocation11 + $0x10] sm:$0xff]
        %v4268 = vld [vmem:[#allocation11 + $0x18] sm:$0xff]
        %v4269 = vld [vmem:[#allocation11 + $0x20] sm:$0xff]
        %v4270 = vld [vmem:[#allocation11 + $0x28] sm:$0xff]
        %v4271 = vld [vmem:[#allocation11 + $0x30] sm:$0xff]
        %v4272 = vld [vmem:[#allocation11 + $0x38] sm:$0xff]
        %v4273 = vld [vmem:[#allocation11 + $0x40] sm:$0xff]
        %v4274 = vld [vmem:[#allocation11 + $0x48] sm:$0xff]
        %v4275 = vld [vmem:[#allocation11 + $0x50] sm:$0xff]
        %v4276 = vld [vmem:[#allocation11 + $0x58] sm:$0xff]
        %v4277 = vld [vmem:[#allocation11 + $0x60] sm:$0xff]
        %v4278 = vld [vmem:[#allocation11 + $0x68] sm:$0xff]
        %v4279 = vld [vmem:[#allocation11 + $0x70] sm:$0xff]
        %v4280 = vld [vmem:[#allocation11 + $0x78] sm:$0xff]
        %v4281 = vld [vmem:[#allocation11 + $0x80] sm:$0xff]
        %v4282 = vld [vmem:[#allocation11 + $0x88] sm:$0xff]
        %v4283 = vld [vmem:[#allocation11 + $0x90] sm:$0xff]
        %v4284 = vld [vmem:[#allocation11 + $0x98] sm:$0xff]
        %v4285 = vld [vmem:[#allocation11 + $0xa0] sm:$0xff]
        %v4286 = vld [vmem:[#allocation11 + $0xa8] sm:$0xff]
        %v4287 = vld [vmem:[#allocation11 + $0xb0] sm:$0xff]
        %v4288 = vld [vmem:[#allocation11 + $0xb8] sm:$0xff]
        %v4289 = vld [vmem:[#allocation11 + $0xc0] sm:$0xff]
        %v4290 = vld [vmem:[#allocation11 + $0xc8] sm:$0xff]
        %v4291 = vld [vmem:[#allocation11 + $0xd0] sm:$0xff]
        %v4292 = vld [vmem:[#allocation11 + $0xd8] sm:$0xff]
        %v4293 = vld [vmem:[#allocation11 + $0xe0] sm:$0xff]
        %v4294 = vld [vmem:[#allocation11 + $0xe8] sm:$0xff]
        %v4295 = vld [vmem:[#allocation11 + $0xf0] sm:$0xff]
        %v4296 = vld [vmem:[#allocation11 + $0xf8] sm:$0xff]
        %v4297 = vld [vmem:[%s9] sm:$0x3]
        %v4299 = vlaneseq
        %v4300 = vshrl.u32 %v4299, 7
        %v4301 = vsub.s32 0, %v4300
        %v4302 = vrot.slane %v4297, %v4301
        %v4303 = vlaneseq
        %v4304 = vshrl.u32 %v4303, 7
        %v4305 = vsub.s32 1, %v4304
        %v4306 = vrot.slane %v4297, %v4305
        %4309 = vmatprep.subr.mxu0 %v4266
        %4310 = vmatpush1.msra.mxu0 %v4265
        %4311 = vmatprep.subr.mxu0 %v4268
        %4312 = vmatpush1.msra.mxu0 %v4267
        %4313 = vmatprep.subr.mxu0 %v4270
        %4314 = vmatpush1.msra.mxu0 %v4269
        %4315 = vmatprep.subr.mxu0 %v4272
        %4316 = vmatpush1.msra.mxu0 %v4271
        %4317 = vmatprep.subr.mxu0 %v4274
        %4318 = vmatpush1.msra.mxu0 %v4273
        %4319 = vmatprep.subr.mxu0 %v4276
        %4320 = vmatpush1.msra.mxu0 %v4275
        %4321 = vmatprep.subr.mxu0 %v4278
        %4322 = vmatpush1.msra.mxu0 %v4277
        %4323 = vmatprep.subr.mxu0 %v4280
        %4324 = vmatpush1.msra.mxu0 %v4279
        %4325 = vmatprep.subr.mxu0 %v4282
        %4326 = vmatpush1.msra.mxu0 %v4281
        %4327 = vmatprep.subr.mxu0 %v4284
        %4328 = vmatpush1.msra.mxu0 %v4283
        %4329 = vmatprep.subr.mxu0 %v4286
        %4330 = vmatpush1.msra.mxu0 %v4285
        %4331 = vmatprep.subr.mxu0 %v4288
        %4332 = vmatpush1.msra.mxu0 %v4287
        %4333 = vmatprep.subr.mxu0 %v4290
        %4334 = vmatpush1.msra.mxu0 %v4289
        %4335 = vmatprep.subr.mxu0 %v4292
        %4336 = vmatpush1.msra.mxu0 %v4291
        %4337 = vmatprep.subr.mxu0 %v4294
        %4338 = vmatpush1.msra.mxu0 %v4293
        %4339 = vmatprep.subr.mxu0 %v4296
        %4340 = vmatpush1.msra.mxu0 %v4295
        %4341 = vmatprep.subr.mxu0 0.0
        %4342 = vmatpush1.msra.mxu0 0.0
        %4343 = vmatprep.subr.mxu0 0.0
        %4344 = vmatpush1.msra.mxu0 0.0
        %4345 = vmatprep.subr.mxu0 0.0
        %4346 = vmatpush1.msra.mxu0 0.0
        %4347 = vmatprep.subr.mxu0 0.0
        %4348 = vmatpush1.msra.mxu0 0.0
        %4349 = vmatprep.subr.mxu0 0.0
        %4350 = vmatpush1.msra.mxu0 0.0
        %4351 = vmatprep.subr.mxu0 0.0
        %4352 = vmatpush1.msra.mxu0 0.0
        %4353 = vmatprep.subr.mxu0 0.0
        %4354 = vmatpush1.msra.mxu0 0.0
        %4355 = vmatprep.subr.mxu0 0.0
        %4356 = vmatpush1.msra.mxu0 0.0
        %4357 = vmatprep.subr.mxu0 0.0
        %4358 = vmatpush1.msra.mxu0 0.0
        %4359 = vmatprep.subr.mxu0 0.0
        %4360 = vmatpush1.msra.mxu0 0.0
        %4361 = vmatprep.subr.mxu0 0.0
        %4362 = vmatpush1.msra.mxu0 0.0
        %4363 = vmatprep.subr.mxu0 0.0
        %4364 = vmatpush1.msra.mxu0 0.0
        %4365 = vmatprep.subr.mxu0 0.0
        %4366 = vmatpush1.msra.mxu0 0.0
        %4367 = vmatprep.subr.mxu0 0.0
        %4368 = vmatpush1.msra.mxu0 0.0
        %4369 = vmatprep.subr.mxu0 0.0
        %4370 = vmatpush1.msra.mxu0 0.0
        %4371 = vmatprep.subr.mxu0 0.0
        %4372 = vmatpush1.msra.mxu0 0.0
        %4373 = vmatprep.mubr.f32.mxu0 0.0
        %4374 = vmatmul.mubr.f32.gmra.mrb[0].mxu0 %v4263
        %v4375 = vpop.f32.mrb[0].mxu0
        %v4376 = vadd.f32 %v4302, %v4375
        %v4377 = vpop.f32.mrb[0].mxu0
        %v4378 = vadd.f32 %v4306, %v4377
        %4379 = vmatprep.mubr.f32.mxu0 0.0
        %4380 = vmatmul.mubr.f32.gmra.mrb[0].mxu0 %v4264
        %v4381 = vpop.f32.mrb[0].mxu0
        %v4382 = vadd.f32 %v4302, %v4381
        %v4383 = vpop.f32.mrb[0].mxu0
        %v4384 = vadd.f32 %v4306, %v4383
        %4385 = vdwg.mxu0
        %v4386 = vmax.f32 %v4376, 0.0
        %v4387 = vmax.f32 %v4378, 0.0
        %v4388 = vmax.f32 %v4382, 0.0
        %v4389 = vmax.f32 %v4384, 0.0
        %v4390 = vld [vmem:[#allocation13] sm:$0xff]
        %v4391 = vld [vmem:[#allocation13 + $0x8] sm:$0xff]
        %v4392 = vld [vmem:[#allocation13 + $0x10] sm:$0xff]
        %v4393 = vld [vmem:[#allocation13 + $0x18] sm:$0xff]
        %v4394 = vld [vmem:[#allocation13 + $0x20] sm:$0xff]
        %v4395 = vld [vmem:[#allocation13 + $0x28] sm:$0xff]
        %v4396 = vld [vmem:[#allocation13 + $0x30] sm:$0xff]
        %v4397 = vld [vmem:[#allocation13 + $0x38] sm:$0xff]
        %v4398 = vld [vmem:[#allocation13 + $0x40] sm:$0xff]
        %v4399 = vld [vmem:[#allocation13 + $0x48] sm:$0xff]
        %v4400 = vld [vmem:[#allocation13 + $0x50] sm:$0xff]
        %v4401 = vld [vmem:[#allocation13 + $0x58] sm:$0xff]
        %v4402 = vld [vmem:[#allocation13 + $0x60] sm:$0xff]
        %v4403 = vld [vmem:[#allocation13 + $0x68] sm:$0xff]
        %v4404 = vld [vmem:[#allocation13 + $0x70] sm:$0xff]
        %v4405 = vld [vmem:[#allocation13 + $0x78] sm:$0xff]
        %v4406 = vld [vmem:[#allocation13 + $0x80] sm:$0xff]
        %v4407 = vld [vmem:[#allocation13 + $0x88] sm:$0xff]
        %v4408 = vld [vmem:[#allocation13 + $0x90] sm:$0xff]
        %v4409 = vld [vmem:[#allocation13 + $0x98] sm:$0xff]
        %v4410 = vld [vmem:[#allocation13 + $0xa0] sm:$0xff]
        %v4411 = vld [vmem:[#allocation13 + $0xa8] sm:$0xff]
        %v4412 = vld [vmem:[#allocation13 + $0xb0] sm:$0xff]
        %v4413 = vld [vmem:[#allocation13 + $0xb8] sm:$0xff]
        %v4414 = vld [vmem:[#allocation13 + $0xc0] sm:$0xff]
        %v4415 = vld [vmem:[#allocation13 + $0xc8] sm:$0xff]
        %v4416 = vld [vmem:[#allocation13 + $0xd0] sm:$0xff]
        %v4417 = vld [vmem:[#allocation13 + $0xd8] sm:$0xff]
        %v4418 = vld [vmem:[#allocation13 + $0xe0] sm:$0xff]
        %v4419 = vld [vmem:[#allocation13 + $0xe8] sm:$0xff]
        %v4420 = vld [vmem:[#allocation13 + $0xf0] sm:$0xff]
        %v4421 = vld [vmem:[#allocation13 + $0xf8] sm:$0xff]
        %v4422 = vld [vmem:[%s11] sm:$0x1]
        %v4424 = vlaneseq
        %v4425 = vshrl.u32 %v4424, 7
        %v4426 = vsub.s32 0, %v4425
        %v4427 = vrot.slane %v4422, %v4426
        %4429 = vmatprep.subr.mxu0 0.0
        %4430 = vmatpush1.msra.mxu0 %v4390
        %4431 = vmatprep.subr.mxu0 0.0
        %4432 = vmatpush1.msra.mxu0 %v4391
        %4433 = vmatprep.subr.mxu0 0.0
        %4434 = vmatpush1.msra.mxu0 %v4392
        %4435 = vmatprep.subr.mxu0 0.0
        %4436 = vmatpush1.msra.mxu0 %v4393
        %4437 = vmatprep.subr.mxu0 0.0
        %4438 = vmatpush1.msra.mxu0 %v4394
        %4439 = vmatprep.subr.mxu0 0.0
        %4440 = vmatpush1.msra.mxu0 %v4395
        %4441 = vmatprep.subr.mxu0 0.0
        %4442 = vmatpush1.msra.mxu0 %v4396
        %4443 = vmatprep.subr.mxu0 0.0
        %4444 = vmatpush1.msra.mxu0 %v4397
        %4445 = vmatprep.subr.mxu0 0.0
        %4446 = vmatpush1.msra.mxu0 %v4398
        %4447 = vmatprep.subr.mxu0 0.0
        %4448 = vmatpush1.msra.mxu0 %v4399
        %4449 = vmatprep.subr.mxu0 0.0
        %4450 = vmatpush1.msra.mxu0 %v4400
        %4451 = vmatprep.subr.mxu0 0.0
        %4452 = vmatpush1.msra.mxu0 %v4401
        %4453 = vmatprep.subr.mxu0 0.0
        %4454 = vmatpush1.msra.mxu0 %v4402
        %4455 = vmatprep.subr.mxu0 0.0
        %4456 = vmatpush1.msra.mxu0 %v4403
        %4457 = vmatprep.subr.mxu0 0.0
        %4458 = vmatpush1.msra.mxu0 %v4404
        %4459 = vmatprep.subr.mxu0 0.0
        %4460 = vmatpush1.msra.mxu0 %v4405
        %4461 = vmatprep.subr.mxu0 0.0
        %4462 = vmatpush1.msra.mxu0 %v4406
        %4463 = vmatprep.subr.mxu0 0.0
        %4464 = vmatpush1.msra.mxu0 %v4407
        %4465 = vmatprep.subr.mxu0 0.0
        %4466 = vmatpush1.msra.mxu0 %v4408
        %4467 = vmatprep.subr.mxu0 0.0
        %4468 = vmatpush1.msra.mxu0 %v4409
        %4469 = vmatprep.subr.mxu0 0.0
        %4470 = vmatpush1.msra.mxu0 %v4410
        %4471 = vmatprep.subr.mxu0 0.0
        %4472 = vmatpush1.msra.mxu0 %v4411
        %4473 = vmatprep.subr.mxu0 0.0
        %4474 = vmatpush1.msra.mxu0 %v4412
        %4475 = vmatprep.subr.mxu0 0.0
        %4476 = vmatpush1.msra.mxu0 %v4413
        %4477 = vmatprep.subr.mxu0 0.0
        %4478 = vmatpush1.msra.mxu0 %v4414
        %4479 = vmatprep.subr.mxu0 0.0
        %4480 = vmatpush1.msra.mxu0 %v4415
        %4481 = vmatprep.subr.mxu0 0.0
        %4482 = vmatpush1.msra.mxu0 %v4416
        %4483 = vmatprep.subr.mxu0 0.0
        %4484 = vmatpush1.msra.mxu0 %v4417
        %4485 = vmatprep.subr.mxu0 0.0
        %4486 = vmatpush1.msra.mxu0 %v4418
        %4487 = vmatprep.subr.mxu0 0.0
        %4488 = vmatpush1.msra.mxu0 %v4419
        %4489 = vmatprep.subr.mxu0 0.0
        %4490 = vmatpush1.msra.mxu0 %v4420
        %4491 = vmatprep.subr.mxu0 0.0
        %4492 = vmatpush1.msra.mxu0 %v4421
        %4493 = vmatprep.mubr.f32.mxu0 %v4387
        %4494 = vmatmul.mubr.f32.gmra.mrb[0].mxu0 %v4386
        %v4495 = vpop.f32.mrb[0].mxu0
        %v4496 = vadd.f32 %v4427, %v4495
        %v4497 = vpop.f32.mrb[0].mxu0
        %4498 = vmatprep.mubr.f32.mxu0 %v4389
        %4499 = vmatmul.mubr.f32.gmra.mrb[0].mxu0 %v4388
        %v4500 = vpop.f32.mrb[0].mxu0
        %v4501 = vadd.f32 %v4427, %v4500
        %v4502 = vpop.f32.mrb[0].mxu0
        %4503 = vdwg.mxu0
        %v4504 = vadd.f32 %v4213, %v4496
        %v4505 = vadd.f32 %v4214, %v4501
        %4506 = vst [vmem:[%s639] sm:$0xff] %v4504
        %4507 = vst [vmem:[%s639 + $0x8] sm:$0xff] %v4505
        %s4508 = sand.u32 %s358, 1
        %s4509 = scalar_lea.sflag [#allocation4], %s4508
        %s4510 = sand.u32 %s358, 1
        %s4511 = smul.addr %s4510, 16
        %s4512 = scalar_lea.vmem [#allocation14], %s4511
        %s4513 = sand.u32 %s384, 1
        %s4514 = scalar_lea.sflag [#allocation16], %s4513
        %s4515 = sand.u32 %s384, 1
        %s4516 = smul.addr %s4515, 64
        %s4517 = scalar_lea.vmem [#allocation15], %s4516
        // Predicated region
        $region105: #{tpu_custom_call.1} parent=75 // pred_check
          %p4518 = pneg %p368
        $region106: #{tpu_custom_call.1} parent=75 // pred_check_branch
          %4520 = sbr.rel (%p4518) target = $region108
        $region107: #{tpu_custom_call.1} parent=75 // pred_region
          %s4522 = ssub.s32 256, 256
          %4523 = vsyncadd %s4509, %s4522
          %s4524 = smul.addr %s41, 2
          %s4525 = smul.addr %s4524, 128
          %s4526 = scalar_lea.hbm %s14, %s4525
          %s4527 = sshll.u32 %s4512, 4
          %s4528 = int_to_ptr.vmem [resolvable:$true] %s4527
          %4533 = dma.vmem_to_hbm [thread:$0]  %s4528, 256, %s4526, %s4509, 128, 128, 8
        $region108: #{tpu_custom_call.1} parent=75 // pred_fallthru
          _
        // Predicated region
        $region109: #{tpu_custom_call.1} parent=75 // pred_check
          %p4534 = pneg %p394
        $region110: #{tpu_custom_call.1} parent=75 // pred_check_branch
          %4536 = sbr.rel (%p4534) target = $region112
        $region111: #{tpu_custom_call.1} parent=75 // pred_region
          %s4538 = ssub.s32 1024, 1024
          %4539 = vsyncadd %s4514, %s4538
          %s4540 = smul.addr %s41, 8
          %s4541 = smul.addr %s4540, 128
          %s4542 = scalar_lea.hbm %s15, %s4541
          %s4543 = sshll.u32 %s4517, 4
          %s4544 = int_to_ptr.vmem [resolvable:$true] %s4543
          %4549 = dma.vmem_to_hbm [thread:$0]  %s4544, 1024, %s4542, %s4514, 128, 128, 8
        $region112: #{tpu_custom_call.1} parent=75 // pred_fallthru
          _
      $region76: #{tpu_custom_call.1} parent=5 // pred_fallthru
        _
      %p4550 = scmp.le.s32.totalorder 2, %s36
      // Predicated region
      $region113: #{tpu_custom_call.1} parent=5 // pred_check
        %p4551 = pneg %p4550
      $region114: #{tpu_custom_call.1} parent=5 // pred_check_branch
        %4553 = sbr.rel (%p4551) target = $region116
      $region115: #{tpu_custom_call.1} parent=5 // pred_region
        %s4554 = ssub.s32 %s36, 2
        // Predicated region
        $region117: #{tpu_custom_call.1} parent=115 // pred_check
          %p4555 = pneg %p374
        $region118: #{tpu_custom_call.1} parent=115 // pred_check_branch
          %4557 = sbr.rel (%p4555) target = $region120
        $region119: #{tpu_custom_call.1} parent=115 // pred_region
          %s4558 = sand.u32 %s359, 1
          %s4559 = scalar_lea.sflag [#allocation4], %s4558
          %s4560 = sand.u32 %s359, 1
          %s4561 = smul.addr %s4560, 16
          %s4562 = scalar_lea.vmem [#allocation14], %s4561
          %4563 = dma.done %s4559, 256
        $region120: #{tpu_custom_call.1} parent=115 // pred_fallthru
          _
        // Predicated region
        $region121: #{tpu_custom_call.1} parent=115 // pred_check
          %p4564 = pneg %p400
        $region122: #{tpu_custom_call.1} parent=115 // pred_check_branch
          %4566 = sbr.rel (%p4564) target = $region124
        $region123: #{tpu_custom_call.1} parent=115 // pred_region
          %s4567 = sand.u32 %s385, 1
          %s4568 = scalar_lea.sflag [#allocation16], %s4567
          %s4569 = sand.u32 %s385, 1
          %s4570 = smul.addr %s4569, 64
          %s4571 = scalar_lea.vmem [#allocation15], %s4570
          %4572 = dma.done %s4568, 1024
        $region124: #{tpu_custom_call.1} parent=115 // pred_fallthru
          _
      $region116: #{tpu_custom_call.1} parent=5 // pred_fallthru
        _
    $region6: #{tpu_custom_call.1} parent=1 // loop_footer
      %s40 = sadd.s32 1, %s36
    $region7: #{tpu_custom_call.1} parent=1 // loop_footer_branch
      %35 = sbr.rel target = $region3
    $region8: #{tpu_custom_call.1} parent=1 // loop_exit
      _
    %4573 = vsyncpa [#allocation3], 1
    %s4574 = scalar_lea.sflag [#allocation3], 1
    %4575 = vsyncpa %s4574, 1
    %4576 = vsyncpa [#allocation6], 1
    %s4577 = scalar_lea.sflag [#allocation6], 1
    %4578 = vsyncpa %s4577, 1
    %4579 = vsyncpa [#allocation9], 1
    %4580 = vsyncpa [#allocation12], 1
    %4581 = vsyncpa [#allocation4], 1
    %s4582 = scalar_lea.sflag [#allocation4], 1
    %4583 = vsyncpa %s4582, 1
    %4584 = vsyncpa [#allocation16], 1
    %s4585 = scalar_lea.sflag [#allocation16], 1
    %4586 = vsyncpa %s4585, 1

</llo_original>
